<compile_context>
chip_gen: v6e
topology: v6e:2x2x1
jax: 0.10.0
libtpu: 0.0.40
codegen_flags: <defaults>
</compile_context>

<pallas_src>
import math

import jax
import jax.numpy as jnp
from jax.experimental import pallas as pl
from jax.experimental.pallas import tpu as pltpu


# ----------------------------------------------------------------------------
# Pallas kernel: one full bidirectional LSTM layer (both directions, all T).
# ----------------------------------------------------------------------------
def _bilstm_layer_kernel(gxf_ref, gxb_ref, whh_ref,
                         out_ref, hN_ref, cN_ref,
                         outf_sc, outb_sc, h_sc, c_sc):
    T = gxf_ref.shape[0]
    H = whh_ref.shape[1]

    h_sc[...] = jnp.zeros_like(h_sc)
    c_sc[...] = jnp.zeros_like(c_sc)

    # Hoisted out of the time loop: resident recurrent weights and the lane
    # mask selecting the tanh ("g") gate inside the fused (B, 4H) pass.
    whh_f = whh_ref[0]                                  # (H, 4H)
    whh_b = whh_ref[1]                                  # (H, 4H)
    lane = jax.lax.broadcasted_iota(jnp.int32, (1, 4 * H), 1)
    is_g = (lane >= 2 * H) & (lane < 3 * H)             # broadcasts over batch

    def _cell(gates, c_prev):
        # Fused nonlinearity over the whole (B, 4H) vreg; H-wide slices are
        # only used for the cheap elementwise combines afterwards.
        act = jnp.where(is_g, jnp.tanh(gates), jax.nn.sigmoid(gates))
        i_g = act[:, 0 * H:1 * H]
        f_g = act[:, 1 * H:2 * H]
        g_g = act[:, 2 * H:3 * H]
        o_g = act[:, 3 * H:4 * H]
        c_new = f_g * c_prev + i_g * g_g
        h_new = o_g * jnp.tanh(c_new)
        return h_new, c_new

    def step(t, carry):
        rt = T - 1 - t
        # Forward direction consumes time t; backward consumes time T-1-t
        # (reversed indexing on the VMEM slab instead of a materialized flip).
        # Only the small (B,H)x(H,4H) recurrent matmul sits on the critical path.
        gates_f = gxf_ref[t] + jnp.dot(h_sc[0], whh_f,
                                       preferred_element_type=jnp.float32)
        gates_b = gxb_ref[rt] + jnp.dot(h_sc[1], whh_b,
                                        preferred_element_type=jnp.float32)
        h_f, c_f = _cell(gates_f, c_sc[0])
        h_b, c_b = _cell(gates_b, c_sc[1])
        h_sc[0] = h_f
        h_sc[1] = h_b
        c_sc[0] = c_f
        c_sc[1] = c_b
        outf_sc[t] = h_f
        outb_sc[rt] = h_b
        return carry

    jax.lax.fori_loop(0, T, step, 0, unroll=(T <= 16))

    # Single lane-concatenated writeback instead of per-step masked stores.
    out_ref[...] = jnp.concatenate([outf_sc[...], outb_sc[...]], axis=-1)
    hN_ref[...] = h_sc[...]
    cN_ref[...] = c_sc[...]


def _bilstm_layer(x_tbd, layer_params):
    """Run one bidirectional LSTM layer over a time-major sequence.

    x_tbd : (T, B, Din) float32
    returns (out (T, B, 2H), h_layer (2, B, H), c_layer (2, B, H))
    """
    (wif, whf, bif, bhf), (wib, whb, bib, bhb) = layer_params
    T, B, _ = x_tbd.shape
    H = whf.shape[1]
    G = 4 * H
    f32 = jnp.float32

    # Hoisted input projection: one large (T*B, Din) x (Din, 4H) matmul per
    # direction (plain XLA on the MXU), with b_ih + b_hh folded in.
    # TODO(synk): bf16 weights would halve weight VMEM/HBM traffic on v6e/v7x;
    # kept f32 here to preserve tight numerical agreement with the reference.
    gx_f = (jnp.einsum('tbi,ig->tbg', x_tbd, wif.T.astype(f32))
            + (bif + bhf).astype(f32))
    gx_b = (jnp.einsum('tbi,ig->tbg', x_tbd, wib.T.astype(f32))
            + (bib + bhb).astype(f32))

    whh = jnp.stack([whf.T, whb.T], axis=0).astype(f32)        # (2, H, 4H)

    grid_spec = pltpu.PrefetchScalarGridSpec(
        num_scalar_prefetch=0,
        grid=(1,),
        in_specs=[
            pl.BlockSpec((T, B, G), lambda i: (0, 0, 0)),      # gates_x fwd
            pl.BlockSpec((T, B, G), lambda i: (0, 0, 0)),      # gates_x bwd
            pl.BlockSpec((2, H, G), lambda i: (0, 0, 0)),      # W_hh^T both dirs
        ],
        out_specs=[
            pl.BlockSpec((T, B, 2 * H), lambda i: (0, 0, 0)),  # per-step hidden
            pl.BlockSpec((2, B, H), lambda i: (0, 0, 0)),      # final h
            pl.BlockSpec((2, B, H), lambda i: (0, 0, 0)),      # final c
        ],
        scratch_shapes=[
            pltpu.VMEM((T, B, H), f32),                        # fwd hidden slab
            pltpu.VMEM((T, B, H), f32),                        # bwd hidden slab
            pltpu.VMEM((2, B, H), f32),                        # h carry
            pltpu.VMEM((2, B, H), f32),                        # c carry
        ],
    )

    out, h_n, c_n = pl.pallas_call(
        _bilstm_layer_kernel,
        out_shape=(
            jax.ShapeDtypeStruct((T, B, 2 * H), f32),
            jax.ShapeDtypeStruct((2, B, H), f32),
            jax.ShapeDtypeStruct((2, B, H), f32),
        ),
        grid_spec=grid_spec,
        compiler_params=pltpu.CompilerParams(
            dimension_semantics=("arbitrary",)),
    )(gx_f, gx_b, whh)
    return out, h_n, c_n


# ----------------------------------------------------------------------------
# Parameter construction (deterministic, PyTorch-default uniform init).
# ----------------------------------------------------------------------------
def init_bilstm_params(key, embedding_dim, hidden_size, n_layers):
    k = 1.0 / math.sqrt(hidden_size)
    params = []
    for layer in range(n_layers):
        in_dim = embedding_dim if layer == 0 else 2 * hidden_size
        layer_params = []
        for _direction in range(2):
            key, k1, k2, k3, k4 = jax.random.split(key, 5)
            w_ih = jax.random.uniform(k1, (4 * hidden_size, in_dim),
                                      jnp.float32, -k, k)
            w_hh = jax.random.uniform(k2, (4 * hidden_size, hidden_size),
                                      jnp.float32, -k, k)
            b_ih = jax.random.uniform(k3, (4 * hidden_size,), jnp.float32, -k, k)
            b_hh = jax.random.uniform(k4, (4 * hidden_size,), jnp.float32, -k, k)
            layer_params.append((w_ih, w_hh, b_ih, b_hh))
        params.append(layer_params)
    return params


# ----------------------------------------------------------------------------
# Full stacked bidirectional forward (ParallelBiLSTMEncoder.forward).
# ----------------------------------------------------------------------------
def parallel_bilstm_encoder(x_btd, params):
    """x_btd: (B, T, E) batch_first input. Returns (out, h_n, c_n)."""
    x = jnp.transpose(x_btd, (1, 0, 2)).astype(jnp.float32)    # -> (T, B, E)
    h_list, c_list = [], []
    for layer_params in params:
        # TODO(synk): inter-layer dropout applies only in training mode; the
        # eval-mode forward is identity, so it is intentionally omitted here.
        x, h_l, c_l = _bilstm_layer(x, layer_params)
        h_list.append(h_l)
        c_list.append(c_l)
    out = jnp.transpose(x, (1, 0, 2))                          # (B, T, 2H)
    h_n = jnp.concatenate(h_list, axis=0)                      # (2L, B, H)
    c_n = jnp.concatenate(c_list, axis=0)
    return out, h_n, c_n


# ----------------------------------------------------------------------------
# Pure-JAX reference (lax.scan) for a correctness check.
# ----------------------------------------------------------------------------
def _ref_direction(x_tbd, w_ih, w_hh, b_ih, b_hh):
    T, B, _ = x_tbd.shape
    H = w_hh.shape[1]

    def step(carry, x_t):
        h, c = carry
        gates = x_t @ w_ih.T + h @ w_hh.T + b_ih + b_hh
        i = jax.nn.sigmoid(gates[:, 0 * H:1 * H])
        f = jax.nn.sigmoid(gates[:, 1 * H:2 * H])
        g = jnp.tanh(gates[:, 2 * H:3 * H])
        o = jax.nn.sigmoid(gates[:, 3 * H:4 * H])
        c = f * c + i * g
        h = o * jnp.tanh(c)
        return (h, c), h

    init = (jnp.zeros((B, H), jnp.float32), jnp.zeros((B, H), jnp.float32))
    (h_n, c_n), out = jax.lax.scan(step, init, x_tbd)
    return out, h_n, c_n


def _ref_encoder(x_btd, params):
    x = jnp.transpose(x_btd, (1, 0, 2)).astype(jnp.float32)
    h_list, c_list = [], []
    for layer_params in params:
        (wif, whf, bif, bhf), (wib, whb, bib, bhb) = layer_params
        out_f, h_f, c_f = _ref_direction(x, wif, whf, bif, bhf)
        out_r, h_r, c_r = _ref_direction(jnp.flip(x, 0), wib, whb, bib, bhb)
        out_r = jnp.flip(out_r, 0)
        x = jnp.concatenate([out_f, out_r], axis=-1)
        h_list.extend([h_f, h_r])
        c_list.extend([c_f, c_r])
    return (jnp.transpose(x, (1, 0, 2)),
            jnp.stack(h_list, 0), jnp.stack(c_list, 0))


if __name__ == "__main__":
    BATCH, SEQ = 2, 8
    EMBED_DIM, HIDDEN, N_LAYERS = 32, 32, 2

    key = jax.random.PRNGKey(0)
    key_x, key_p = jax.random.split(key)
    x = jax.random.normal(key_x, (BATCH, SEQ, EMBED_DIM), jnp.float32)
    params = init_bilstm_params(key_p, EMBED_DIM, HIDDEN, N_LAYERS)

    out, h_n, c_n = parallel_bilstm_encoder(x, params)
    jax.block_until_ready((out, h_n, c_n))

    assert out.shape == (BATCH, SEQ, 2 * HIDDEN)
    assert h_n.shape == (2 * N_LAYERS, BATCH, HIDDEN)
    assert c_n.shape == (2 * N_LAYERS, BATCH, HIDDEN)

    # Validate against the pure-JAX reference.
    out_r, h_r, c_r = _ref_encoder(x, params)
    assert jnp.allclose(out, out_r, atol=2e-3, rtol=2e-3)
    assert jnp.allclose(h_n, h_r, atol=2e-3, rtol=2e-3)
    assert jnp.allclose(c_n, c_r, atol=2e-3, rtol=2e-3)

    print("KERNEL_OK")
</pallas_src>

<mosaic_0001>
module attributes {stable_mosaic.version = 11 : i64} {
  func.func @_bilstm_layer_kernel(%arg0: i32, %arg1: memref<8x2x128xf32, #tpu.memory_space<vmem>>, %arg2: memref<8x2x128xf32, #tpu.memory_space<vmem>>, %arg3: memref<2x32x128xf32, #tpu.memory_space<vmem>>, %arg4: memref<8x2x64xf32, #tpu.memory_space<vmem>>, %arg5: memref<2x2x32xf32, #tpu.memory_space<vmem>>, %arg6: memref<2x2x32xf32, #tpu.memory_space<vmem>>, %arg7: memref<8x2x32xf32, #tpu.memory_space<vmem>>, %arg8: memref<8x2x32xf32, #tpu.memory_space<vmem>>, %arg9: memref<2x2x32xf32, #tpu.memory_space<vmem>>, %arg10: memref<2x2x32xf32, #tpu.memory_space<vmem>>) attributes {dimension_semantics = [#tpu.dimension_semantics<arbitrary>], iteration_bounds = array<i64: 1>, scalar_prefetch = 0 : i64, scratch_operands = 4 : i64, tpu.core_type = #tpu.core_type<tc>, window_params = [{pipeline_mode = #tpu.pipeline_mode<synchronous>, transform_indices = @transform_0, window_bounds = array<i64: 8, 2, 128>}, {pipeline_mode = #tpu.pipeline_mode<synchronous>, transform_indices = @transform_1, window_bounds = array<i64: 8, 2, 128>}, {pipeline_mode = #tpu.pipeline_mode<synchronous>, transform_indices = @transform_2, window_bounds = array<i64: 2, 32, 128>}, {pipeline_mode = #tpu.pipeline_mode<synchronous>, transform_indices = @transform_3, window_bounds = array<i64: 8, 2, 64>}, {pipeline_mode = #tpu.pipeline_mode<synchronous>, transform_indices = @transform_4, window_bounds = array<i64: 2, 2, 32>}, {pipeline_mode = #tpu.pipeline_mode<synchronous>, transform_indices = @transform_5, window_bounds = array<i64: 2, 2, 32>}]} {
    %cst = arith.constant 0.000000e+00 : f32
    %0 = vector.broadcast %cst : f32 to vector<2x2x32xf32>
    %c0 = arith.constant 0 : index
    %c0_0 = arith.constant 0 : index
    %c0_1 = arith.constant 0 : index
    %1 = vector.load %arg9[%c0, %c0_0, %c0_1] : memref<2x2x32xf32, #tpu.memory_space<vmem>>, vector<2x2x32xf32>
    tpu.vector_store %arg9[%c0, %c0_0, %c0_1], %0 {strides = array<i32>} : memref<2x2x32xf32, #tpu.memory_space<vmem>>, vector<2x2x32xf32>,
    %cst_2 = arith.constant 0.000000e+00 : f32
    %2 = vector.broadcast %cst_2 : f32 to vector<2x2x32xf32>
    %c0_3 = arith.constant 0 : index
    %c0_4 = arith.constant 0 : index
    %c0_5 = arith.constant 0 : index
    %3 = vector.load %arg10[%c0_3, %c0_4, %c0_5] : memref<2x2x32xf32, #tpu.memory_space<vmem>>, vector<2x2x32xf32>
    tpu.vector_store %arg10[%c0_3, %c0_4, %c0_5], %2 {strides = array<i32>} : memref<2x2x32xf32, #tpu.memory_space<vmem>>, vector<2x2x32xf32>,
    %c0_6 = arith.constant 0 : index
    %c0_7 = arith.constant 0 : index
    %c0_8 = arith.constant 0 : index
    %4 = vector.load %arg3[%c0_6, %c0_7, %c0_8] : memref<2x32x128xf32, #tpu.memory_space<vmem>>, vector<1x32x128xf32>
    %5 = vector.shape_cast %4 : vector<1x32x128xf32> to vector<32x128xf32>
    %c1 = arith.constant 1 : index
    %c0_9 = arith.constant 0 : index
    %c0_10 = arith.constant 0 : index
    %6 = vector.load %arg3[%c1, %c0_9, %c0_10] : memref<2x32x128xf32, #tpu.memory_space<vmem>>, vector<1x32x128xf32>
    %7 = vector.shape_cast %6 : vector<1x32x128xf32> to vector<32x128xf32>
    %8 = tpu.iota {dimensions = array<i32: 1>} : vector<1x128xi32>
    %c64_i32 = arith.constant 64 : i32
    %9 = vector.broadcast %c64_i32 : i32 to vector<1x128xi32>
    %10 = arith.cmpi sge, %8, %9 : vector<1x128xi32>
    %c96_i32 = arith.constant 96 : i32
    %11 = vector.broadcast %c96_i32 : i32 to vector<1x128xi32>
    %12 = arith.cmpi slt, %8, %11 : vector<1x128xi32>
    %13 = arith.andi %10, %12 : vector<1x128xi1>
    %c0_i32 = arith.constant 0 : i32
    %c7_i32 = arith.constant 7 : i32
    %14 = arith.subi %c7_i32, %c0_i32 : i32
    %15 = arith.index_cast %c0_i32 : i32 to index
    %c0_11 = arith.constant 0 : index
    %c0_12 = arith.constant 0 : index
    %16 = vector.load %arg1[%15, %c0_11, %c0_12] : memref<8x2x128xf32, #tpu.memory_space<vmem>>, vector<1x2x128xf32>
    %17 = vector.shape_cast %16 : vector<1x2x128xf32> to vector<2x128xf32>
    %c0_13 = arith.constant 0 : index
    %c0_14 = arith.constant 0 : index
    %c0_15 = arith.constant 0 : index
    %18 = vector.load %arg9[%c0_13, %c0_14, %c0_15] : memref<2x2x32xf32, #tpu.memory_space<vmem>>, vector<1x2x32xf32>
    %19 = vector.shape_cast %18 : vector<1x2x32xf32> to vector<2x32xf32>
    %cst_16 = arith.constant dense<0.000000e+00> : vector<2x128xf32>
    %20 = tpu.matmul %19, %5, %cst_16 {dimension_numbers = #tpu.dot_dimension_numbers<[1], [0], [0], [1], [0, 0, 1, 1], [], []>} : vector<2x32xf32>, vector<32x128xf32>, vector<2x128xf32> -> vector<2x128xf32>
    %21 = arith.addf %17, %20 : vector<2x128xf32>
    %22 = arith.index_cast %14 : i32 to index
    %c0_17 = arith.constant 0 : index
    %c0_18 = arith.constant 0 : index
    %23 = vector.load %arg2[%22, %c0_17, %c0_18] : memref<8x2x128xf32, #tpu.memory_space<vmem>>, vector<1x2x128xf32>
    %24 = vector.shape_cast %23 : vector<1x2x128xf32> to vector<2x128xf32>
    %c1_19 = arith.constant 1 : index
    %c0_20 = arith.constant 0 : index
    %c0_21 = arith.constant 0 : index
    %25 = vector.load %arg9[%c1_19, %c0_20, %c0_21] : memref<2x2x32xf32, #tpu.memory_space<vmem>>, vector<1x2x32xf32>
    %26 = vector.shape_cast %25 : vector<1x2x32xf32> to vector<2x32xf32>
    %cst_22 = arith.constant dense<0.000000e+00> : vector<2x128xf32>
    %27 = tpu.matmul %26, %7, %cst_22 {dimension_numbers = #tpu.dot_dimension_numbers<[1], [0], [0], [1], [0, 0, 1, 1], [], []>} : vector<2x32xf32>, vector<32x128xf32>, vector<2x128xf32> -> vector<2x128xf32>
    %28 = arith.addf %24, %27 : vector<2x128xf32>
    %c0_23 = arith.constant 0 : index
    %c0_24 = arith.constant 0 : index
    %c0_25 = arith.constant 0 : index
    %29 = vector.load %arg10[%c0_23, %c0_24, %c0_25] : memref<2x2x32xf32, #tpu.memory_space<vmem>>, vector<1x2x32xf32>
    %30 = vector.shape_cast %29 : vector<1x2x32xf32> to vector<2x32xf32>
    %31 = math.tanh %21 : vector<2x128xf32>
    %32 = arith.negf %21 : vector<2x128xf32>
    %33 = math.exp %32 : vector<2x128xf32>
    %cst_26 = arith.constant 1.000000e+00 : f32
    %34 = vector.broadcast %cst_26 : f32 to vector<2x128xf32>
    %35 = arith.addf %34, %33 : vector<2x128xf32>
    %36 = arith.divf %34, %35 : vector<2x128xf32>
    %37 = vector.shape_cast %13 : vector<1x128xi1> to vector<1x128xi1>
    %38 = vector.broadcast %37 : vector<1x128xi1> to vector<2x128xi1>
    %39 = arith.select %38, %31, %36 : vector<2x128xi1>, vector<2x128xf32>
    %40 = vector.extract_strided_slice %39 {offsets = [0, 0], sizes = [2, 32], strides = [1, 1]} : vector<2x128xf32> to vector<2x32xf32>
    %41 = vector.extract_strided_slice %39 {offsets = [0, 32], sizes = [2, 32], strides = [1, 1]} : vector<2x128xf32> to vector<2x32xf32>
    %42 = vector.extract_strided_slice %39 {offsets = [0, 64], sizes = [2, 32], strides = [1, 1]} : vector<2x128xf32> to vector<2x32xf32>
    %43 = vector.extract_strided_slice %39 {offsets = [0, 96], sizes = [2, 32], strides = [1, 1]} : vector<2x128xf32> to vector<2x32xf32>
    %44 = arith.mulf %41, %30 : vector<2x32xf32>
    %45 = arith.mulf %40, %42 : vector<2x32xf32>
    %46 = arith.addf %44, %45 : vector<2x32xf32>
    %47 = math.tanh %46 : vector<2x32xf32>
    %48 = arith.mulf %43, %47 : vector<2x32xf32>
    %c1_27 = arith.constant 1 : index
    %c0_28 = arith.constant 0 : index
    %c0_29 = arith.constant 0 : index
    %49 = vector.load %arg10[%c1_27, %c0_28, %c0_29] : memref<2x2x32xf32, #tpu.memory_space<vmem>>, vector<1x2x32xf32>
    %50 = vector.shape_cast %49 : vector<1x2x32xf32> to vector<2x32xf32>
    %51 = math.tanh %28 : vector<2x128xf32>
    %52 = arith.negf %28 : vector<2x128xf32>
    %53 = math.exp %52 : vector<2x128xf32>
    %cst_30 = arith.constant 1.000000e+00 : f32
    %54 = vector.broadcast %cst_30 : f32 to vector<2x128xf32>
    %55 = arith.addf %54, %53 : vector<2x128xf32>
    %56 = arith.divf %54, %55 : vector<2x128xf32>
    %57 = vector.shape_cast %13 : vector<1x128xi1> to vector<1x128xi1>
    %58 = vector.broadcast %57 : vector<1x128xi1> to vector<2x128xi1>
    %59 = arith.select %58, %51, %56 : vector<2x128xi1>, vector<2x128xf32>
    %60 = vector.extract_strided_slice %59 {offsets = [0, 0], sizes = [2, 32], strides = [1, 1]} : vector<2x128xf32> to vector<2x32xf32>
    %61 = vector.extract_strided_slice %59 {offsets = [0, 32], sizes = [2, 32], strides = [1, 1]} : vector<2x128xf32> to vector<2x32xf32>
    %62 = vector.extract_strided_slice %59 {offsets = [0, 64], sizes = [2, 32], strides = [1, 1]} : vector<2x128xf32> to vector<2x32xf32>
    %63 = vector.extract_strided_slice %59 {offsets = [0, 96], sizes = [2, 32], strides = [1, 1]} : vector<2x128xf32> to vector<2x32xf32>
    %64 = arith.mulf %61, %50 : vector<2x32xf32>
    %65 = arith.mulf %60, %62 : vector<2x32xf32>
    %66 = arith.addf %64, %65 : vector<2x32xf32>
    %67 = math.tanh %66 : vector<2x32xf32>
    %68 = arith.mulf %63, %67 : vector<2x32xf32>
    %c0_31 = arith.constant 0 : index
    %c0_32 = arith.constant 0 : index
    %c0_33 = arith.constant 0 : index
    %69 = vector.load %arg9[%c0_31, %c0_32, %c0_33] : memref<2x2x32xf32, #tpu.memory_space<vmem>>, vector<1x2x32xf32>
    %70 = vector.shape_cast %69 : vector<1x2x32xf32> to vector<2x32xf32>
    %71 = vector.shape_cast %48 : vector<2x32xf32> to vector<1x2x32xf32>
    tpu.vector_store %arg9[%c0_31, %c0_32, %c0_33], %71 {strides = array<i32>} : memref<2x2x32xf32, #tpu.memory_space<vmem>>, vector<1x2x32xf32>,
    %c1_34 = arith.constant 1 : index
    %c0_35 = arith.constant 0 : index
    %c0_36 = arith.constant 0 : index
    %72 = vector.load %arg9[%c1_34, %c0_35, %c0_36] : memref<2x2x32xf32, #tpu.memory_space<vmem>>, vector<1x2x32xf32>
    %73 = vector.shape_cast %72 : vector<1x2x32xf32> to vector<2x32xf32>
    %74 = vector.shape_cast %68 : vector<2x32xf32> to vector<1x2x32xf32>
    tpu.vector_store %arg9[%c1_34, %c0_35, %c0_36], %74 {strides = array<i32>} : memref<2x2x32xf32, #tpu.memory_space<vmem>>, vector<1x2x32xf32>,
    %c0_37 = arith.constant 0 : index
    %c0_38 = arith.constant 0 : index
    %c0_39 = arith.constant 0 : index
    %75 = vector.load %arg10[%c0_37, %c0_38, %c0_39] : memref<2x2x32xf32, #tpu.memory_space<vmem>>, vector<1x2x32xf32>
    %76 = vector.shape_cast %75 : vector<1x2x32xf32> to vector<2x32xf32>
    %77 = vector.shape_cast %46 : vector<2x32xf32> to vector<1x2x32xf32>
    tpu.vector_store %arg10[%c0_37, %c0_38, %c0_39], %77 {strides = array<i32>} : memref<2x2x32xf32, #tpu.memory_space<vmem>>, vector<1x2x32xf32>,
    %c1_40 = arith.constant 1 : index
    %c0_41 = arith.constant 0 : index
    %c0_42 = arith.constant 0 : index
    %78 = vector.load %arg10[%c1_40, %c0_41, %c0_42] : memref<2x2x32xf32, #tpu.memory_space<vmem>>, vector<1x2x32xf32>
    %79 = vector.shape_cast %78 : vector<1x2x32xf32> to vector<2x32xf32>
    %80 = vector.shape_cast %66 : vector<2x32xf32> to vector<1x2x32xf32>
    tpu.vector_store %arg10[%c1_40, %c0_41, %c0_42], %80 {strides = array<i32>} : memref<2x2x32xf32, #tpu.memory_space<vmem>>, vector<1x2x32xf32>,
    %81 = arith.index_cast %c0_i32 : i32 to index
    %c0_43 = arith.constant 0 : index
    %c0_44 = arith.constant 0 : index
    %82 = vector.load %arg7[%81, %c0_43, %c0_44] : memref<8x2x32xf32, #tpu.memory_space<vmem>>, vector<1x2x32xf32>
    %83 = vector.shape_cast %82 : vector<1x2x32xf32> to vector<2x32xf32>
    %84 = vector.shape_cast %48 : vector<2x32xf32> to vector<1x2x32xf32>
    tpu.vector_store %arg7[%81, %c0_43, %c0_44], %84 {strides = array<i32>} : memref<8x2x32xf32, #tpu.memory_space<vmem>>, vector<1x2x32xf32>,
    %85 = arith.index_cast %14 : i32 to index
    %c0_45 = arith.constant 0 : index
    %c0_46 = arith.constant 0 : index
    %86 = vector.load %arg8[%85, %c0_45, %c0_46] : memref<8x2x32xf32, #tpu.memory_space<vmem>>, vector<1x2x32xf32>
    %87 = vector.shape_cast %86 : vector<1x2x32xf32> to vector<2x32xf32>
    %88 = vector.shape_cast %68 : vector<2x32xf32> to vector<1x2x32xf32>
    tpu.vector_store %arg8[%85, %c0_45, %c0_46], %88 {strides = array<i32>} : memref<8x2x32xf32, #tpu.memory_space<vmem>>, vector<1x2x32xf32>,
    %c1_i32 = arith.constant 1 : i32
    %c7_i32_47 = arith.constant 7 : i32
    %89 = arith.subi %c7_i32_47, %c1_i32 : i32
    %90 = arith.index_cast %c1_i32 : i32 to index
    %c0_48 = arith.constant 0 : index
    %c0_49 = arith.constant 0 : index
    %91 = vector.load %arg1[%90, %c0_48, %c0_49] : memref<8x2x128xf32, #tpu.memory_space<vmem>>, vector<1x2x128xf32>
    %92 = vector.shape_cast %91 : vector<1x2x128xf32> to vector<2x128xf32>
    %c0_50 = arith.constant 0 : index
    %c0_51 = arith.constant 0 : index
    %c0_52 = arith.constant 0 : index
    %93 = vector.load %arg9[%c0_50, %c0_51, %c0_52] : memref<2x2x32xf32, #tpu.memory_space<vmem>>, vector<1x2x32xf32>
    %94 = vector.shape_cast %93 : vector<1x2x32xf32> to vector<2x32xf32>
    %cst_53 = arith.constant dense<0.000000e+00> : vector<2x128xf32>
    %95 = tpu.matmul %94, %5, %cst_53 {dimension_numbers = #tpu.dot_dimension_numbers<[1], [0], [0], [1], [0, 0, 1, 1], [], []>} : vector<2x32xf32>, vector<32x128xf32>, vector<2x128xf32> -> vector<2x128xf32>
    %96 = arith.addf %92, %95 : vector<2x128xf32>
    %97 = arith.index_cast %89 : i32 to index
    %c0_54 = arith.constant 0 : index
    %c0_55 = arith.constant 0 : index
    %98 = vector.load %arg2[%97, %c0_54, %c0_55] : memref<8x2x128xf32, #tpu.memory_space<vmem>>, vector<1x2x128xf32>
    %99 = vector.shape_cast %98 : vector<1x2x128xf32> to vector<2x128xf32>
    %c1_56 = arith.constant 1 : index
    %c0_57 = arith.constant 0 : index
    %c0_58 = arith.constant 0 : index
    %100 = vector.load %arg9[%c1_56, %c0_57, %c0_58] : memref<2x2x32xf32, #tpu.memory_space<vmem>>, vector<1x2x32xf32>
    %101 = vector.shape_cast %100 : vector<1x2x32xf32> to vector<2x32xf32>
    %cst_59 = arith.constant dense<0.000000e+00> : vector<2x128xf32>
    %102 = tpu.matmul %101, %7, %cst_59 {dimension_numbers = #tpu.dot_dimension_numbers<[1], [0], [0], [1], [0, 0, 1, 1], [], []>} : vector<2x32xf32>, vector<32x128xf32>, vector<2x128xf32> -> vector<2x128xf32>
    %103 = arith.addf %99, %102 : vector<2x128xf32>
    %c0_60 = arith.constant 0 : index
    %c0_61 = arith.constant 0 : index
    %c0_62 = arith.constant 0 : index
    %104 = vector.load %arg10[%c0_60, %c0_61, %c0_62] : memref<2x2x32xf32, #tpu.memory_space<vmem>>, vector<1x2x32xf32>
    %105 = vector.shape_cast %104 : vector<1x2x32xf32> to vector<2x32xf32>
    %106 = math.tanh %96 : vector<2x128xf32>
    %107 = arith.negf %96 : vector<2x128xf32>
    %108 = math.exp %107 : vector<2x128xf32>
    %cst_63 = arith.constant 1.000000e+00 : f32
    %109 = vector.broadcast %cst_63 : f32 to vector<2x128xf32>
    %110 = arith.addf %109, %108 : vector<2x128xf32>
    %111 = arith.divf %109, %110 : vector<2x128xf32>
    %112 = vector.shape_cast %13 : vector<1x128xi1> to vector<1x128xi1>
    %113 = vector.broadcast %112 : vector<1x128xi1> to vector<2x128xi1>
    %114 = arith.select %113, %106, %111 : vector<2x128xi1>, vector<2x128xf32>
    %115 = vector.extract_strided_slice %114 {offsets = [0, 0], sizes = [2, 32], strides = [1, 1]} : vector<2x128xf32> to vector<2x32xf32>
    %116 = vector.extract_strided_slice %114 {offsets = [0, 32], sizes = [2, 32], strides = [1, 1]} : vector<2x128xf32> to vector<2x32xf32>
    %117 = vector.extract_strided_slice %114 {offsets = [0, 64], sizes = [2, 32], strides = [1, 1]} : vector<2x128xf32> to vector<2x32xf32>
    %118 = vector.extract_strided_slice %114 {offsets = [0, 96], sizes = [2, 32], strides = [1, 1]} : vector<2x128xf32> to vector<2x32xf32>
    %119 = arith.mulf %116, %105 : vector<2x32xf32>
    %120 = arith.mulf %115, %117 : vector<2x32xf32>
    %121 = arith.addf %119, %120 : vector<2x32xf32>
    %122 = math.tanh %121 : vector<2x32xf32>
    %123 = arith.mulf %118, %122 : vector<2x32xf32>
    %c1_64 = arith.constant 1 : index
    %c0_65 = arith.constant 0 : index
    %c0_66 = arith.constant 0 : index
    %124 = vector.load %arg10[%c1_64, %c0_65, %c0_66] : memref<2x2x32xf32, #tpu.memory_space<vmem>>, vector<1x2x32xf32>
    %125 = vector.shape_cast %124 : vector<1x2x32xf32> to vector<2x32xf32>
    %126 = math.tanh %103 : vector<2x128xf32>
    %127 = arith.negf %103 : vector<2x128xf32>
    %128 = math.exp %127 : vector<2x128xf32>
    %cst_67 = arith.constant 1.000000e+00 : f32
    %129 = vector.broadcast %cst_67 : f32 to vector<2x128xf32>
    %130 = arith.addf %129, %128 : vector<2x128xf32>
    %131 = arith.divf %129, %130 : vector<2x128xf32>
    %132 = vector.shape_cast %13 : vector<1x128xi1> to vector<1x128xi1>
    %133 = vector.broadcast %132 : vector<1x128xi1> to vector<2x128xi1>
    %134 = arith.select %133, %126, %131 : vector<2x128xi1>, vector<2x128xf32>
    %135 = vector.extract_strided_slice %134 {offsets = [0, 0], sizes = [2, 32], strides = [1, 1]} : vector<2x128xf32> to vector<2x32xf32>
    %136 = vector.extract_strided_slice %134 {offsets = [0, 32], sizes = [2, 32], strides = [1, 1]} : vector<2x128xf32> to vector<2x32xf32>
    %137 = vector.extract_strided_slice %134 {offsets = [0, 64], sizes = [2, 32], strides = [1, 1]} : vector<2x128xf32> to vector<2x32xf32>
    %138 = vector.extract_strided_slice %134 {offsets = [0, 96], sizes = [2, 32], strides = [1, 1]} : vector<2x128xf32> to vector<2x32xf32>
    %139 = arith.mulf %136, %125 : vector<2x32xf32>
    %140 = arith.mulf %135, %137 : vector<2x32xf32>
    %141 = arith.addf %139, %140 : vector<2x32xf32>
    %142 = math.tanh %141 : vector<2x32xf32>
    %143 = arith.mulf %138, %142 : vector<2x32xf32>
    %c0_68 = arith.constant 0 : index
    %c0_69 = arith.constant 0 : index
    %c0_70 = arith.constant 0 : index
    %144 = vector.load %arg9[%c0_68, %c0_69, %c0_70] : memref<2x2x32xf32, #tpu.memory_space<vmem>>, vector<1x2x32xf32>
    %145 = vector.shape_cast %144 : vector<1x2x32xf32> to vector<2x32xf32>
    %146 = vector.shape_cast %123 : vector<2x32xf32> to vector<1x2x32xf32>
    tpu.vector_store %arg9[%c0_68, %c0_69, %c0_70], %146 {strides = array<i32>} : memref<2x2x32xf32, #tpu.memory_space<vmem>>, vector<1x2x32xf32>,
    %c1_71 = arith.constant 1 : index
    %c0_72 = arith.constant 0 : index
    %c0_73 = arith.constant 0 : index
    %147 = vector.load %arg9[%c1_71, %c0_72, %c0_73] : memref<2x2x32xf32, #tpu.memory_space<vmem>>, vector<1x2x32xf32>
    %148 = vector.shape_cast %147 : vector<1x2x32xf32> to vector<2x32xf32>
    %149 = vector.shape_cast %143 : vector<2x32xf32> to vector<1x2x32xf32>
    tpu.vector_store %arg9[%c1_71, %c0_72, %c0_73], %149 {strides = array<i32>} : memref<2x2x32xf32, #tpu.memory_space<vmem>>, vector<1x2x32xf32>,
    %c0_74 = arith.constant 0 : index
    %c0_75 = arith.constant 0 : index
    %c0_76 = arith.constant 0 : index
    %150 = vector.load %arg10[%c0_74, %c0_75, %c0_76] : memref<2x2x32xf32, #tpu.memory_space<vmem>>, vector<1x2x32xf32>
    %151 = vector.shape_cast %150 : vector<1x2x32xf32> to vector<2x32xf32>
    %152 = vector.shape_cast %121 : vector<2x32xf32> to vector<1x2x32xf32>
    tpu.vector_store %arg10[%c0_74, %c0_75, %c0_76], %152 {strides = array<i32>} : memref<2x2x32xf32, #tpu.memory_space<vmem>>, vector<1x2x32xf32>,
    %c1_77 = arith.constant 1 : index
    %c0_78 = arith.constant 0 : index
    %c0_79 = arith.constant 0 : index
    %153 = vector.load %arg10[%c1_77, %c0_78, %c0_79] : memref<2x2x32xf32, #tpu.memory_space<vmem>>, vector<1x2x32xf32>
    %154 = vector.shape_cast %153 : vector<1x2x32xf32> to vector<2x32xf32>
    %155 = vector.shape_cast %141 : vector<2x32xf32> to vector<1x2x32xf32>
    tpu.vector_store %arg10[%c1_77, %c0_78, %c0_79], %155 {strides = array<i32>} : memref<2x2x32xf32, #tpu.memory_space<vmem>>, vector<1x2x32xf32>,
    %156 = arith.index_cast %c1_i32 : i32 to index
    %c0_80 = arith.constant 0 : index
    %c0_81 = arith.constant 0 : index
    %157 = vector.load %arg7[%156, %c0_80, %c0_81] : memref<8x2x32xf32, #tpu.memory_space<vmem>>, vector<1x2x32xf32>
    %158 = vector.shape_cast %157 : vector<1x2x32xf32> to vector<2x32xf32>
    %159 = vector.shape_cast %123 : vector<2x32xf32> to vector<1x2x32xf32>
    tpu.vector_store %arg7[%156, %c0_80, %c0_81], %159 {strides = array<i32>} : memref<8x2x32xf32, #tpu.memory_space<vmem>>, vector<1x2x32xf32>,
    %160 = arith.index_cast %89 : i32 to index
    %c0_82 = arith.constant 0 : index
    %c0_83 = arith.constant 0 : index
    %161 = vector.load %arg8[%160, %c0_82, %c0_83] : memref<8x2x32xf32, #tpu.memory_space<vmem>>, vector<1x2x32xf32>
    %162 = vector.shape_cast %161 : vector<1x2x32xf32> to vector<2x32xf32>
    %163 = vector.shape_cast %143 : vector<2x32xf32> to vector<1x2x32xf32>
    tpu.vector_store %arg8[%160, %c0_82, %c0_83], %163 {strides = array<i32>} : memref<8x2x32xf32, #tpu.memory_space<vmem>>, vector<1x2x32xf32>,
    %c2_i32 = arith.constant 2 : i32
    %c7_i32_84 = arith.constant 7 : i32
    %164 = arith.subi %c7_i32_84, %c2_i32 : i32
    %165 = arith.index_cast %c2_i32 : i32 to index
    %c0_85 = arith.constant 0 : index
    %c0_86 = arith.constant 0 : index
    %166 = vector.load %arg1[%165, %c0_85, %c0_86] : memref<8x2x128xf32, #tpu.memory_space<vmem>>, vector<1x2x128xf32>
    %167 = vector.shape_cast %166 : vector<1x2x128xf32> to vector<2x128xf32>
    %c0_87 = arith.constant 0 : index
    %c0_88 = arith.constant 0 : index
    %c0_89 = arith.constant 0 : index
    %168 = vector.load %arg9[%c0_87, %c0_88, %c0_89] : memref<2x2x32xf32, #tpu.memory_space<vmem>>, vector<1x2x32xf32>
    %169 = vector.shape_cast %168 : vector<1x2x32xf32> to vector<2x32xf32>
    %cst_90 = arith.constant dense<0.000000e+00> : vector<2x128xf32>
    %170 = tpu.matmul %169, %5, %cst_90 {dimension_numbers = #tpu.dot_dimension_numbers<[1], [0], [0], [1], [0, 0, 1, 1], [], []>} : vector<2x32xf32>, vector<32x128xf32>, vector<2x128xf32> -> vector<2x128xf32>
    %171 = arith.addf %167, %170 : vector<2x128xf32>
    %172 = arith.index_cast %164 : i32 to index
    %c0_91 = arith.constant 0 : index
    %c0_92 = arith.constant 0 : index
    %173 = vector.load %arg2[%172, %c0_91, %c0_92] : memref<8x2x128xf32, #tpu.memory_space<vmem>>, vector<1x2x128xf32>
    %174 = vector.shape_cast %173 : vector<1x2x128xf32> to vector<2x128xf32>
    %c1_93 = arith.constant 1 : index
    %c0_94 = arith.constant 0 : index
    %c0_95 = arith.constant 0 : index
    %175 = vector.load %arg9[%c1_93, %c0_94, %c0_95] : memref<2x2x32xf32, #tpu.memory_space<vmem>>, vector<1x2x32xf32>
    %176 = vector.shape_cast %175 : vector<1x2x32xf32> to vector<2x32xf32>
    %cst_96 = arith.constant dense<0.000000e+00> : vector<2x128xf32>
    %177 = tpu.matmul %176, %7, %cst_96 {dimension_numbers = #tpu.dot_dimension_numbers<[1], [0], [0], [1], [0, 0, 1, 1], [], []>} : vector<2x32xf32>, vector<32x128xf32>, vector<2x128xf32> -> vector<2x128xf32>
    %178 = arith.addf %174, %177 : vector<2x128xf32>
    %c0_97 = arith.constant 0 : index
    %c0_98 = arith.constant 0 : index
    %c0_99 = arith.constant 0 : index
    %179 = vector.load %arg10[%c0_97, %c0_98, %c0_99] : memref<2x2x32xf32, #tpu.memory_space<vmem>>, vector<1x2x32xf32>
    %180 = vector.shape_cast %179 : vector<1x2x32xf32> to vector<2x32xf32>
    %181 = math.tanh %171 : vector<2x128xf32>
    %182 = arith.negf %171 : vector<2x128xf32>
    %183 = math.exp %182 : vector<2x128xf32>
    %cst_100 = arith.constant 1.000000e+00 : f32
    %184 = vector.broadcast %cst_100 : f32 to vector<2x128xf32>
    %185 = arith.addf %184, %183 : vector<2x128xf32>
    %186 = arith.divf %184, %185 : vector<2x128xf32>
    %187 = vector.shape_cast %13 : vector<1x128xi1> to vector<1x128xi1>
    %188 = vector.broadcast %187 : vector<1x128xi1> to vector<2x128xi1>
    %189 = arith.select %188, %181, %186 : vector<2x128xi1>, vector<2x128xf32>
    %190 = vector.extract_strided_slice %189 {offsets = [0, 0], sizes = [2, 32], strides = [1, 1]} : vector<2x128xf32> to vector<2x32xf32>
    %191 = vector.extract_strided_slice %189 {offsets = [0, 32], sizes = [2, 32], strides = [1, 1]} : vector<2x128xf32> to vector<2x32xf32>
    %192 = vector.extract_strided_slice %189 {offsets = [0, 64], sizes = [2, 32], strides = [1, 1]} : vector<2x128xf32> to vector<2x32xf32>
    %193 = vector.extract_strided_slice %189 {offsets = [0, 96], sizes = [2, 32], strides = [1, 1]} : vector<2x128xf32> to vector<2x32xf32>
    %194 = arith.mulf %191, %180 : vector<2x32xf32>
    %195 = arith.mulf %190, %192 : vector<2x32xf32>
    %196 = arith.addf %194, %195 : vector<2x32xf32>
    %197 = math.tanh %196 : vector<2x32xf32>
    %198 = arith.mulf %193, %197 : vector<2x32xf32>
    %c1_101 = arith.constant 1 : index
    %c0_102 = arith.constant 0 : index
    %c0_103 = arith.constant 0 : index
    %199 = vector.load %arg10[%c1_101, %c0_102, %c0_103] : memref<2x2x32xf32, #tpu.memory_space<vmem>>, vector<1x2x32xf32>
    %200 = vector.shape_cast %199 : vector<1x2x32xf32> to vector<2x32xf32>
    %201 = math.tanh %178 : vector<2x128xf32>
    %202 = arith.negf %178 : vector<2x128xf32>
    %203 = math.exp %202 : vector<2x128xf32>
    %cst_104 = arith.constant 1.000000e+00 : f32
    %204 = vector.broadcast %cst_104 : f32 to vector<2x128xf32>
    %205 = arith.addf %204, %203 : vector<2x128xf32>
    %206 = arith.divf %204, %205 : vector<2x128xf32>
    %207 = vector.shape_cast %13 : vector<1x128xi1> to vector<1x128xi1>
    %208 = vector.broadcast %207 : vector<1x128xi1> to vector<2x128xi1>
    %209 = arith.select %208, %201, %206 : vector<2x128xi1>, vector<2x128xf32>
    %210 = vector.extract_strided_slice %209 {offsets = [0, 0], sizes = [2, 32], strides = [1, 1]} : vector<2x128xf32> to vector<2x32xf32>
    %211 = vector.extract_strided_slice %209 {offsets = [0, 32], sizes = [2, 32], strides = [1, 1]} : vector<2x128xf32> to vector<2x32xf32>
    %212 = vector.extract_strided_slice %209 {offsets = [0, 64], sizes = [2, 32], strides = [1, 1]} : vector<2x128xf32> to vector<2x32xf32>
    %213 = vector.extract_strided_slice %209 {offsets = [0, 96], sizes = [2, 32], strides = [1, 1]} : vector<2x128xf32> to vector<2x32xf32>
    %214 = arith.mulf %211, %200 : vector<2x32xf32>
    %215 = arith.mulf %210, %212 : vector<2x32xf32>
    %216 = arith.addf %214, %215 : vector<2x32xf32>
    %217 = math.tanh %216 : vector<2x32xf32>
    %218 = arith.mulf %213, %217 : vector<2x32xf32>
    %c0_105 = arith.constant 0 : index
    %c0_106 = arith.constant 0 : index
    %c0_107 = arith.constant 0 : index
    %219 = vector.load %arg9[%c0_105, %c0_106, %c0_107] : memref<2x2x32xf32, #tpu.memory_space<vmem>>, vector<1x2x32xf32>
    %220 = vector.shape_cast %219 : vector<1x2x32xf32> to vector<2x32xf32>
    %221 = vector.shape_cast %198 : vector<2x32xf32> to vector<1x2x32xf32>
    tpu.vector_store %arg9[%c0_105, %c0_106, %c0_107], %221 {strides = array<i32>} : memref<2x2x32xf32, #tpu.memory_space<vmem>>, vector<1x2x32xf32>,
    %c1_108 = arith.constant 1 : index
    %c0_109 = arith.constant 0 : index
    %c0_110 = arith.constant 0 : index
    %222 = vector.load %arg9[%c1_108, %c0_109, %c0_110] : memref<2x2x32xf32, #tpu.memory_space<vmem>>, vector<1x2x32xf32>
    %223 = vector.shape_cast %222 : vector<1x2x32xf32> to vector<2x32xf32>
    %224 = vector.shape_cast %218 : vector<2x32xf32> to vector<1x2x32xf32>
    tpu.vector_store %arg9[%c1_108, %c0_109, %c0_110], %224 {strides = array<i32>} : memref<2x2x32xf32, #tpu.memory_space<vmem>>, vector<1x2x32xf32>,
    %c0_111 = arith.constant 0 : index
    %c0_112 = arith.constant 0 : index
    %c0_113 = arith.constant 0 : index
    %225 = vector.load %arg10[%c0_111, %c0_112, %c0_113] : memref<2x2x32xf32, #tpu.memory_space<vmem>>, vector<1x2x32xf32>
    %226 = vector.shape_cast %225 : vector<1x2x32xf32> to vector<2x32xf32>
    %227 = vector.shape_cast %196 : vector<2x32xf32> to vector<1x2x32xf32>
    tpu.vector_store %arg10[%c0_111, %c0_112, %c0_113], %227 {strides = array<i32>} : memref<2x2x32xf32, #tpu.memory_space<vmem>>, vector<1x2x32xf32>,
    %c1_114 = arith.constant 1 : index
    %c0_115 = arith.constant 0 : index
    %c0_116 = arith.constant 0 : index
    %228 = vector.load %arg10[%c1_114, %c0_115, %c0_116] : memref<2x2x32xf32, #tpu.memory_space<vmem>>, vector<1x2x32xf32>
    %229 = vector.shape_cast %228 : vector<1x2x32xf32> to vector<2x32xf32>
    %230 = vector.shape_cast %216 : vector<2x32xf32> to vector<1x2x32xf32>
    tpu.vector_store %arg10[%c1_114, %c0_115, %c0_116], %230 {strides = array<i32>} : memref<2x2x32xf32, #tpu.memory_space<vmem>>, vector<1x2x32xf32>,
    %231 = arith.index_cast %c2_i32 : i32 to index
    %c0_117 = arith.constant 0 : index
    %c0_118 = arith.constant 0 : index
    %232 = vector.load %arg7[%231, %c0_117, %c0_118] : memref<8x2x32xf32, #tpu.memory_space<vmem>>, vector<1x2x32xf32>
    %233 = vector.shape_cast %232 : vector<1x2x32xf32> to vector<2x32xf32>
    %234 = vector.shape_cast %198 : vector<2x32xf32> to vector<1x2x32xf32>
    tpu.vector_store %arg7[%231, %c0_117, %c0_118], %234 {strides = array<i32>} : memref<8x2x32xf32, #tpu.memory_space<vmem>>, vector<1x2x32xf32>,
    %235 = arith.index_cast %164 : i32 to index
    %c0_119 = arith.constant 0 : index
    %c0_120 = arith.constant 0 : index
    %236 = vector.load %arg8[%235, %c0_119, %c0_120] : memref<8x2x32xf32, #tpu.memory_space<vmem>>, vector<1x2x32xf32>
    %237 = vector.shape_cast %236 : vector<1x2x32xf32> to vector<2x32xf32>
    %238 = vector.shape_cast %218 : vector<2x32xf32> to vector<1x2x32xf32>
    tpu.vector_store %arg8[%235, %c0_119, %c0_120], %238 {strides = array<i32>} : memref<8x2x32xf32, #tpu.memory_space<vmem>>, vector<1x2x32xf32>,
    %c3_i32 = arith.constant 3 : i32
    %c7_i32_121 = arith.constant 7 : i32
    %239 = arith.subi %c7_i32_121, %c3_i32 : i32
    %240 = arith.index_cast %c3_i32 : i32 to index
    %c0_122 = arith.constant 0 : index
    %c0_123 = arith.constant 0 : index
    %241 = vector.load %arg1[%240, %c0_122, %c0_123] : memref<8x2x128xf32, #tpu.memory_space<vmem>>, vector<1x2x128xf32>
    %242 = vector.shape_cast %241 : vector<1x2x128xf32> to vector<2x128xf32>
    %c0_124 = arith.constant 0 : index
    %c0_125 = arith.constant 0 : index
    %c0_126 = arith.constant 0 : index
    %243 = vector.load %arg9[%c0_124, %c0_125, %c0_126] : memref<2x2x32xf32, #tpu.memory_space<vmem>>, vector<1x2x32xf32>
    %244 = vector.shape_cast %243 : vector<1x2x32xf32> to vector<2x32xf32>
    %cst_127 = arith.constant dense<0.000000e+00> : vector<2x128xf32>
    %245 = tpu.matmul %244, %5, %cst_127 {dimension_numbers = #tpu.dot_dimension_numbers<[1], [0], [0], [1], [0, 0, 1, 1], [], []>} : vector<2x32xf32>, vector<32x128xf32>, vector<2x128xf32> -> vector<2x128xf32>
    %246 = arith.addf %242, %245 : vector<2x128xf32>
    %247 = arith.index_cast %239 : i32 to index
    %c0_128 = arith.constant 0 : index
    %c0_129 = arith.constant 0 : index
    %248 = vector.load %arg2[%247, %c0_128, %c0_129] : memref<8x2x128xf32, #tpu.memory_space<vmem>>, vector<1x2x128xf32>
    %249 = vector.shape_cast %248 : vector<1x2x128xf32> to vector<2x128xf32>
    %c1_130 = arith.constant 1 : index
    %c0_131 = arith.constant 0 : index
    %c0_132 = arith.constant 0 : index
    %250 = vector.load %arg9[%c1_130, %c0_131, %c0_132] : memref<2x2x32xf32, #tpu.memory_space<vmem>>, vector<1x2x32xf32>
    %251 = vector.shape_cast %250 : vector<1x2x32xf32> to vector<2x32xf32>
    %cst_133 = arith.constant dense<0.000000e+00> : vector<2x128xf32>
    %252 = tpu.matmul %251, %7, %cst_133 {dimension_numbers = #tpu.dot_dimension_numbers<[1], [0], [0], [1], [0, 0, 1, 1], [], []>} : vector<2x32xf32>, vector<32x128xf32>, vector<2x128xf32> -> vector<2x128xf32>
    %253 = arith.addf %249, %252 : vector<2x128xf32>
    %c0_134 = arith.constant 0 : index
    %c0_135 = arith.constant 0 : index
    %c0_136 = arith.constant 0 : index
    %254 = vector.load %arg10[%c0_134, %c0_135, %c0_136] : memref<2x2x32xf32, #tpu.memory_space<vmem>>, vector<1x2x32xf32>
    %255 = vector.shape_cast %254 : vector<1x2x32xf32> to vector<2x32xf32>
    %256 = math.tanh %246 : vector<2x128xf32>
    %257 = arith.negf %246 : vector<2x128xf32>
    %258 = math.exp %257 : vector<2x128xf32>
    %cst_137 = arith.constant 1.000000e+00 : f32
    %259 = vector.broadcast %cst_137 : f32 to vector<2x128xf32>
    %260 = arith.addf %259, %258 : vector<2x128xf32>
    %261 = arith.divf %259, %260 : vector<2x128xf32>
    %262 = vector.shape_cast %13 : vector<1x128xi1> to vector<1x128xi1>
    %263 = vector.broadcast %262 : vector<1x128xi1> to vector<2x128xi1>
    %264 = arith.select %263, %256, %261 : vector<2x128xi1>, vector<2x128xf32>
    %265 = vector.extract_strided_slice %264 {offsets = [0, 0], sizes = [2, 32], strides = [1, 1]} : vector<2x128xf32> to vector<2x32xf32>
    %266 = vector.extract_strided_slice %264 {offsets = [0, 32], sizes = [2, 32], strides = [1, 1]} : vector<2x128xf32> to vector<2x32xf32>
    %267 = vector.extract_strided_slice %264 {offsets = [0, 64], sizes = [2, 32], strides = [1, 1]} : vector<2x128xf32> to vector<2x32xf32>
    %268 = vector.extract_strided_slice %264 {offsets = [0, 96], sizes = [2, 32], strides = [1, 1]} : vector<2x128xf32> to vector<2x32xf32>
    %269 = arith.mulf %266, %255 : vector<2x32xf32>
    %270 = arith.mulf %265, %267 : vector<2x32xf32>
    %271 = arith.addf %269, %270 : vector<2x32xf32>
    %272 = math.tanh %271 : vector<2x32xf32>
    %273 = arith.mulf %268, %272 : vector<2x32xf32>
    %c1_138 = arith.constant 1 : index
    %c0_139 = arith.constant 0 : index
    %c0_140 = arith.constant 0 : index
    %274 = vector.load %arg10[%c1_138, %c0_139, %c0_140] : memref<2x2x32xf32, #tpu.memory_space<vmem>>, vector<1x2x32xf32>
    %275 = vector.shape_cast %274 : vector<1x2x32xf32> to vector<2x32xf32>
    %276 = math.tanh %253 : vector<2x128xf32>
    %277 = arith.negf %253 : vector<2x128xf32>
    %278 = math.exp %277 : vector<2x128xf32>
    %cst_141 = arith.constant 1.000000e+00 : f32
    %279 = vector.broadcast %cst_141 : f32 to vector<2x128xf32>
    %280 = arith.addf %279, %278 : vector<2x128xf32>
    %281 = arith.divf %279, %280 : vector<2x128xf32>
    %282 = vector.shape_cast %13 : vector<1x128xi1> to vector<1x128xi1>
    %283 = vector.broadcast %282 : vector<1x128xi1> to vector<2x128xi1>
    %284 = arith.select %283, %276, %281 : vector<2x128xi1>, vector<2x128xf32>
    %285 = vector.extract_strided_slice %284 {offsets = [0, 0], sizes = [2, 32], strides = [1, 1]} : vector<2x128xf32> to vector<2x32xf32>
    %286 = vector.extract_strided_slice %284 {offsets = [0, 32], sizes = [2, 32], strides = [1, 1]} : vector<2x128xf32> to vector<2x32xf32>
    %287 = vector.extract_strided_slice %284 {offsets = [0, 64], sizes = [2, 32], strides = [1, 1]} : vector<2x128xf32> to vector<2x32xf32>
    %288 = vector.extract_strided_slice %284 {offsets = [0, 96], sizes = [2, 32], strides = [1, 1]} : vector<2x128xf32> to vector<2x32xf32>
    %289 = arith.mulf %286, %275 : vector<2x32xf32>
    %290 = arith.mulf %285, %287 : vector<2x32xf32>
    %291 = arith.addf %289, %290 : vector<2x32xf32>
    %292 = math.tanh %291 : vector<2x32xf32>
    %293 = arith.mulf %288, %292 : vector<2x32xf32>
    %c0_142 = arith.constant 0 : index
    %c0_143 = arith.constant 0 : index
    %c0_144 = arith.constant 0 : index
    %294 = vector.load %arg9[%c0_142, %c0_143, %c0_144] : memref<2x2x32xf32, #tpu.memory_space<vmem>>, vector<1x2x32xf32>
    %295 = vector.shape_cast %294 : vector<1x2x32xf32> to vector<2x32xf32>
    %296 = vector.shape_cast %273 : vector<2x32xf32> to vector<1x2x32xf32>
    tpu.vector_store %arg9[%c0_142, %c0_143, %c0_144], %296 {strides = array<i32>} : memref<2x2x32xf32, #tpu.memory_space<vmem>>, vector<1x2x32xf32>,
    %c1_145 = arith.constant 1 : index
    %c0_146 = arith.constant 0 : index
    %c0_147 = arith.constant 0 : index
    %297 = vector.load %arg9[%c1_145, %c0_146, %c0_147] : memref<2x2x32xf32, #tpu.memory_space<vmem>>, vector<1x2x32xf32>
    %298 = vector.shape_cast %297 : vector<1x2x32xf32> to vector<2x32xf32>
    %299 = vector.shape_cast %293 : vector<2x32xf32> to vector<1x2x32xf32>
    tpu.vector_store %arg9[%c1_145, %c0_146, %c0_147], %299 {strides = array<i32>} : memref<2x2x32xf32, #tpu.memory_space<vmem>>, vector<1x2x32xf32>,
    %c0_148 = arith.constant 0 : index
    %c0_149 = arith.constant 0 : index
    %c0_150 = arith.constant 0 : index
    %300 = vector.load %arg10[%c0_148, %c0_149, %c0_150] : memref<2x2x32xf32, #tpu.memory_space<vmem>>, vector<1x2x32xf32>
    %301 = vector.shape_cast %300 : vector<1x2x32xf32> to vector<2x32xf32>
    %302 = vector.shape_cast %271 : vector<2x32xf32> to vector<1x2x32xf32>
    tpu.vector_store %arg10[%c0_148, %c0_149, %c0_150], %302 {strides = array<i32>} : memref<2x2x32xf32, #tpu.memory_space<vmem>>, vector<1x2x32xf32>,
    %c1_151 = arith.constant 1 : index
    %c0_152 = arith.constant 0 : index
    %c0_153 = arith.constant 0 : index
    %303 = vector.load %arg10[%c1_151, %c0_152, %c0_153] : memref<2x2x32xf32, #tpu.memory_space<vmem>>, vector<1x2x32xf32>
    %304 = vector.shape_cast %303 : vector<1x2x32xf32> to vector<2x32xf32>
    %305 = vector.shape_cast %291 : vector<2x32xf32> to vector<1x2x32xf32>
    tpu.vector_store %arg10[%c1_151, %c0_152, %c0_153], %305 {strides = array<i32>} : memref<2x2x32xf32, #tpu.memory_space<vmem>>, vector<1x2x32xf32>,
    %306 = arith.index_cast %c3_i32 : i32 to index
    %c0_154 = arith.constant 0 : index
    %c0_155 = arith.constant 0 : index
    %307 = vector.load %arg7[%306, %c0_154, %c0_155] : memref<8x2x32xf32, #tpu.memory_space<vmem>>, vector<1x2x32xf32>
    %308 = vector.shape_cast %307 : vector<1x2x32xf32> to vector<2x32xf32>
    %309 = vector.shape_cast %273 : vector<2x32xf32> to vector<1x2x32xf32>
    tpu.vector_store %arg7[%306, %c0_154, %c0_155], %309 {strides = array<i32>} : memref<8x2x32xf32, #tpu.memory_space<vmem>>, vector<1x2x32xf32>,
    %310 = arith.index_cast %239 : i32 to index
    %c0_156 = arith.constant 0 : index
    %c0_157 = arith.constant 0 : index
    %311 = vector.load %arg8[%310, %c0_156, %c0_157] : memref<8x2x32xf32, #tpu.memory_space<vmem>>, vector<1x2x32xf32>
    %312 = vector.shape_cast %311 : vector<1x2x32xf32> to vector<2x32xf32>
    %313 = vector.shape_cast %293 : vector<2x32xf32> to vector<1x2x32xf32>
    tpu.vector_store %arg8[%310, %c0_156, %c0_157], %313 {strides = array<i32>} : memref<8x2x32xf32, #tpu.memory_space<vmem>>, vector<1x2x32xf32>,
    %c4_i32 = arith.constant 4 : i32
    %c7_i32_158 = arith.constant 7 : i32
    %314 = arith.subi %c7_i32_158, %c4_i32 : i32
    %315 = arith.index_cast %c4_i32 : i32 to index
    %c0_159 = arith.constant 0 : index
    %c0_160 = arith.constant 0 : index
    %316 = vector.load %arg1[%315, %c0_159, %c0_160] : memref<8x2x128xf32, #tpu.memory_space<vmem>>, vector<1x2x128xf32>
    %317 = vector.shape_cast %316 : vector<1x2x128xf32> to vector<2x128xf32>
    %c0_161 = arith.constant 0 : index
    %c0_162 = arith.constant 0 : index
    %c0_163 = arith.constant 0 : index
    %318 = vector.load %arg9[%c0_161, %c0_162, %c0_163] : memref<2x2x32xf32, #tpu.memory_space<vmem>>, vector<1x2x32xf32>
    %319 = vector.shape_cast %318 : vector<1x2x32xf32> to vector<2x32xf32>
    %cst_164 = arith.constant dense<0.000000e+00> : vector<2x128xf32>
    %320 = tpu.matmul %319, %5, %cst_164 {dimension_numbers = #tpu.dot_dimension_numbers<[1], [0], [0], [1], [0, 0, 1, 1], [], []>} : vector<2x32xf32>, vector<32x128xf32>, vector<2x128xf32> -> vector<2x128xf32>
    %321 = arith.addf %317, %320 : vector<2x128xf32>
    %322 = arith.index_cast %314 : i32 to index
    %c0_165 = arith.constant 0 : index
    %c0_166 = arith.constant 0 : index
    %323 = vector.load %arg2[%322, %c0_165, %c0_166] : memref<8x2x128xf32, #tpu.memory_space<vmem>>, vector<1x2x128xf32>
    %324 = vector.shape_cast %323 : vector<1x2x128xf32> to vector<2x128xf32>
    %c1_167 = arith.constant 1 : index
    %c0_168 = arith.constant 0 : index
    %c0_169 = arith.constant 0 : index
    %325 = vector.load %arg9[%c1_167, %c0_168, %c0_169] : memref<2x2x32xf32, #tpu.memory_space<vmem>>, vector<1x2x32xf32>
    %326 = vector.shape_cast %325 : vector<1x2x32xf32> to vector<2x32xf32>
    %cst_170 = arith.constant dense<0.000000e+00> : vector<2x128xf32>
    %327 = tpu.matmul %326, %7, %cst_170 {dimension_numbers = #tpu.dot_dimension_numbers<[1], [0], [0], [1], [0, 0, 1, 1], [], []>} : vector<2x32xf32>, vector<32x128xf32>, vector<2x128xf32> -> vector<2x128xf32>
    %328 = arith.addf %324, %327 : vector<2x128xf32>
    %c0_171 = arith.constant 0 : index
    %c0_172 = arith.constant 0 : index
    %c0_173 = arith.constant 0 : index
    %329 = vector.load %arg10[%c0_171, %c0_172, %c0_173] : memref<2x2x32xf32, #tpu.memory_space<vmem>>, vector<1x2x32xf32>
    %330 = vector.shape_cast %329 : vector<1x2x32xf32> to vector<2x32xf32>
    %331 = math.tanh %321 : vector<2x128xf32>
    %332 = arith.negf %321 : vector<2x128xf32>
    %333 = math.exp %332 : vector<2x128xf32>
    %cst_174 = arith.constant 1.000000e+00 : f32
    %334 = vector.broadcast %cst_174 : f32 to vector<2x128xf32>
    %335 = arith.addf %334, %333 : vector<2x128xf32>
    %336 = arith.divf %334, %335 : vector<2x128xf32>
    %337 = vector.shape_cast %13 : vector<1x128xi1> to vector<1x128xi1>
    %338 = vector.broadcast %337 : vector<1x128xi1> to vector<2x128xi1>
    %339 = arith.select %338, %331, %336 : vector<2x128xi1>, vector<2x128xf32>
    %340 = vector.extract_strided_slice %339 {offsets = [0, 0], sizes = [2, 32], strides = [1, 1]} : vector<2x128xf32> to vector<2x32xf32>
    %341 = vector.extract_strided_slice %339 {offsets = [0, 32], sizes = [2, 32], strides = [1, 1]} : vector<2x128xf32> to vector<2x32xf32>
    %342 = vector.extract_strided_slice %339 {offsets = [0, 64], sizes = [2, 32], strides = [1, 1]} : vector<2x128xf32> to vector<2x32xf32>
    %343 = vector.extract_strided_slice %339 {offsets = [0, 96], sizes = [2, 32], strides = [1, 1]} : vector<2x128xf32> to vector<2x32xf32>
    %344 = arith.mulf %341, %330 : vector<2x32xf32>
    %345 = arith.mulf %340, %342 : vector<2x32xf32>
    %346 = arith.addf %344, %345 : vector<2x32xf32>
    %347 = math.tanh %346 : vector<2x32xf32>
    %348 = arith.mulf %343, %347 : vector<2x32xf32>
    %c1_175 = arith.constant 1 : index
    %c0_176 = arith.constant 0 : index
    %c0_177 = arith.constant 0 : index
    %349 = vector.load %arg10[%c1_175, %c0_176, %c0_177] : memref<2x2x32xf32, #tpu.memory_space<vmem>>, vector<1x2x32xf32>
    %350 = vector.shape_cast %349 : vector<1x2x32xf32> to vector<2x32xf32>
    %351 = math.tanh %328 : vector<2x128xf32>
    %352 = arith.negf %328 : vector<2x128xf32>
    %353 = math.exp %352 : vector<2x128xf32>
    %cst_178 = arith.constant 1.000000e+00 : f32
    %354 = vector.broadcast %cst_178 : f32 to vector<2x128xf32>
    %355 = arith.addf %354, %353 : vector<2x128xf32>
    %356 = arith.divf %354, %355 : vector<2x128xf32>
    %357 = vector.shape_cast %13 : vector<1x128xi1> to vector<1x128xi1>
    %358 = vector.broadcast %357 : vector<1x128xi1> to vector<2x128xi1>
    %359 = arith.select %358, %351, %356 : vector<2x128xi1>, vector<2x128xf32>
    %360 = vector.extract_strided_slice %359 {offsets = [0, 0], sizes = [2, 32], strides = [1, 1]} : vector<2x128xf32> to vector<2x32xf32>
    %361 = vector.extract_strided_slice %359 {offsets = [0, 32], sizes = [2, 32], strides = [1, 1]} : vector<2x128xf32> to vector<2x32xf32>
    %362 = vector.extract_strided_slice %359 {offsets = [0, 64], sizes = [2, 32], strides = [1, 1]} : vector<2x128xf32> to vector<2x32xf32>
    %363 = vector.extract_strided_slice %359 {offsets = [0, 96], sizes = [2, 32], strides = [1, 1]} : vector<2x128xf32> to vector<2x32xf32>
    %364 = arith.mulf %361, %350 : vector<2x32xf32>
    %365 = arith.mulf %360, %362 : vector<2x32xf32>
    %366 = arith.addf %364, %365 : vector<2x32xf32>
    %367 = math.tanh %366 : vector<2x32xf32>
    %368 = arith.mulf %363, %367 : vector<2x32xf32>
    %c0_179 = arith.constant 0 : index
    %c0_180 = arith.constant 0 : index
    %c0_181 = arith.constant 0 : index
    %369 = vector.load %arg9[%c0_179, %c0_180, %c0_181] : memref<2x2x32xf32, #tpu.memory_space<vmem>>, vector<1x2x32xf32>
    %370 = vector.shape_cast %369 : vector<1x2x32xf32> to vector<2x32xf32>
    %371 = vector.shape_cast %348 : vector<2x32xf32> to vector<1x2x32xf32>
    tpu.vector_store %arg9[%c0_179, %c0_180, %c0_181], %371 {strides = array<i32>} : memref<2x2x32xf32, #tpu.memory_space<vmem>>, vector<1x2x32xf32>,
    %c1_182 = arith.constant 1 : index
    %c0_183 = arith.constant 0 : index
    %c0_184 = arith.constant 0 : index
    %372 = vector.load %arg9[%c1_182, %c0_183, %c0_184] : memref<2x2x32xf32, #tpu.memory_space<vmem>>, vector<1x2x32xf32>
    %373 = vector.shape_cast %372 : vector<1x2x32xf32> to vector<2x32xf32>
    %374 = vector.shape_cast %368 : vector<2x32xf32> to vector<1x2x32xf32>
    tpu.vector_store %arg9[%c1_182, %c0_183, %c0_184], %374 {strides = array<i32>} : memref<2x2x32xf32, #tpu.memory_space<vmem>>, vector<1x2x32xf32>,
    %c0_185 = arith.constant 0 : index
    %c0_186 = arith.constant 0 : index
    %c0_187 = arith.constant 0 : index
    %375 = vector.load %arg10[%c0_185, %c0_186, %c0_187] : memref<2x2x32xf32, #tpu.memory_space<vmem>>, vector<1x2x32xf32>
    %376 = vector.shape_cast %375 : vector<1x2x32xf32> to vector<2x32xf32>
    %377 = vector.shape_cast %346 : vector<2x32xf32> to vector<1x2x32xf32>
    tpu.vector_store %arg10[%c0_185, %c0_186, %c0_187], %377 {strides = array<i32>} : memref<2x2x32xf32, #tpu.memory_space<vmem>>, vector<1x2x32xf32>,
    %c1_188 = arith.constant 1 : index
    %c0_189 = arith.constant 0 : index
    %c0_190 = arith.constant 0 : index
    %378 = vector.load %arg10[%c1_188, %c0_189, %c0_190] : memref<2x2x32xf32, #tpu.memory_space<vmem>>, vector<1x2x32xf32>
    %379 = vector.shape_cast %378 : vector<1x2x32xf32> to vector<2x32xf32>
    %380 = vector.shape_cast %366 : vector<2x32xf32> to vector<1x2x32xf32>
    tpu.vector_store %arg10[%c1_188, %c0_189, %c0_190], %380 {strides = array<i32>} : memref<2x2x32xf32, #tpu.memory_space<vmem>>, vector<1x2x32xf32>,
    %381 = arith.index_cast %c4_i32 : i32 to index
    %c0_191 = arith.constant 0 : index
    %c0_192 = arith.constant 0 : index
    %382 = vector.load %arg7[%381, %c0_191, %c0_192] : memref<8x2x32xf32, #tpu.memory_space<vmem>>, vector<1x2x32xf32>
    %383 = vector.shape_cast %382 : vector<1x2x32xf32> to vector<2x32xf32>
    %384 = vector.shape_cast %348 : vector<2x32xf32> to vector<1x2x32xf32>
    tpu.vector_store %arg7[%381, %c0_191, %c0_192], %384 {strides = array<i32>} : memref<8x2x32xf32, #tpu.memory_space<vmem>>, vector<1x2x32xf32>,
    %385 = arith.index_cast %314 : i32 to index
    %c0_193 = arith.constant 0 : index
    %c0_194 = arith.constant 0 : index
    %386 = vector.load %arg8[%385, %c0_193, %c0_194] : memref<8x2x32xf32, #tpu.memory_space<vmem>>, vector<1x2x32xf32>
    %387 = vector.shape_cast %386 : vector<1x2x32xf32> to vector<2x32xf32>
    %388 = vector.shape_cast %368 : vector<2x32xf32> to vector<1x2x32xf32>
    tpu.vector_store %arg8[%385, %c0_193, %c0_194], %388 {strides = array<i32>} : memref<8x2x32xf32, #tpu.memory_space<vmem>>, vector<1x2x32xf32>,
    %c5_i32 = arith.constant 5 : i32
    %c7_i32_195 = arith.constant 7 : i32
    %389 = arith.subi %c7_i32_195, %c5_i32 : i32
    %390 = arith.index_cast %c5_i32 : i32 to index
    %c0_196 = arith.constant 0 : index
    %c0_197 = arith.constant 0 : index
    %391 = vector.load %arg1[%390, %c0_196, %c0_197] : memref<8x2x128xf32, #tpu.memory_space<vmem>>, vector<1x2x128xf32>
    %392 = vector.shape_cast %391 : vector<1x2x128xf32> to vector<2x128xf32>
    %c0_198 = arith.constant 0 : index
    %c0_199 = arith.constant 0 : index
    %c0_200 = arith.constant 0 : index
    %393 = vector.load %arg9[%c0_198, %c0_199, %c0_200] : memref<2x2x32xf32, #tpu.memory_space<vmem>>, vector<1x2x32xf32>
    %394 = vector.shape_cast %393 : vector<1x2x32xf32> to vector<2x32xf32>
    %cst_201 = arith.constant dense<0.000000e+00> : vector<2x128xf32>
    %395 = tpu.matmul %394, %5, %cst_201 {dimension_numbers = #tpu.dot_dimension_numbers<[1], [0], [0], [1], [0, 0, 1, 1], [], []>} : vector<2x32xf32>, vector<32x128xf32>, vector<2x128xf32> -> vector<2x128xf32>
    %396 = arith.addf %392, %395 : vector<2x128xf32>
    %397 = arith.index_cast %389 : i32 to index
    %c0_202 = arith.constant 0 : index
    %c0_203 = arith.constant 0 : index
    %398 = vector.load %arg2[%397, %c0_202, %c0_203] : memref<8x2x128xf32, #tpu.memory_space<vmem>>, vector<1x2x128xf32>
    %399 = vector.shape_cast %398 : vector<1x2x128xf32> to vector<2x128xf32>
    %c1_204 = arith.constant 1 : index
    %c0_205 = arith.constant 0 : index
    %c0_206 = arith.constant 0 : index
    %400 = vector.load %arg9[%c1_204, %c0_205, %c0_206] : memref<2x2x32xf32, #tpu.memory_space<vmem>>, vector<1x2x32xf32>
    %401 = vector.shape_cast %400 : vector<1x2x32xf32> to vector<2x32xf32>
    %cst_207 = arith.constant dense<0.000000e+00> : vector<2x128xf32>
    %402 = tpu.matmul %401, %7, %cst_207 {dimension_numbers = #tpu.dot_dimension_numbers<[1], [0], [0], [1], [0, 0, 1, 1], [], []>} : vector<2x32xf32>, vector<32x128xf32>, vector<2x128xf32> -> vector<2x128xf32>
    %403 = arith.addf %399, %402 : vector<2x128xf32>
    %c0_208 = arith.constant 0 : index
    %c0_209 = arith.constant 0 : index
    %c0_210 = arith.constant 0 : index
    %404 = vector.load %arg10[%c0_208, %c0_209, %c0_210] : memref<2x2x32xf32, #tpu.memory_space<vmem>>, vector<1x2x32xf32>
    %405 = vector.shape_cast %404 : vector<1x2x32xf32> to vector<2x32xf32>
    %406 = math.tanh %396 : vector<2x128xf32>
    %407 = arith.negf %396 : vector<2x128xf32>
    %408 = math.exp %407 : vector<2x128xf32>
    %cst_211 = arith.constant 1.000000e+00 : f32
    %409 = vector.broadcast %cst_211 : f32 to vector<2x128xf32>
    %410 = arith.addf %409, %408 : vector<2x128xf32>
    %411 = arith.divf %409, %410 : vector<2x128xf32>
    %412 = vector.shape_cast %13 : vector<1x128xi1> to vector<1x128xi1>
    %413 = vector.broadcast %412 : vector<1x128xi1> to vector<2x128xi1>
    %414 = arith.select %413, %406, %411 : vector<2x128xi1>, vector<2x128xf32>
    %415 = vector.extract_strided_slice %414 {offsets = [0, 0], sizes = [2, 32], strides = [1, 1]} : vector<2x128xf32> to vector<2x32xf32>
    %416 = vector.extract_strided_slice %414 {offsets = [0, 32], sizes = [2, 32], strides = [1, 1]} : vector<2x128xf32> to vector<2x32xf32>
    %417 = vector.extract_strided_slice %414 {offsets = [0, 64], sizes = [2, 32], strides = [1, 1]} : vector<2x128xf32> to vector<2x32xf32>
    %418 = vector.extract_strided_slice %414 {offsets = [0, 96], sizes = [2, 32], strides = [1, 1]} : vector<2x128xf32> to vector<2x32xf32>
    %419 = arith.mulf %416, %405 : vector<2x32xf32>
    %420 = arith.mulf %415, %417 : vector<2x32xf32>
    %421 = arith.addf %419, %420 : vector<2x32xf32>
    %422 = math.tanh %421 : vector<2x32xf32>
    %423 = arith.mulf %418, %422 : vector<2x32xf32>
    %c1_212 = arith.constant 1 : index
    %c0_213 = arith.constant 0 : index
    %c0_214 = arith.constant 0 : index
    %424 = vector.load %arg10[%c1_212, %c0_213, %c0_214] : memref<2x2x32xf32, #tpu.memory_space<vmem>>, vector<1x2x32xf32>
    %425 = vector.shape_cast %424 : vector<1x2x32xf32> to vector<2x32xf32>
    %426 = math.tanh %403 : vector<2x128xf32>
    %427 = arith.negf %403 : vector<2x128xf32>
    %428 = math.exp %427 : vector<2x128xf32>
    %cst_215 = arith.constant 1.000000e+00 : f32
    %429 = vector.broadcast %cst_215 : f32 to vector<2x128xf32>
    %430 = arith.addf %429, %428 : vector<2x128xf32>
    %431 = arith.divf %429, %430 : vector<2x128xf32>
    %432 = vector.shape_cast %13 : vector<1x128xi1> to vector<1x128xi1>
    %433 = vector.broadcast %432 : vector<1x128xi1> to vector<2x128xi1>
    %434 = arith.select %433, %426, %431 : vector<2x128xi1>, vector<2x128xf32>
    %435 = vector.extract_strided_slice %434 {offsets = [0, 0], sizes = [2, 32], strides = [1, 1]} : vector<2x128xf32> to vector<2x32xf32>
    %436 = vector.extract_strided_slice %434 {offsets = [0, 32], sizes = [2, 32], strides = [1, 1]} : vector<2x128xf32> to vector<2x32xf32>
    %437 = vector.extract_strided_slice %434 {offsets = [0, 64], sizes = [2, 32], strides = [1, 1]} : vector<2x128xf32> to vector<2x32xf32>
    %438 = vector.extract_strided_slice %434 {offsets = [0, 96], sizes = [2, 32], strides = [1, 1]} : vector<2x128xf32> to vector<2x32xf32>
    %439 = arith.mulf %436, %425 : vector<2x32xf32>
    %440 = arith.mulf %435, %437 : vector<2x32xf32>
    %441 = arith.addf %439, %440 : vector<2x32xf32>
    %442 = math.tanh %441 : vector<2x32xf32>
    %443 = arith.mulf %438, %442 : vector<2x32xf32>
    %c0_216 = arith.constant 0 : index
    %c0_217 = arith.constant 0 : index
    %c0_218 = arith.constant 0 : index
    %444 = vector.load %arg9[%c0_216, %c0_217, %c0_218] : memref<2x2x32xf32, #tpu.memory_space<vmem>>, vector<1x2x32xf32>
    %445 = vector.shape_cast %444 : vector<1x2x32xf32> to vector<2x32xf32>
    %446 = vector.shape_cast %423 : vector<2x32xf32> to vector<1x2x32xf32>
    tpu.vector_store %arg9[%c0_216, %c0_217, %c0_218], %446 {strides = array<i32>} : memref<2x2x32xf32, #tpu.memory_space<vmem>>, vector<1x2x32xf32>,
    %c1_219 = arith.constant 1 : index
    %c0_220 = arith.constant 0 : index
    %c0_221 = arith.constant 0 : index
    %447 = vector.load %arg9[%c1_219, %c0_220, %c0_221] : memref<2x2x32xf32, #tpu.memory_space<vmem>>, vector<1x2x32xf32>
    %448 = vector.shape_cast %447 : vector<1x2x32xf32> to vector<2x32xf32>
    %449 = vector.shape_cast %443 : vector<2x32xf32> to vector<1x2x32xf32>
    tpu.vector_store %arg9[%c1_219, %c0_220, %c0_221], %449 {strides = array<i32>} : memref<2x2x32xf32, #tpu.memory_space<vmem>>, vector<1x2x32xf32>,
    %c0_222 = arith.constant 0 : index
    %c0_223 = arith.constant 0 : index
    %c0_224 = arith.constant 0 : index
    %450 = vector.load %arg10[%c0_222, %c0_223, %c0_224] : memref<2x2x32xf32, #tpu.memory_space<vmem>>, vector<1x2x32xf32>
    %451 = vector.shape_cast %450 : vector<1x2x32xf32> to vector<2x32xf32>
    %452 = vector.shape_cast %421 : vector<2x32xf32> to vector<1x2x32xf32>
    tpu.vector_store %arg10[%c0_222, %c0_223, %c0_224], %452 {strides = array<i32>} : memref<2x2x32xf32, #tpu.memory_space<vmem>>, vector<1x2x32xf32>,
    %c1_225 = arith.constant 1 : index
    %c0_226 = arith.constant 0 : index
    %c0_227 = arith.constant 0 : index
    %453 = vector.load %arg10[%c1_225, %c0_226, %c0_227] : memref<2x2x32xf32, #tpu.memory_space<vmem>>, vector<1x2x32xf32>
    %454 = vector.shape_cast %453 : vector<1x2x32xf32> to vector<2x32xf32>
    %455 = vector.shape_cast %441 : vector<2x32xf32> to vector<1x2x32xf32>
    tpu.vector_store %arg10[%c1_225, %c0_226, %c0_227], %455 {strides = array<i32>} : memref<2x2x32xf32, #tpu.memory_space<vmem>>, vector<1x2x32xf32>,
    %456 = arith.index_cast %c5_i32 : i32 to index
    %c0_228 = arith.constant 0 : index
    %c0_229 = arith.constant 0 : index
    %457 = vector.load %arg7[%456, %c0_228, %c0_229] : memref<8x2x32xf32, #tpu.memory_space<vmem>>, vector<1x2x32xf32>
    %458 = vector.shape_cast %457 : vector<1x2x32xf32> to vector<2x32xf32>
    %459 = vector.shape_cast %423 : vector<2x32xf32> to vector<1x2x32xf32>
    tpu.vector_store %arg7[%456, %c0_228, %c0_229], %459 {strides = array<i32>} : memref<8x2x32xf32, #tpu.memory_space<vmem>>, vector<1x2x32xf32>,
    %460 = arith.index_cast %389 : i32 to index
    %c0_230 = arith.constant 0 : index
    %c0_231 = arith.constant 0 : index
    %461 = vector.load %arg8[%460, %c0_230, %c0_231] : memref<8x2x32xf32, #tpu.memory_space<vmem>>, vector<1x2x32xf32>
    %462 = vector.shape_cast %461 : vector<1x2x32xf32> to vector<2x32xf32>
    %463 = vector.shape_cast %443 : vector<2x32xf32> to vector<1x2x32xf32>
    tpu.vector_store %arg8[%460, %c0_230, %c0_231], %463 {strides = array<i32>} : memref<8x2x32xf32, #tpu.memory_space<vmem>>, vector<1x2x32xf32>,
    %c6_i32 = arith.constant 6 : i32
    %c7_i32_232 = arith.constant 7 : i32
    %464 = arith.subi %c7_i32_232, %c6_i32 : i32
    %465 = arith.index_cast %c6_i32 : i32 to index
    %c0_233 = arith.constant 0 : index
    %c0_234 = arith.constant 0 : index
    %466 = vector.load %arg1[%465, %c0_233, %c0_234] : memref<8x2x128xf32, #tpu.memory_space<vmem>>, vector<1x2x128xf32>
    %467 = vector.shape_cast %466 : vector<1x2x128xf32> to vector<2x128xf32>
    %c0_235 = arith.constant 0 : index
    %c0_236 = arith.constant 0 : index
    %c0_237 = arith.constant 0 : index
    %468 = vector.load %arg9[%c0_235, %c0_236, %c0_237] : memref<2x2x32xf32, #tpu.memory_space<vmem>>, vector<1x2x32xf32>
    %469 = vector.shape_cast %468 : vector<1x2x32xf32> to vector<2x32xf32>
    %cst_238 = arith.constant dense<0.000000e+00> : vector<2x128xf32>
    %470 = tpu.matmul %469, %5, %cst_238 {dimension_numbers = #tpu.dot_dimension_numbers<[1], [0], [0], [1], [0, 0, 1, 1], [], []>} : vector<2x32xf32>, vector<32x128xf32>, vector<2x128xf32> -> vector<2x128xf32>
    %471 = arith.addf %467, %470 : vector<2x128xf32>
    %472 = arith.index_cast %464 : i32 to index
    %c0_239 = arith.constant 0 : index
    %c0_240 = arith.constant 0 : index
    %473 = vector.load %arg2[%472, %c0_239, %c0_240] : memref<8x2x128xf32, #tpu.memory_space<vmem>>, vector<1x2x128xf32>
    %474 = vector.shape_cast %473 : vector<1x2x128xf32> to vector<2x128xf32>
    %c1_241 = arith.constant 1 : index
    %c0_242 = arith.constant 0 : index
    %c0_243 = arith.constant 0 : index
    %475 = vector.load %arg9[%c1_241, %c0_242, %c0_243] : memref<2x2x32xf32, #tpu.memory_space<vmem>>, vector<1x2x32xf32>
    %476 = vector.shape_cast %475 : vector<1x2x32xf32> to vector<2x32xf32>
    %cst_244 = arith.constant dense<0.000000e+00> : vector<2x128xf32>
    %477 = tpu.matmul %476, %7, %cst_244 {dimension_numbers = #tpu.dot_dimension_numbers<[1], [0], [0], [1], [0, 0, 1, 1], [], []>} : vector<2x32xf32>, vector<32x128xf32>, vector<2x128xf32> -> vector<2x128xf32>
    %478 = arith.addf %474, %477 : vector<2x128xf32>
    %c0_245 = arith.constant 0 : index
    %c0_246 = arith.constant 0 : index
    %c0_247 = arith.constant 0 : index
    %479 = vector.load %arg10[%c0_245, %c0_246, %c0_247] : memref<2x2x32xf32, #tpu.memory_space<vmem>>, vector<1x2x32xf32>
    %480 = vector.shape_cast %479 : vector<1x2x32xf32> to vector<2x32xf32>
    %481 = math.tanh %471 : vector<2x128xf32>
    %482 = arith.negf %471 : vector<2x128xf32>
    %483 = math.exp %482 : vector<2x128xf32>
    %cst_248 = arith.constant 1.000000e+00 : f32
    %484 = vector.broadcast %cst_248 : f32 to vector<2x128xf32>
    %485 = arith.addf %484, %483 : vector<2x128xf32>
    %486 = arith.divf %484, %485 : vector<2x128xf32>
    %487 = vector.shape_cast %13 : vector<1x128xi1> to vector<1x128xi1>
    %488 = vector.broadcast %487 : vector<1x128xi1> to vector<2x128xi1>
    %489 = arith.select %488, %481, %486 : vector<2x128xi1>, vector<2x128xf32>
    %490 = vector.extract_strided_slice %489 {offsets = [0, 0], sizes = [2, 32], strides = [1, 1]} : vector<2x128xf32> to vector<2x32xf32>
    %491 = vector.extract_strided_slice %489 {offsets = [0, 32], sizes = [2, 32], strides = [1, 1]} : vector<2x128xf32> to vector<2x32xf32>
    %492 = vector.extract_strided_slice %489 {offsets = [0, 64], sizes = [2, 32], strides = [1, 1]} : vector<2x128xf32> to vector<2x32xf32>
    %493 = vector.extract_strided_slice %489 {offsets = [0, 96], sizes = [2, 32], strides = [1, 1]} : vector<2x128xf32> to vector<2x32xf32>
    %494 = arith.mulf %491, %480 : vector<2x32xf32>
    %495 = arith.mulf %490, %492 : vector<2x32xf32>
    %496 = arith.addf %494, %495 : vector<2x32xf32>
    %497 = math.tanh %496 : vector<2x32xf32>
    %498 = arith.mulf %493, %497 : vector<2x32xf32>
    %c1_249 = arith.constant 1 : index
    %c0_250 = arith.constant 0 : index
    %c0_251 = arith.constant 0 : index
    %499 = vector.load %arg10[%c1_249, %c0_250, %c0_251] : memref<2x2x32xf32, #tpu.memory_space<vmem>>, vector<1x2x32xf32>
    %500 = vector.shape_cast %499 : vector<1x2x32xf32> to vector<2x32xf32>
    %501 = math.tanh %478 : vector<2x128xf32>
    %502 = arith.negf %478 : vector<2x128xf32>
    %503 = math.exp %502 : vector<2x128xf32>
    %cst_252 = arith.constant 1.000000e+00 : f32
    %504 = vector.broadcast %cst_252 : f32 to vector<2x128xf32>
    %505 = arith.addf %504, %503 : vector<2x128xf32>
    %506 = arith.divf %504, %505 : vector<2x128xf32>
    %507 = vector.shape_cast %13 : vector<1x128xi1> to vector<1x128xi1>
    %508 = vector.broadcast %507 : vector<1x128xi1> to vector<2x128xi1>
    %509 = arith.select %508, %501, %506 : vector<2x128xi1>, vector<2x128xf32>
    %510 = vector.extract_strided_slice %509 {offsets = [0, 0], sizes = [2, 32], strides = [1, 1]} : vector<2x128xf32> to vector<2x32xf32>
    %511 = vector.extract_strided_slice %509 {offsets = [0, 32], sizes = [2, 32], strides = [1, 1]} : vector<2x128xf32> to vector<2x32xf32>
    %512 = vector.extract_strided_slice %509 {offsets = [0, 64], sizes = [2, 32], strides = [1, 1]} : vector<2x128xf32> to vector<2x32xf32>
    %513 = vector.extract_strided_slice %509 {offsets = [0, 96], sizes = [2, 32], strides = [1, 1]} : vector<2x128xf32> to vector<2x32xf32>
    %514 = arith.mulf %511, %500 : vector<2x32xf32>
    %515 = arith.mulf %510, %512 : vector<2x32xf32>
    %516 = arith.addf %514, %515 : vector<2x32xf32>
    %517 = math.tanh %516 : vector<2x32xf32>
    %518 = arith.mulf %513, %517 : vector<2x32xf32>
    %c0_253 = arith.constant 0 : index
    %c0_254 = arith.constant 0 : index
    %c0_255 = arith.constant 0 : index
    %519 = vector.load %arg9[%c0_253, %c0_254, %c0_255] : memref<2x2x32xf32, #tpu.memory_space<vmem>>, vector<1x2x32xf32>
    %520 = vector.shape_cast %519 : vector<1x2x32xf32> to vector<2x32xf32>
    %521 = vector.shape_cast %498 : vector<2x32xf32> to vector<1x2x32xf32>
    tpu.vector_store %arg9[%c0_253, %c0_254, %c0_255], %521 {strides = array<i32>} : memref<2x2x32xf32, #tpu.memory_space<vmem>>, vector<1x2x32xf32>,
    %c1_256 = arith.constant 1 : index
    %c0_257 = arith.constant 0 : index
    %c0_258 = arith.constant 0 : index
    %522 = vector.load %arg9[%c1_256, %c0_257, %c0_258] : memref<2x2x32xf32, #tpu.memory_space<vmem>>, vector<1x2x32xf32>
    %523 = vector.shape_cast %522 : vector<1x2x32xf32> to vector<2x32xf32>
    %524 = vector.shape_cast %518 : vector<2x32xf32> to vector<1x2x32xf32>
    tpu.vector_store %arg9[%c1_256, %c0_257, %c0_258], %524 {strides = array<i32>} : memref<2x2x32xf32, #tpu.memory_space<vmem>>, vector<1x2x32xf32>,
    %c0_259 = arith.constant 0 : index
    %c0_260 = arith.constant 0 : index
    %c0_261 = arith.constant 0 : index
    %525 = vector.load %arg10[%c0_259, %c0_260, %c0_261] : memref<2x2x32xf32, #tpu.memory_space<vmem>>, vector<1x2x32xf32>
    %526 = vector.shape_cast %525 : vector<1x2x32xf32> to vector<2x32xf32>
    %527 = vector.shape_cast %496 : vector<2x32xf32> to vector<1x2x32xf32>
    tpu.vector_store %arg10[%c0_259, %c0_260, %c0_261], %527 {strides = array<i32>} : memref<2x2x32xf32, #tpu.memory_space<vmem>>, vector<1x2x32xf32>,
    %c1_262 = arith.constant 1 : index
    %c0_263 = arith.constant 0 : index
    %c0_264 = arith.constant 0 : index
    %528 = vector.load %arg10[%c1_262, %c0_263, %c0_264] : memref<2x2x32xf32, #tpu.memory_space<vmem>>, vector<1x2x32xf32>
    %529 = vector.shape_cast %528 : vector<1x2x32xf32> to vector<2x32xf32>
    %530 = vector.shape_cast %516 : vector<2x32xf32> to vector<1x2x32xf32>
    tpu.vector_store %arg10[%c1_262, %c0_263, %c0_264], %530 {strides = array<i32>} : memref<2x2x32xf32, #tpu.memory_space<vmem>>, vector<1x2x32xf32>,
    %531 = arith.index_cast %c6_i32 : i32 to index
    %c0_265 = arith.constant 0 : index
    %c0_266 = arith.constant 0 : index
    %532 = vector.load %arg7[%531, %c0_265, %c0_266] : memref<8x2x32xf32, #tpu.memory_space<vmem>>, vector<1x2x32xf32>
    %533 = vector.shape_cast %532 : vector<1x2x32xf32> to vector<2x32xf32>
    %534 = vector.shape_cast %498 : vector<2x32xf32> to vector<1x2x32xf32>
    tpu.vector_store %arg7[%531, %c0_265, %c0_266], %534 {strides = array<i32>} : memref<8x2x32xf32, #tpu.memory_space<vmem>>, vector<1x2x32xf32>,
    %535 = arith.index_cast %464 : i32 to index
    %c0_267 = arith.constant 0 : index
    %c0_268 = arith.constant 0 : index
    %536 = vector.load %arg8[%535, %c0_267, %c0_268] : memref<8x2x32xf32, #tpu.memory_space<vmem>>, vector<1x2x32xf32>
    %537 = vector.shape_cast %536 : vector<1x2x32xf32> to vector<2x32xf32>
    %538 = vector.shape_cast %518 : vector<2x32xf32> to vector<1x2x32xf32>
    tpu.vector_store %arg8[%535, %c0_267, %c0_268], %538 {strides = array<i32>} : memref<8x2x32xf32, #tpu.memory_space<vmem>>, vector<1x2x32xf32>,
    %c7_i32_269 = arith.constant 7 : i32
    %c7_i32_270 = arith.constant 7 : i32
    %539 = arith.subi %c7_i32_270, %c7_i32_269 : i32
    %540 = arith.index_cast %c7_i32_269 : i32 to index
    %c0_271 = arith.constant 0 : index
    %c0_272 = arith.constant 0 : index
    %541 = vector.load %arg1[%540, %c0_271, %c0_272] : memref<8x2x128xf32, #tpu.memory_space<vmem>>, vector<1x2x128xf32>
    %542 = vector.shape_cast %541 : vector<1x2x128xf32> to vector<2x128xf32>
    %c0_273 = arith.constant 0 : index
    %c0_274 = arith.constant 0 : index
    %c0_275 = arith.constant 0 : index
    %543 = vector.load %arg9[%c0_273, %c0_274, %c0_275] : memref<2x2x32xf32, #tpu.memory_space<vmem>>, vector<1x2x32xf32>
    %544 = vector.shape_cast %543 : vector<1x2x32xf32> to vector<2x32xf32>
    %cst_276 = arith.constant dense<0.000000e+00> : vector<2x128xf32>
    %545 = tpu.matmul %544, %5, %cst_276 {dimension_numbers = #tpu.dot_dimension_numbers<[1], [0], [0], [1], [0, 0, 1, 1], [], []>} : vector<2x32xf32>, vector<32x128xf32>, vector<2x128xf32> -> vector<2x128xf32>
    %546 = arith.addf %542, %545 : vector<2x128xf32>
    %547 = arith.index_cast %539 : i32 to index
    %c0_277 = arith.constant 0 : index
    %c0_278 = arith.constant 0 : index
    %548 = vector.load %arg2[%547, %c0_277, %c0_278] : memref<8x2x128xf32, #tpu.memory_space<vmem>>, vector<1x2x128xf32>
    %549 = vector.shape_cast %548 : vector<1x2x128xf32> to vector<2x128xf32>
    %c1_279 = arith.constant 1 : index
    %c0_280 = arith.constant 0 : index
    %c0_281 = arith.constant 0 : index
    %550 = vector.load %arg9[%c1_279, %c0_280, %c0_281] : memref<2x2x32xf32, #tpu.memory_space<vmem>>, vector<1x2x32xf32>
    %551 = vector.shape_cast %550 : vector<1x2x32xf32> to vector<2x32xf32>
    %cst_282 = arith.constant dense<0.000000e+00> : vector<2x128xf32>
    %552 = tpu.matmul %551, %7, %cst_282 {dimension_numbers = #tpu.dot_dimension_numbers<[1], [0], [0], [1], [0, 0, 1, 1], [], []>} : vector<2x32xf32>, vector<32x128xf32>, vector<2x128xf32> -> vector<2x128xf32>
    %553 = arith.addf %549, %552 : vector<2x128xf32>
    %c0_283 = arith.constant 0 : index
    %c0_284 = arith.constant 0 : index
    %c0_285 = arith.constant 0 : index
    %554 = vector.load %arg10[%c0_283, %c0_284, %c0_285] : memref<2x2x32xf32, #tpu.memory_space<vmem>>, vector<1x2x32xf32>
    %555 = vector.shape_cast %554 : vector<1x2x32xf32> to vector<2x32xf32>
    %556 = math.tanh %546 : vector<2x128xf32>
    %557 = arith.negf %546 : vector<2x128xf32>
    %558 = math.exp %557 : vector<2x128xf32>
    %cst_286 = arith.constant 1.000000e+00 : f32
    %559 = vector.broadcast %cst_286 : f32 to vector<2x128xf32>
    %560 = arith.addf %559, %558 : vector<2x128xf32>
    %561 = arith.divf %559, %560 : vector<2x128xf32>
    %562 = vector.shape_cast %13 : vector<1x128xi1> to vector<1x128xi1>
    %563 = vector.broadcast %562 : vector<1x128xi1> to vector<2x128xi1>
    %564 = arith.select %563, %556, %561 : vector<2x128xi1>, vector<2x128xf32>
    %565 = vector.extract_strided_slice %564 {offsets = [0, 0], sizes = [2, 32], strides = [1, 1]} : vector<2x128xf32> to vector<2x32xf32>
    %566 = vector.extract_strided_slice %564 {offsets = [0, 32], sizes = [2, 32], strides = [1, 1]} : vector<2x128xf32> to vector<2x32xf32>
    %567 = vector.extract_strided_slice %564 {offsets = [0, 64], sizes = [2, 32], strides = [1, 1]} : vector<2x128xf32> to vector<2x32xf32>
    %568 = vector.extract_strided_slice %564 {offsets = [0, 96], sizes = [2, 32], strides = [1, 1]} : vector<2x128xf32> to vector<2x32xf32>
    %569 = arith.mulf %566, %555 : vector<2x32xf32>
    %570 = arith.mulf %565, %567 : vector<2x32xf32>
    %571 = arith.addf %569, %570 : vector<2x32xf32>
    %572 = math.tanh %571 : vector<2x32xf32>
    %573 = arith.mulf %568, %572 : vector<2x32xf32>
    %c1_287 = arith.constant 1 : index
    %c0_288 = arith.constant 0 : index
    %c0_289 = arith.constant 0 : index
    %574 = vector.load %arg10[%c1_287, %c0_288, %c0_289] : memref<2x2x32xf32, #tpu.memory_space<vmem>>, vector<1x2x32xf32>
    %575 = vector.shape_cast %574 : vector<1x2x32xf32> to vector<2x32xf32>
    %576 = math.tanh %553 : vector<2x128xf32>
    %577 = arith.negf %553 : vector<2x128xf32>
    %578 = math.exp %577 : vector<2x128xf32>
    %cst_290 = arith.constant 1.000000e+00 : f32
    %579 = vector.broadcast %cst_290 : f32 to vector<2x128xf32>
    %580 = arith.addf %579, %578 : vector<2x128xf32>
    %581 = arith.divf %579, %580 : vector<2x128xf32>
    %582 = vector.shape_cast %13 : vector<1x128xi1> to vector<1x128xi1>
    %583 = vector.broadcast %582 : vector<1x128xi1> to vector<2x128xi1>
    %584 = arith.select %583, %576, %581 : vector<2x128xi1>, vector<2x128xf32>
    %585 = vector.extract_strided_slice %584 {offsets = [0, 0], sizes = [2, 32], strides = [1, 1]} : vector<2x128xf32> to vector<2x32xf32>
    %586 = vector.extract_strided_slice %584 {offsets = [0, 32], sizes = [2, 32], strides = [1, 1]} : vector<2x128xf32> to vector<2x32xf32>
    %587 = vector.extract_strided_slice %584 {offsets = [0, 64], sizes = [2, 32], strides = [1, 1]} : vector<2x128xf32> to vector<2x32xf32>
    %588 = vector.extract_strided_slice %584 {offsets = [0, 96], sizes = [2, 32], strides = [1, 1]} : vector<2x128xf32> to vector<2x32xf32>
    %589 = arith.mulf %586, %575 : vector<2x32xf32>
    %590 = arith.mulf %585, %587 : vector<2x32xf32>
    %591 = arith.addf %589, %590 : vector<2x32xf32>
    %592 = math.tanh %591 : vector<2x32xf32>
    %593 = arith.mulf %588, %592 : vector<2x32xf32>
    %c0_291 = arith.constant 0 : index
    %c0_292 = arith.constant 0 : index
    %c0_293 = arith.constant 0 : index
    %594 = vector.load %arg9[%c0_291, %c0_292, %c0_293] : memref<2x2x32xf32, #tpu.memory_space<vmem>>, vector<1x2x32xf32>
    %595 = vector.shape_cast %594 : vector<1x2x32xf32> to vector<2x32xf32>
    %596 = vector.shape_cast %573 : vector<2x32xf32> to vector<1x2x32xf32>
    tpu.vector_store %arg9[%c0_291, %c0_292, %c0_293], %596 {strides = array<i32>} : memref<2x2x32xf32, #tpu.memory_space<vmem>>, vector<1x2x32xf32>,
    %c1_294 = arith.constant 1 : index
    %c0_295 = arith.constant 0 : index
    %c0_296 = arith.constant 0 : index
    %597 = vector.load %arg9[%c1_294, %c0_295, %c0_296] : memref<2x2x32xf32, #tpu.memory_space<vmem>>, vector<1x2x32xf32>
    %598 = vector.shape_cast %597 : vector<1x2x32xf32> to vector<2x32xf32>
    %599 = vector.shape_cast %593 : vector<2x32xf32> to vector<1x2x32xf32>
    tpu.vector_store %arg9[%c1_294, %c0_295, %c0_296], %599 {strides = array<i32>} : memref<2x2x32xf32, #tpu.memory_space<vmem>>, vector<1x2x32xf32>,
    %c0_297 = arith.constant 0 : index
    %c0_298 = arith.constant 0 : index
    %c0_299 = arith.constant 0 : index
    %600 = vector.load %arg10[%c0_297, %c0_298, %c0_299] : memref<2x2x32xf32, #tpu.memory_space<vmem>>, vector<1x2x32xf32>
    %601 = vector.shape_cast %600 : vector<1x2x32xf32> to vector<2x32xf32>
    %602 = vector.shape_cast %571 : vector<2x32xf32> to vector<1x2x32xf32>
    tpu.vector_store %arg10[%c0_297, %c0_298, %c0_299], %602 {strides = array<i32>} : memref<2x2x32xf32, #tpu.memory_space<vmem>>, vector<1x2x32xf32>,
    %c1_300 = arith.constant 1 : index
    %c0_301 = arith.constant 0 : index
    %c0_302 = arith.constant 0 : index
    %603 = vector.load %arg10[%c1_300, %c0_301, %c0_302] : memref<2x2x32xf32, #tpu.memory_space<vmem>>, vector<1x2x32xf32>
    %604 = vector.shape_cast %603 : vector<1x2x32xf32> to vector<2x32xf32>
    %605 = vector.shape_cast %591 : vector<2x32xf32> to vector<1x2x32xf32>
    tpu.vector_store %arg10[%c1_300, %c0_301, %c0_302], %605 {strides = array<i32>} : memref<2x2x32xf32, #tpu.memory_space<vmem>>, vector<1x2x32xf32>,
    %606 = arith.index_cast %c7_i32_269 : i32 to index
    %c0_303 = arith.constant 0 : index
    %c0_304 = arith.constant 0 : index
    %607 = vector.load %arg7[%606, %c0_303, %c0_304] : memref<8x2x32xf32, #tpu.memory_space<vmem>>, vector<1x2x32xf32>
    %608 = vector.shape_cast %607 : vector<1x2x32xf32> to vector<2x32xf32>
    %609 = vector.shape_cast %573 : vector<2x32xf32> to vector<1x2x32xf32>
    tpu.vector_store %arg7[%606, %c0_303, %c0_304], %609 {strides = array<i32>} : memref<8x2x32xf32, #tpu.memory_space<vmem>>, vector<1x2x32xf32>,
    %610 = arith.index_cast %539 : i32 to index
    %c0_305 = arith.constant 0 : index
    %c0_306 = arith.constant 0 : index
    %611 = vector.load %arg8[%610, %c0_305, %c0_306] : memref<8x2x32xf32, #tpu.memory_space<vmem>>, vector<1x2x32xf32>
    %612 = vector.shape_cast %611 : vector<1x2x32xf32> to vector<2x32xf32>
    %613 = vector.shape_cast %593 : vector<2x32xf32> to vector<1x2x32xf32>
    tpu.vector_store %arg8[%610, %c0_305, %c0_306], %613 {strides = array<i32>} : memref<8x2x32xf32, #tpu.memory_space<vmem>>, vector<1x2x32xf32>,
    %c8_i32 = arith.constant 8 : i32
    %c0_307 = arith.constant 0 : index
    %c0_308 = arith.constant 0 : index
    %c0_309 = arith.constant 0 : index
    %614 = vector.load %arg7[%c0_307, %c0_308, %c0_309] : memref<8x2x32xf32, #tpu.memory_space<vmem>>, vector<8x2x32xf32>
    %c0_310 = arith.constant 0 : index
    %c0_311 = arith.constant 0 : index
    %c0_312 = arith.constant 0 : index
    %615 = vector.load %arg8[%c0_310, %c0_311, %c0_312] : memref<8x2x32xf32, #tpu.memory_space<vmem>>, vector<8x2x32xf32>
    %616 = tpu.concatenate %614, %615 in 2 : vector<8x2x32xf32>, vector<8x2x32xf32> -> vector<8x2x64xf32>
    %c0_313 = arith.constant 0 : index
    %c0_314 = arith.constant 0 : index
    %c0_315 = arith.constant 0 : index
    %617 = vector.load %arg4[%c0_313, %c0_314, %c0_315] : memref<8x2x64xf32, #tpu.memory_space<vmem>>, vector<8x2x64xf32>
    tpu.vector_store %arg4[%c0_313, %c0_314, %c0_315], %616 {strides = array<i32>} : memref<8x2x64xf32, #tpu.memory_space<vmem>>, vector<8x2x64xf32>,
    %c0_316 = arith.constant 0 : index
    %c0_317 = arith.constant 0 : index
    %c0_318 = arith.constant 0 : index
    %618 = vector.load %arg9[%c0_316, %c0_317, %c0_318] : memref<2x2x32xf32, #tpu.memory_space<vmem>>, vector<2x2x32xf32>
    %c0_319 = arith.constant 0 : index
    %c0_320 = arith.constant 0 : index
    %c0_321 = arith.constant 0 : index
    %619 = vector.load %arg5[%c0_319, %c0_320, %c0_321] : memref<2x2x32xf32, #tpu.memory_space<vmem>>, vector<2x2x32xf32>
    tpu.vector_store %arg5[%c0_319, %c0_320, %c0_321], %618 {strides = array<i32>} : memref<2x2x32xf32, #tpu.memory_space<vmem>>, vector<2x2x32xf32>,
    %c0_322 = arith.constant 0 : index
    %c0_323 = arith.constant 0 : index
    %c0_324 = arith.constant 0 : index
    %620 = vector.load %arg10[%c0_322, %c0_323, %c0_324] : memref<2x2x32xf32, #tpu.memory_space<vmem>>, vector<2x2x32xf32>
    %c0_325 = arith.constant 0 : index
    %c0_326 = arith.constant 0 : index
    %c0_327 = arith.constant 0 : index
    %621 = vector.load %arg6[%c0_325, %c0_326, %c0_327] : memref<2x2x32xf32, #tpu.memory_space<vmem>>, vector<2x2x32xf32>
    tpu.vector_store %arg6[%c0_325, %c0_326, %c0_327], %620 {strides = array<i32>} : memref<2x2x32xf32, #tpu.memory_space<vmem>>, vector<2x2x32xf32>,
    return
  }
  func.func @transform_0(%arg0: i32) -> (i32, i32, i32) {
    %c0_i32 = arith.constant 0 : i32
    %c0_i32_0 = arith.constant 0 : i32
    %c0_i32_1 = arith.constant 0 : i32
    %c0_i32_2 = arith.constant 0 : i32
    return %c0_i32, %c0_i32_0, %c0_i32_1 : i32, i32, i32
  }
  func.func @transform_1(%arg0: i32) -> (i32, i32, i32) {
    %c0_i32 = arith.constant 0 : i32
    %c0_i32_0 = arith.constant 0 : i32
    %c0_i32_1 = arith.constant 0 : i32
    %c0_i32_2 = arith.constant 0 : i32
    return %c0_i32, %c0_i32_0, %c0_i32_1 : i32, i32, i32
  }
  func.func @transform_2(%arg0: i32) -> (i32, i32, i32) {
    %c0_i32 = arith.constant 0 : i32
    %c0_i32_0 = arith.constant 0 : i32
    %c0_i32_1 = arith.constant 0 : i32
    %c0_i32_2 = arith.constant 0 : i32
    return %c0_i32, %c0_i32_0, %c0_i32_1 : i32, i32, i32
  }
  func.func @transform_3(%arg0: i32) -> (i32, i32, i32) {
    %c0_i32 = arith.constant 0 : i32
    %c0_i32_0 = arith.constant 0 : i32
    %c0_i32_1 = arith.constant 0 : i32
    %c0_i32_2 = arith.constant 0 : i32
    return %c0_i32, %c0_i32_0, %c0_i32_1 : i32, i32, i32
  }
  func.func @transform_4(%arg0: i32) -> (i32, i32, i32) {
    %c0_i32 = arith.constant 0 : i32
    %c0_i32_0 = arith.constant 0 : i32
    %c0_i32_1 = arith.constant 0 : i32
    %c0_i32_2 = arith.constant 0 : i32
    return %c0_i32, %c0_i32_0, %c0_i32_1 : i32, i32, i32
  }
  func.func @transform_5(%arg0: i32) -> (i32, i32, i32) {
    %c0_i32 = arith.constant 0 : i32
    %c0_i32_0 = arith.constant 0 : i32
    %c0_i32_1 = arith.constant 0 : i32
    %c0_i32_2 = arith.constant 0 : i32
    return %c0_i32, %c0_i32_0, %c0_i32_1 : i32, i32, i32
  }
}

</mosaic_0001>

<llo_original>
// kernel: tpu_custom_call.1
$region0: #{tpu_custom_call.1}
  #allocation0 [shape = 'u32[]', space=smem, size = 0x4, offset = 0x4, fixed_abs, tag = 'smem constant byte address 0x4 - core index']
  #allocation1 [shape = 'u32[144,128]{1,0:T(1,128)}', space=vmem, size = 0x12000, scoped, tag = 'internal scratch']
  #allocation2 [shape = 'f32[8,2,32]{2,1,0:T(2,128)}', space=vmem, size = 0x2000, scoped, tag = 'scratch operand']
  #allocation3 [shape = 'f32[8,2,32]{2,1,0:T(2,128)}', space=vmem, size = 0x2000, scoped, tag = 'scratch operand']
  #allocation4 [shape = 'f32[2,2,32]{2,1,0:T(2,128)}', space=vmem, size = 0x800, scoped, tag = 'scratch operand']
  #allocation5 [shape = 'f32[2,2,32]{2,1,0:T(2,128)}', space=vmem, size = 0x800, scoped, tag = 'scratch operand']
  %s0 = inlined_call_operand.hbm [shape: f32[8,2,128], index: 0, kind: input, shape index: {}]
  %s1 = inlined_call_operand.hbm [shape: f32[8,2,128], index: 1, kind: input, shape index: {}]
  %s2 = inlined_call_operand.hbm [shape: f32[2,32,128], index: 2, kind: input, shape index: {}]
  %s3 = inlined_call_operand.hbm [shape: f32[8,2,64], index: 3, kind: output, shape index: {0}]
  %s4 = inlined_call_operand.hbm [shape: f32[2,2,32], index: 4, kind: output, shape index: {1}]
  %s5 = inlined_call_operand.hbm [shape: f32[2,2,32], index: 5, kind: output, shape index: {2}]
  %6 = xla_tuple %s3, %s4, %s5
  %s7 = sld [smem:[#allocation0]]
  $region50: #{tpu_custom_call.1} parent=0
    _
  %s9 = ssub.s32 1, %s7
  %s10 = scalar_select 0, %s9, %s7
  $region1: #{tpu_custom_call.1} parent=0
    #allocation6 [shape = 'u8[8192]{0}', space=vmem, size = 0x2000, scoped, tag = 'input window, operand 0, single buffered']
    #allocation7 [shape = 's32[1]{0}', space=sflag, size = 0x4, scoped, tag = 'scoped memory for tpu_custom_call.1']
    #allocation8 [shape = 's32[1]{0}', space=sflag, size = 0x4, scoped, tag = 'scoped memory for tpu_custom_call.1']
    #allocation9 [shape = 'u8[8192]{0}', space=vmem, size = 0x2000, scoped, tag = 'input window, operand 1, single buffered']
    #allocation10 [shape = 's32[1]{0}', space=sflag, size = 0x4, scoped, tag = 'scoped memory for tpu_custom_call.1']
    #allocation11 [shape = 'u8[32768]{0}', space=vmem, size = 0x8000, scoped, tag = 'input window, operand 2, single buffered']
    #allocation12 [shape = 'u8[8192]{0}', space=vmem, size = 0x2000, scoped, tag = 'output window, operand 0, single buffered']
    #allocation13 [shape = 'u8[2048]{0}', space=vmem, size = 0x800, scoped, tag = 'output window, operand 1, single buffered']
    #allocation14 [shape = 's32[1]{0}', space=sflag, size = 0x4, scoped, tag = 'scoped memory for tpu_custom_call.1']
    #allocation15 [shape = 'u8[2048]{0}', space=vmem, size = 0x800, scoped, tag = 'output window, operand 2, single buffered']
    %11 = vsyncpa [#allocation7], 0
    %12 = vsyncpa [#allocation10], 0
    %13 = vsyncpa [#allocation8], 0
    %14 = vsyncpa [#allocation14], 0
    // Predicated region
    $region2: #{tpu_custom_call.1} parent=1 // pred_check
      _
    $region3: #{tpu_custom_call.1} parent=1 // pred_check_branch
      %16 = sbr.rel (0) target = $region5
    $region4: #{tpu_custom_call.1} parent=1 // pred_region
      %s18 = ssub.s32 256, 256
      %19 = vsyncadd [#allocation7], %s18
      %s20 = sshll.u32 [#allocation6], 4
      %s21 = int_to_ptr.vmem [resolvable:$true] %s20
      %26 = dma.hbm_to_vmem [thread:$0]  %s0, 256, %s21, [#allocation7], 32, 32, 2
    $region5: #{tpu_custom_call.1} parent=1 // pred_fallthru
      _
    // Predicated region
    $region6: #{tpu_custom_call.1} parent=1 // pred_check
      _
    $region7: #{tpu_custom_call.1} parent=1 // pred_check_branch
      %28 = sbr.rel (0) target = $region9
    $region8: #{tpu_custom_call.1} parent=1 // pred_region
      %s30 = ssub.s32 256, 256
      %31 = vsyncadd [#allocation10], %s30
      %s32 = sshll.u32 [#allocation9], 4
      %s33 = int_to_ptr.vmem [resolvable:$true] %s32
      %38 = dma.hbm_to_vmem [thread:$0]  %s1, 256, %s33, [#allocation10], 32, 32, 2
    $region9: #{tpu_custom_call.1} parent=1 // pred_fallthru
      _
    // Predicated region
    $region10: #{tpu_custom_call.1} parent=1 // pred_check
      _
    $region11: #{tpu_custom_call.1} parent=1 // pred_check_branch
      %40 = sbr.rel (0) target = $region13
    $region12: #{tpu_custom_call.1} parent=1 // pred_region
      %s42 = ssub.s32 1024, 1024
      %43 = vsyncadd [#allocation10], %s42
      %s44 = sshll.u32 [#allocation11], 4
      %s45 = int_to_ptr.vmem [resolvable:$true] %s44
      %50 = dma.hbm_to_vmem [thread:$0]  %s2, 1024, %s45, [#allocation10], 128, 128, 8
    $region13: #{tpu_custom_call.1} parent=1 // pred_fallthru
      _
    // Predicated region
    $region14: #{tpu_custom_call.1} parent=1 // pred_check
      _
    $region15: #{tpu_custom_call.1} parent=1 // pred_check_branch
      %52 = sbr.rel (0) target = $region17
    $region16: #{tpu_custom_call.1} parent=1 // pred_region
      %53 = dma.done [#allocation7], 256
    $region17: #{tpu_custom_call.1} parent=1 // pred_fallthru
      _
    // Predicated region
    $region18: #{tpu_custom_call.1} parent=1 // pred_check
      _
    $region19: #{tpu_custom_call.1} parent=1 // pred_check_branch
      %55 = sbr.rel (0) target = $region21
    $region20: #{tpu_custom_call.1} parent=1 // pred_region
      %56 = dma.done [#allocation10], 256
    $region21: #{tpu_custom_call.1} parent=1 // pred_fallthru
      _
    // Predicated region
    $region22: #{tpu_custom_call.1} parent=1 // pred_check
      _
    $region23: #{tpu_custom_call.1} parent=1 // pred_check_branch
      %58 = sbr.rel (0) target = $region25
    $region24: #{tpu_custom_call.1} parent=1 // pred_region
      %59 = dma.done [#allocation10], 1024
    $region25: #{tpu_custom_call.1} parent=1 // pred_fallthru
      _
    %vm60 = vcmask 254976
    %61 = vst.msk [vmem:[#allocation4] sm:$0x3] %vm60, 0.0
    %62 = vst.msk [vmem:[#allocation4 + $0x2] sm:$0x3] %vm60, 0.0
    %63 = vst.msk [vmem:[#allocation5] sm:$0x3] %vm60, 0.0
    %64 = vst.msk [vmem:[#allocation5 + $0x2] sm:$0x3] %vm60, 0.0
    %v65 = vld [vmem:[#allocation11] sm:$0xff]
    %v66 = vld [vmem:[#allocation11 + $0x8] sm:$0xff]
    %v67 = vld [vmem:[#allocation11 + $0x10] sm:$0xff]
    %v68 = vld [vmem:[#allocation11 + $0x18] sm:$0xff]
    %s69 = scalar_lea.vmem [#allocation11], 32
    %v70 = vld [vmem:[%s69] sm:$0xff]
    %v71 = vld [vmem:[%s69 + $0x8] sm:$0xff]
    %v72 = vld [vmem:[%s69 + $0x10] sm:$0xff]
    %v73 = vld [vmem:[%s69 + $0x18] sm:$0xff]
    %v74 = vlaneseq
    %v75 = vand.u32 %v74, 127
    %vm76 = vcmp.ge.s32.totalorder %v75, 64
    %vm77 = vcmp.lt.s32.totalorder %v75, 96
    %vm78 = vmand %vm76, %vm77
    %v79 = vld [vmem:[#allocation6] sm:$0x3]
    %v80 = vld [vmem:[#allocation4] sm:$0x3]
    %vm81 = vcmask 261120
    %v83 = vsel %vm81, %v80, 0
    %85 = vmatprep.subr.mxu0 0.0
    %86 = vmatpush1.msra.mxu0 0.0
    %87 = vmatprep.subr.mxu0 0.0
    %88 = vmatpush1.msra.mxu0 0.0
    %89 = vmatprep.subr.mxu0 0.0
    %90 = vmatpush1.msra.mxu0 0.0
    %91 = vmatprep.subr.mxu0 0.0
    %92 = vmatpush1.msra.mxu0 0.0
    %93 = vmatprep.subr.mxu0 0.0
    %94 = vmatpush1.msra.mxu0 0.0
    %95 = vmatprep.subr.mxu0 0.0
    %96 = vmatpush1.msra.mxu0 0.0
    %97 = vmatprep.subr.mxu0 0.0
    %98 = vmatpush1.msra.mxu0 0.0
    %99 = vmatprep.subr.mxu0 0.0
    %100 = vmatpush1.msra.mxu0 0.0
    %101 = vmatprep.subr.mxu0 0.0
    %102 = vmatpush1.msra.mxu0 0.0
    %103 = vmatprep.subr.mxu0 0.0
    %104 = vmatpush1.msra.mxu0 0.0
    %105 = vmatprep.subr.mxu0 0.0
    %106 = vmatpush1.msra.mxu0 0.0
    %107 = vmatprep.subr.mxu0 0.0
    %108 = vmatpush1.msra.mxu0 0.0
    %109 = vmatprep.subr.mxu0 0.0
    %110 = vmatpush1.msra.mxu0 %v68
    %111 = vmatprep.subr.mxu0 0.0
    %112 = vmatpush1.msra.mxu0 %v67
    %113 = vmatprep.subr.mxu0 0.0
    %114 = vmatpush1.msra.mxu0 %v66
    %115 = vmatprep.subr.mxu0 0.0
    %116 = vmatpush1.msra.mxu0 %v65
    %117 = vmatprep.subr.mxu0 0.0
    %118 = vmatpush2.msra.mxu0 0.0
    %119 = vmatprep.subr.mxu0 0.0
    %120 = vmatpush2.msra.mxu0 0.0
    %121 = vmatprep.subr.mxu0 0.0
    %122 = vmatpush2.msra.mxu0 0.0
    %123 = vmatprep.subr.mxu0 0.0
    %124 = vmatpush2.msra.mxu0 0.0
    %125 = vmatprep.subr.mxu0 0.0
    %126 = vmatpush2.msra.mxu0 0.0
    %127 = vmatprep.subr.mxu0 0.0
    %128 = vmatpush2.msra.mxu0 0.0
    %129 = vmatprep.subr.mxu0 0.0
    %130 = vmatpush2.msra.mxu0 0.0
    %131 = vmatprep.subr.mxu0 0.0
    %132 = vmatpush2.msra.mxu0 0.0
    %133 = vmatprep.subr.mxu0 0.0
    %134 = vmatpush2.msra.mxu0 0.0
    %135 = vmatprep.subr.mxu0 0.0
    %136 = vmatpush2.msra.mxu0 0.0
    %137 = vmatprep.subr.mxu0 0.0
    %138 = vmatpush2.msra.mxu0 0.0
    %139 = vmatprep.subr.mxu0 0.0
    %140 = vmatpush2.msra.mxu0 0.0
    %141 = vmatprep.subr.mxu0 0.0
    %142 = vmatpush2.msra.mxu0 0.0
    %143 = vmatprep.subr.mxu0 0.0
    %144 = vmatpush2.msra.mxu0 0.0
    %145 = vmatprep.subr.mxu0 0.0
    %146 = vmatpush2.msra.mxu0 0.0
    %147 = vmatprep.subr.mxu0 0.0
    %148 = vmatpush2.msra.mxu0 0.0
    %149 = vmatprep.mubr.f32.mxu0 0.0
    %150 = vmatmul.mubr.f32.gmra.mxu0 %v83
    %v151 = vpop.f32.mrf.mxu0
    %v152 = vadd.f32 0.0, %v151
    %v153 = vpop.f32.mrf.mxu0
    %154 = vdwg.mxu0
    %v155 = vadd.f32 %v79, %v152
    %s156 = scalar_lea.vmem [#allocation9], 14
    %v157 = vld [vmem:[%s156] sm:$0x3]
    %s158 = scalar_lea.vmem [#allocation4], 2
    %v159 = vld [vmem:[%s158] sm:$0x3]
    %v161 = vsel %vm81, %v159, 0
    %163 = vmatprep.subr.mxu0 0.0
    %164 = vmatpush1.msra.mxu0 0.0
    %165 = vmatprep.subr.mxu0 0.0
    %166 = vmatpush1.msra.mxu0 0.0
    %167 = vmatprep.subr.mxu0 0.0
    %168 = vmatpush1.msra.mxu0 0.0
    %169 = vmatprep.subr.mxu0 0.0
    %170 = vmatpush1.msra.mxu0 0.0
    %171 = vmatprep.subr.mxu0 0.0
    %172 = vmatpush1.msra.mxu0 0.0
    %173 = vmatprep.subr.mxu0 0.0
    %174 = vmatpush1.msra.mxu0 0.0
    %175 = vmatprep.subr.mxu0 0.0
    %176 = vmatpush1.msra.mxu0 0.0
    %177 = vmatprep.subr.mxu0 0.0
    %178 = vmatpush1.msra.mxu0 0.0
    %179 = vmatprep.subr.mxu0 0.0
    %180 = vmatpush1.msra.mxu0 0.0
    %181 = vmatprep.subr.mxu0 0.0
    %182 = vmatpush1.msra.mxu0 0.0
    %183 = vmatprep.subr.mxu0 0.0
    %184 = vmatpush1.msra.mxu0 0.0
    %185 = vmatprep.subr.mxu0 0.0
    %186 = vmatpush1.msra.mxu0 0.0
    %187 = vmatprep.subr.mxu0 0.0
    %188 = vmatpush1.msra.mxu0 %v73
    %189 = vmatprep.subr.mxu0 0.0
    %190 = vmatpush1.msra.mxu0 %v72
    %191 = vmatprep.subr.mxu0 0.0
    %192 = vmatpush1.msra.mxu0 %v71
    %193 = vmatprep.subr.mxu0 0.0
    %194 = vmatpush1.msra.mxu0 %v70
    %195 = vmatprep.subr.mxu0 0.0
    %196 = vmatpush2.msra.mxu0 0.0
    %197 = vmatprep.subr.mxu0 0.0
    %198 = vmatpush2.msra.mxu0 0.0
    %199 = vmatprep.subr.mxu0 0.0
    %200 = vmatpush2.msra.mxu0 0.0
    %201 = vmatprep.subr.mxu0 0.0
    %202 = vmatpush2.msra.mxu0 0.0
    %203 = vmatprep.subr.mxu0 0.0
    %204 = vmatpush2.msra.mxu0 0.0
    %205 = vmatprep.subr.mxu0 0.0
    %206 = vmatpush2.msra.mxu0 0.0
    %207 = vmatprep.subr.mxu0 0.0
    %208 = vmatpush2.msra.mxu0 0.0
    %209 = vmatprep.subr.mxu0 0.0
    %210 = vmatpush2.msra.mxu0 0.0
    %211 = vmatprep.subr.mxu0 0.0
    %212 = vmatpush2.msra.mxu0 0.0
    %213 = vmatprep.subr.mxu0 0.0
    %214 = vmatpush2.msra.mxu0 0.0
    %215 = vmatprep.subr.mxu0 0.0
    %216 = vmatpush2.msra.mxu0 0.0
    %217 = vmatprep.subr.mxu0 0.0
    %218 = vmatpush2.msra.mxu0 0.0
    %219 = vmatprep.subr.mxu0 0.0
    %220 = vmatpush2.msra.mxu0 0.0
    %221 = vmatprep.subr.mxu0 0.0
    %222 = vmatpush2.msra.mxu0 0.0
    %223 = vmatprep.subr.mxu0 0.0
    %224 = vmatpush2.msra.mxu0 0.0
    %225 = vmatprep.subr.mxu0 0.0
    %226 = vmatpush2.msra.mxu0 0.0
    %227 = vmatprep.mubr.f32.mxu0 0.0
    %228 = vmatmul.mubr.f32.gmra.mxu0 %v161
    %v229 = vpop.f32.mrf.mxu0
    %v230 = vadd.f32 0.0, %v229
    %v231 = vpop.f32.mrf.mxu0
    %232 = vdwg.mxu0
    %v233 = vadd.f32 %v157, %v230
    %v234 = vld [vmem:[#allocation5] sm:$0x3]
    %v235 = vtanh.pop %v155
    %v236 = vxor.u32 %v155, 2147483648
    %v237 = vmul.f32 %v236, 1.442695
    %v238 = vpow.pop %v237
    %v239 = vadd.f32 %v238, 1.0
    %v240 = vrcp.pop %v239
    %v241 = vmul.f32 1.0, %v240
    %v242 = vsel %vm78, 1, 0
    %vm243 = vcmp.eq.s32.totalorder %v242, 1
    %v244 = vsel %vm243, %v235, %v241
    %246 = vrot.lane.b32.xlu0 %v234, 32
    %v247 = vpop.permute.xlu0 %246
    %v249 = vmul.f32 %v244, %v247
    %251 = vrot.lane.b32.xlu0 %v244, 64
    %v252 = vpop.permute.xlu0 %251
    %v254 = vmul.f32 %v244, %v252
    %256 = vrot.lane.b32.xlu0 %v254, 32
    %v257 = vpop.permute.xlu0 %256
    %v259 = vadd.f32 %v249, %v257
    %v260 = vtanh.pop %v259
    %262 = vrot.lane.b32.xlu0 %v260, 64
    %v263 = vpop.permute.xlu0 %262
    %v265 = vmul.f32 %v244, %v263
    %s266 = scalar_lea.vmem [#allocation5], 2
    %v267 = vld [vmem:[%s266] sm:$0x3]
    %v268 = vtanh.pop %v233
    %v269 = vxor.u32 %v233, 2147483648
    %v270 = vmul.f32 %v269, 1.442695
    %v271 = vpow.pop %v270
    %v272 = vadd.f32 %v271, 1.0
    %v273 = vrcp.pop %v272
    %v274 = vmul.f32 1.0, %v273
    %v275 = vsel %vm243, %v268, %v274
    %277 = vrot.lane.b32.xlu0 %v267, 32
    %v278 = vpop.permute.xlu0 %277
    %v280 = vmul.f32 %v275, %v278
    %282 = vrot.lane.b32.xlu0 %v275, 64
    %v283 = vpop.permute.xlu0 %282
    %v285 = vmul.f32 %v275, %v283
    %287 = vrot.lane.b32.xlu0 %v285, 32
    %v288 = vpop.permute.xlu0 %287
    %v290 = vadd.f32 %v280, %v288
    %v291 = vtanh.pop %v290
    %293 = vrot.lane.b32.xlu0 %v291, 64
    %v294 = vpop.permute.xlu0 %293
    %v296 = vmul.f32 %v275, %v294
    %298 = vrot.lane.b32.xlu0 %v265, 32
    %v299 = vpop.permute.xlu0 %298
    %301 = vst.msk [vmem:[#allocation4] sm:$0x3] %vm60, %v299
    %303 = vrot.lane.b32.xlu0 %v296, 32
    %v304 = vpop.permute.xlu0 %303
    %306 = vst.msk [vmem:[%s158] sm:$0x3] %vm60, %v304
    %308 = vrot.lane.b32.xlu0 %v259, 96
    %v309 = vpop.permute.xlu0 %308
    %311 = vst.msk [vmem:[#allocation5] sm:$0x3] %vm60, %v309
    %313 = vrot.lane.b32.xlu0 %v290, 96
    %v314 = vpop.permute.xlu0 %313
    %316 = vst.msk [vmem:[%s266] sm:$0x3] %vm60, %v314
    %317 = vst.msk [vmem:[#allocation2] sm:$0x3] %vm60, %v299
    %s318 = scalar_lea.vmem [#allocation3], 14
    %319 = vst.msk [vmem:[%s318] sm:$0x3] %vm60, %v304
    %s320 = scalar_lea.vmem [#allocation6], 2
    %v321 = vld [vmem:[%s320] sm:$0x3]
    %v322 = vld [vmem:[#allocation4] sm:$0x3]
    %v324 = vsel %vm81, %v322, 0
    %326 = vmatprep.subr.mxu0 0.0
    %327 = vmatpush1.msra.mxu0 0.0
    %328 = vmatprep.subr.mxu0 0.0
    %329 = vmatpush1.msra.mxu0 0.0
    %330 = vmatprep.subr.mxu0 0.0
    %331 = vmatpush1.msra.mxu0 0.0
    %332 = vmatprep.subr.mxu0 0.0
    %333 = vmatpush1.msra.mxu0 0.0
    %334 = vmatprep.subr.mxu0 0.0
    %335 = vmatpush1.msra.mxu0 0.0
    %336 = vmatprep.subr.mxu0 0.0
    %337 = vmatpush1.msra.mxu0 0.0
    %338 = vmatprep.subr.mxu0 0.0
    %339 = vmatpush1.msra.mxu0 0.0
    %340 = vmatprep.subr.mxu0 0.0
    %341 = vmatpush1.msra.mxu0 0.0
    %342 = vmatprep.subr.mxu0 0.0
    %343 = vmatpush1.msra.mxu0 0.0
    %344 = vmatprep.subr.mxu0 0.0
    %345 = vmatpush1.msra.mxu0 0.0
    %346 = vmatprep.subr.mxu0 0.0
    %347 = vmatpush1.msra.mxu0 0.0
    %348 = vmatprep.subr.mxu0 0.0
    %349 = vmatpush1.msra.mxu0 0.0
    %350 = vmatprep.subr.mxu0 0.0
    %351 = vmatpush1.msra.mxu0 %v68
    %352 = vmatprep.subr.mxu0 0.0
    %353 = vmatpush1.msra.mxu0 %v67
    %354 = vmatprep.subr.mxu0 0.0
    %355 = vmatpush1.msra.mxu0 %v66
    %356 = vmatprep.subr.mxu0 0.0
    %357 = vmatpush1.msra.mxu0 %v65
    %358 = vmatprep.subr.mxu0 0.0
    %359 = vmatpush2.msra.mxu0 0.0
    %360 = vmatprep.subr.mxu0 0.0
    %361 = vmatpush2.msra.mxu0 0.0
    %362 = vmatprep.subr.mxu0 0.0
    %363 = vmatpush2.msra.mxu0 0.0
    %364 = vmatprep.subr.mxu0 0.0
    %365 = vmatpush2.msra.mxu0 0.0
    %366 = vmatprep.subr.mxu0 0.0
    %367 = vmatpush2.msra.mxu0 0.0
    %368 = vmatprep.subr.mxu0 0.0
    %369 = vmatpush2.msra.mxu0 0.0
    %370 = vmatprep.subr.mxu0 0.0
    %371 = vmatpush2.msra.mxu0 0.0
    %372 = vmatprep.subr.mxu0 0.0
    %373 = vmatpush2.msra.mxu0 0.0
    %374 = vmatprep.subr.mxu0 0.0
    %375 = vmatpush2.msra.mxu0 0.0
    %376 = vmatprep.subr.mxu0 0.0
    %377 = vmatpush2.msra.mxu0 0.0
    %378 = vmatprep.subr.mxu0 0.0
    %379 = vmatpush2.msra.mxu0 0.0
    %380 = vmatprep.subr.mxu0 0.0
    %381 = vmatpush2.msra.mxu0 0.0
    %382 = vmatprep.subr.mxu0 0.0
    %383 = vmatpush2.msra.mxu0 0.0
    %384 = vmatprep.subr.mxu0 0.0
    %385 = vmatpush2.msra.mxu0 0.0
    %386 = vmatprep.subr.mxu0 0.0
    %387 = vmatpush2.msra.mxu0 0.0
    %388 = vmatprep.subr.mxu0 0.0
    %389 = vmatpush2.msra.mxu0 0.0
    %390 = vmatprep.mubr.f32.mxu0 0.0
    %391 = vmatmul.mubr.f32.gmra.mxu0 %v324
    %v392 = vpop.f32.mrf.mxu0
    %v393 = vadd.f32 0.0, %v392
    %v394 = vpop.f32.mrf.mxu0
    %395 = vdwg.mxu0
    %v396 = vadd.f32 %v321, %v393
    %s397 = scalar_lea.vmem [#allocation9], 12
    %v398 = vld [vmem:[%s397] sm:$0x3]
    %v399 = vld [vmem:[%s158] sm:$0x3]
    %v401 = vsel %vm81, %v399, 0
    %403 = vmatprep.subr.mxu0 0.0
    %404 = vmatpush1.msra.mxu0 0.0
    %405 = vmatprep.subr.mxu0 0.0
    %406 = vmatpush1.msra.mxu0 0.0
    %407 = vmatprep.subr.mxu0 0.0
    %408 = vmatpush1.msra.mxu0 0.0
    %409 = vmatprep.subr.mxu0 0.0
    %410 = vmatpush1.msra.mxu0 0.0
    %411 = vmatprep.subr.mxu0 0.0
    %412 = vmatpush1.msra.mxu0 0.0
    %413 = vmatprep.subr.mxu0 0.0
    %414 = vmatpush1.msra.mxu0 0.0
    %415 = vmatprep.subr.mxu0 0.0
    %416 = vmatpush1.msra.mxu0 0.0
    %417 = vmatprep.subr.mxu0 0.0
    %418 = vmatpush1.msra.mxu0 0.0
    %419 = vmatprep.subr.mxu0 0.0
    %420 = vmatpush1.msra.mxu0 0.0
    %421 = vmatprep.subr.mxu0 0.0
    %422 = vmatpush1.msra.mxu0 0.0
    %423 = vmatprep.subr.mxu0 0.0
    %424 = vmatpush1.msra.mxu0 0.0
    %425 = vmatprep.subr.mxu0 0.0
    %426 = vmatpush1.msra.mxu0 0.0
    %427 = vmatprep.subr.mxu0 0.0
    %428 = vmatpush1.msra.mxu0 %v73
    %429 = vmatprep.subr.mxu0 0.0
    %430 = vmatpush1.msra.mxu0 %v72
    %431 = vmatprep.subr.mxu0 0.0
    %432 = vmatpush1.msra.mxu0 %v71
    %433 = vmatprep.subr.mxu0 0.0
    %434 = vmatpush1.msra.mxu0 %v70
    %435 = vmatprep.subr.mxu0 0.0
    %436 = vmatpush2.msra.mxu0 0.0
    %437 = vmatprep.subr.mxu0 0.0
    %438 = vmatpush2.msra.mxu0 0.0
    %439 = vmatprep.subr.mxu0 0.0
    %440 = vmatpush2.msra.mxu0 0.0
    %441 = vmatprep.subr.mxu0 0.0
    %442 = vmatpush2.msra.mxu0 0.0
    %443 = vmatprep.subr.mxu0 0.0
    %444 = vmatpush2.msra.mxu0 0.0
    %445 = vmatprep.subr.mxu0 0.0
    %446 = vmatpush2.msra.mxu0 0.0
    %447 = vmatprep.subr.mxu0 0.0
    %448 = vmatpush2.msra.mxu0 0.0
    %449 = vmatprep.subr.mxu0 0.0
    %450 = vmatpush2.msra.mxu0 0.0
    %451 = vmatprep.subr.mxu0 0.0
    %452 = vmatpush2.msra.mxu0 0.0
    %453 = vmatprep.subr.mxu0 0.0
    %454 = vmatpush2.msra.mxu0 0.0
    %455 = vmatprep.subr.mxu0 0.0
    %456 = vmatpush2.msra.mxu0 0.0
    %457 = vmatprep.subr.mxu0 0.0
    %458 = vmatpush2.msra.mxu0 0.0
    %459 = vmatprep.subr.mxu0 0.0
    %460 = vmatpush2.msra.mxu0 0.0
    %461 = vmatprep.subr.mxu0 0.0
    %462 = vmatpush2.msra.mxu0 0.0
    %463 = vmatprep.subr.mxu0 0.0
    %464 = vmatpush2.msra.mxu0 0.0
    %465 = vmatprep.subr.mxu0 0.0
    %466 = vmatpush2.msra.mxu0 0.0
    %467 = vmatprep.mubr.f32.mxu0 0.0
    %468 = vmatmul.mubr.f32.gmra.mxu0 %v401
    %v469 = vpop.f32.mrf.mxu0
    %v470 = vadd.f32 0.0, %v469
    %v471 = vpop.f32.mrf.mxu0
    %472 = vdwg.mxu0
    %v473 = vadd.f32 %v398, %v470
    %v474 = vld [vmem:[#allocation5] sm:$0x3]
    %v475 = vtanh.pop %v396
    %v476 = vxor.u32 %v396, 2147483648
    %v477 = vmul.f32 %v476, 1.442695
    %v478 = vpow.pop %v477
    %v479 = vadd.f32 %v478, 1.0
    %v480 = vrcp.pop %v479
    %v481 = vmul.f32 1.0, %v480
    %v482 = vsel %vm243, %v475, %v481
    %484 = vrot.lane.b32.xlu0 %v474, 32
    %v485 = vpop.permute.xlu0 %484
    %v487 = vmul.f32 %v482, %v485
    %489 = vrot.lane.b32.xlu0 %v482, 64
    %v490 = vpop.permute.xlu0 %489
    %v492 = vmul.f32 %v482, %v490
    %494 = vrot.lane.b32.xlu0 %v492, 32
    %v495 = vpop.permute.xlu0 %494
    %v497 = vadd.f32 %v487, %v495
    %v498 = vtanh.pop %v497
    %500 = vrot.lane.b32.xlu0 %v498, 64
    %v501 = vpop.permute.xlu0 %500
    %v503 = vmul.f32 %v482, %v501
    %v504 = vld [vmem:[%s266] sm:$0x3]
    %v505 = vtanh.pop %v473
    %v506 = vxor.u32 %v473, 2147483648
    %v507 = vmul.f32 %v506, 1.442695
    %v508 = vpow.pop %v507
    %v509 = vadd.f32 %v508, 1.0
    %v510 = vrcp.pop %v509
    %v511 = vmul.f32 1.0, %v510
    %v512 = vsel %vm243, %v505, %v511
    %514 = vrot.lane.b32.xlu0 %v504, 32
    %v515 = vpop.permute.xlu0 %514
    %v517 = vmul.f32 %v512, %v515
    %519 = vrot.lane.b32.xlu0 %v512, 64
    %v520 = vpop.permute.xlu0 %519
    %v522 = vmul.f32 %v512, %v520
    %524 = vrot.lane.b32.xlu0 %v522, 32
    %v525 = vpop.permute.xlu0 %524
    %v527 = vadd.f32 %v517, %v525
    %v528 = vtanh.pop %v527
    %530 = vrot.lane.b32.xlu0 %v528, 64
    %v531 = vpop.permute.xlu0 %530
    %v533 = vmul.f32 %v512, %v531
    %535 = vrot.lane.b32.xlu0 %v503, 32
    %v536 = vpop.permute.xlu0 %535
    %538 = vst.msk [vmem:[#allocation4] sm:$0x3] %vm60, %v536
    %540 = vrot.lane.b32.xlu0 %v533, 32
    %v541 = vpop.permute.xlu0 %540
    %543 = vst.msk [vmem:[%s158] sm:$0x3] %vm60, %v541
    %545 = vrot.lane.b32.xlu0 %v497, 96
    %v546 = vpop.permute.xlu0 %545
    %548 = vst.msk [vmem:[#allocation5] sm:$0x3] %vm60, %v546
    %550 = vrot.lane.b32.xlu0 %v527, 96
    %v551 = vpop.permute.xlu0 %550
    %553 = vst.msk [vmem:[%s266] sm:$0x3] %vm60, %v551
    %s554 = scalar_lea.vmem [#allocation2], 2
    %555 = vst.msk [vmem:[%s554] sm:$0x3] %vm60, %v536
    %s556 = scalar_lea.vmem [#allocation3], 12
    %557 = vst.msk [vmem:[%s556] sm:$0x3] %vm60, %v541
    %s558 = scalar_lea.vmem [#allocation6], 4
    %v559 = vld [vmem:[%s558] sm:$0x3]
    %v560 = vld [vmem:[#allocation4] sm:$0x3]
    %v562 = vsel %vm81, %v560, 0
    %564 = vmatprep.subr.mxu0 0.0
    %565 = vmatpush1.msra.mxu0 0.0
    %566 = vmatprep.subr.mxu0 0.0
    %567 = vmatpush1.msra.mxu0 0.0
    %568 = vmatprep.subr.mxu0 0.0
    %569 = vmatpush1.msra.mxu0 0.0
    %570 = vmatprep.subr.mxu0 0.0
    %571 = vmatpush1.msra.mxu0 0.0
    %572 = vmatprep.subr.mxu0 0.0
    %573 = vmatpush1.msra.mxu0 0.0
    %574 = vmatprep.subr.mxu0 0.0
    %575 = vmatpush1.msra.mxu0 0.0
    %576 = vmatprep.subr.mxu0 0.0
    %577 = vmatpush1.msra.mxu0 0.0
    %578 = vmatprep.subr.mxu0 0.0
    %579 = vmatpush1.msra.mxu0 0.0
    %580 = vmatprep.subr.mxu0 0.0
    %581 = vmatpush1.msra.mxu0 0.0
    %582 = vmatprep.subr.mxu0 0.0
    %583 = vmatpush1.msra.mxu0 0.0
    %584 = vmatprep.subr.mxu0 0.0
    %585 = vmatpush1.msra.mxu0 0.0
    %586 = vmatprep.subr.mxu0 0.0
    %587 = vmatpush1.msra.mxu0 0.0
    %588 = vmatprep.subr.mxu0 0.0
    %589 = vmatpush1.msra.mxu0 %v68
    %590 = vmatprep.subr.mxu0 0.0
    %591 = vmatpush1.msra.mxu0 %v67
    %592 = vmatprep.subr.mxu0 0.0
    %593 = vmatpush1.msra.mxu0 %v66
    %594 = vmatprep.subr.mxu0 0.0
    %595 = vmatpush1.msra.mxu0 %v65
    %596 = vmatprep.subr.mxu0 0.0
    %597 = vmatpush2.msra.mxu0 0.0
    %598 = vmatprep.subr.mxu0 0.0
    %599 = vmatpush2.msra.mxu0 0.0
    %600 = vmatprep.subr.mxu0 0.0
    %601 = vmatpush2.msra.mxu0 0.0
    %602 = vmatprep.subr.mxu0 0.0
    %603 = vmatpush2.msra.mxu0 0.0
    %604 = vmatprep.subr.mxu0 0.0
    %605 = vmatpush2.msra.mxu0 0.0
    %606 = vmatprep.subr.mxu0 0.0
    %607 = vmatpush2.msra.mxu0 0.0
    %608 = vmatprep.subr.mxu0 0.0
    %609 = vmatpush2.msra.mxu0 0.0
    %610 = vmatprep.subr.mxu0 0.0
    %611 = vmatpush2.msra.mxu0 0.0
    %612 = vmatprep.subr.mxu0 0.0
    %613 = vmatpush2.msra.mxu0 0.0
    %614 = vmatprep.subr.mxu0 0.0
    %615 = vmatpush2.msra.mxu0 0.0
    %616 = vmatprep.subr.mxu0 0.0
    %617 = vmatpush2.msra.mxu0 0.0
    %618 = vmatprep.subr.mxu0 0.0
    %619 = vmatpush2.msra.mxu0 0.0
    %620 = vmatprep.subr.mxu0 0.0
    %621 = vmatpush2.msra.mxu0 0.0
    %622 = vmatprep.subr.mxu0 0.0
    %623 = vmatpush2.msra.mxu0 0.0
    %624 = vmatprep.subr.mxu0 0.0
    %625 = vmatpush2.msra.mxu0 0.0
    %626 = vmatprep.subr.mxu0 0.0
    %627 = vmatpush2.msra.mxu0 0.0
    %628 = vmatprep.mubr.f32.mxu0 0.0
    %629 = vmatmul.mubr.f32.gmra.mxu0 %v562
    %v630 = vpop.f32.mrf.mxu0
    %v631 = vadd.f32 0.0, %v630
    %v632 = vpop.f32.mrf.mxu0
    %633 = vdwg.mxu0
    %v634 = vadd.f32 %v559, %v631
    %s635 = scalar_lea.vmem [#allocation9], 10
    %v636 = vld [vmem:[%s635] sm:$0x3]
    %v637 = vld [vmem:[%s158] sm:$0x3]
    %v639 = vsel %vm81, %v637, 0
    %641 = vmatprep.subr.mxu0 0.0
    %642 = vmatpush1.msra.mxu0 0.0
    %643 = vmatprep.subr.mxu0 0.0
    %644 = vmatpush1.msra.mxu0 0.0
    %645 = vmatprep.subr.mxu0 0.0
    %646 = vmatpush1.msra.mxu0 0.0
    %647 = vmatprep.subr.mxu0 0.0
    %648 = vmatpush1.msra.mxu0 0.0
    %649 = vmatprep.subr.mxu0 0.0
    %650 = vmatpush1.msra.mxu0 0.0
    %651 = vmatprep.subr.mxu0 0.0
    %652 = vmatpush1.msra.mxu0 0.0
    %653 = vmatprep.subr.mxu0 0.0
    %654 = vmatpush1.msra.mxu0 0.0
    %655 = vmatprep.subr.mxu0 0.0
    %656 = vmatpush1.msra.mxu0 0.0
    %657 = vmatprep.subr.mxu0 0.0
    %658 = vmatpush1.msra.mxu0 0.0
    %659 = vmatprep.subr.mxu0 0.0
    %660 = vmatpush1.msra.mxu0 0.0
    %661 = vmatprep.subr.mxu0 0.0
    %662 = vmatpush1.msra.mxu0 0.0
    %663 = vmatprep.subr.mxu0 0.0
    %664 = vmatpush1.msra.mxu0 0.0
    %665 = vmatprep.subr.mxu0 0.0
    %666 = vmatpush1.msra.mxu0 %v73
    %667 = vmatprep.subr.mxu0 0.0
    %668 = vmatpush1.msra.mxu0 %v72
    %669 = vmatprep.subr.mxu0 0.0
    %670 = vmatpush1.msra.mxu0 %v71
    %671 = vmatprep.subr.mxu0 0.0
    %672 = vmatpush1.msra.mxu0 %v70
    %673 = vmatprep.subr.mxu0 0.0
    %674 = vmatpush2.msra.mxu0 0.0
    %675 = vmatprep.subr.mxu0 0.0
    %676 = vmatpush2.msra.mxu0 0.0
    %677 = vmatprep.subr.mxu0 0.0
    %678 = vmatpush2.msra.mxu0 0.0
    %679 = vmatprep.subr.mxu0 0.0
    %680 = vmatpush2.msra.mxu0 0.0
    %681 = vmatprep.subr.mxu0 0.0
    %682 = vmatpush2.msra.mxu0 0.0
    %683 = vmatprep.subr.mxu0 0.0
    %684 = vmatpush2.msra.mxu0 0.0
    %685 = vmatprep.subr.mxu0 0.0
    %686 = vmatpush2.msra.mxu0 0.0
    %687 = vmatprep.subr.mxu0 0.0
    %688 = vmatpush2.msra.mxu0 0.0
    %689 = vmatprep.subr.mxu0 0.0
    %690 = vmatpush2.msra.mxu0 0.0
    %691 = vmatprep.subr.mxu0 0.0
    %692 = vmatpush2.msra.mxu0 0.0
    %693 = vmatprep.subr.mxu0 0.0
    %694 = vmatpush2.msra.mxu0 0.0
    %695 = vmatprep.subr.mxu0 0.0
    %696 = vmatpush2.msra.mxu0 0.0
    %697 = vmatprep.subr.mxu0 0.0
    %698 = vmatpush2.msra.mxu0 0.0
    %699 = vmatprep.subr.mxu0 0.0
    %700 = vmatpush2.msra.mxu0 0.0
    %701 = vmatprep.subr.mxu0 0.0
    %702 = vmatpush2.msra.mxu0 0.0
    %703 = vmatprep.subr.mxu0 0.0
    %704 = vmatpush2.msra.mxu0 0.0
    %705 = vmatprep.mubr.f32.mxu0 0.0
    %706 = vmatmul.mubr.f32.gmra.mxu0 %v639
    %v707 = vpop.f32.mrf.mxu0
    %v708 = vadd.f32 0.0, %v707
    %v709 = vpop.f32.mrf.mxu0
    %710 = vdwg.mxu0
    %v711 = vadd.f32 %v636, %v708
    %v712 = vld [vmem:[#allocation5] sm:$0x3]
    %v713 = vtanh.pop %v634
    %v714 = vxor.u32 %v634, 2147483648
    %v715 = vmul.f32 %v714, 1.442695
    %v716 = vpow.pop %v715
    %v717 = vadd.f32 %v716, 1.0
    %v718 = vrcp.pop %v717
    %v719 = vmul.f32 1.0, %v718
    %v720 = vsel %vm243, %v713, %v719
    %722 = vrot.lane.b32.xlu0 %v712, 32
    %v723 = vpop.permute.xlu0 %722
    %v725 = vmul.f32 %v720, %v723
    %727 = vrot.lane.b32.xlu0 %v720, 64
    %v728 = vpop.permute.xlu0 %727
    %v730 = vmul.f32 %v720, %v728
    %732 = vrot.lane.b32.xlu0 %v730, 32
    %v733 = vpop.permute.xlu0 %732
    %v735 = vadd.f32 %v725, %v733
    %v736 = vtanh.pop %v735
    %738 = vrot.lane.b32.xlu0 %v736, 64
    %v739 = vpop.permute.xlu0 %738
    %v741 = vmul.f32 %v720, %v739
    %v742 = vld [vmem:[%s266] sm:$0x3]
    %v743 = vtanh.pop %v711
    %v744 = vxor.u32 %v711, 2147483648
    %v745 = vmul.f32 %v744, 1.442695
    %v746 = vpow.pop %v745
    %v747 = vadd.f32 %v746, 1.0
    %v748 = vrcp.pop %v747
    %v749 = vmul.f32 1.0, %v748
    %v750 = vsel %vm243, %v743, %v749
    %752 = vrot.lane.b32.xlu0 %v742, 32
    %v753 = vpop.permute.xlu0 %752
    %v755 = vmul.f32 %v750, %v753
    %757 = vrot.lane.b32.xlu0 %v750, 64
    %v758 = vpop.permute.xlu0 %757
    %v760 = vmul.f32 %v750, %v758
    %762 = vrot.lane.b32.xlu0 %v760, 32
    %v763 = vpop.permute.xlu0 %762
    %v765 = vadd.f32 %v755, %v763
    %v766 = vtanh.pop %v765
    %768 = vrot.lane.b32.xlu0 %v766, 64
    %v769 = vpop.permute.xlu0 %768
    %v771 = vmul.f32 %v750, %v769
    %773 = vrot.lane.b32.xlu0 %v741, 32
    %v774 = vpop.permute.xlu0 %773
    %776 = vst.msk [vmem:[#allocation4] sm:$0x3] %vm60, %v774
    %778 = vrot.lane.b32.xlu0 %v771, 32
    %v779 = vpop.permute.xlu0 %778
    %781 = vst.msk [vmem:[%s158] sm:$0x3] %vm60, %v779
    %783 = vrot.lane.b32.xlu0 %v735, 96
    %v784 = vpop.permute.xlu0 %783
    %786 = vst.msk [vmem:[#allocation5] sm:$0x3] %vm60, %v784
    %788 = vrot.lane.b32.xlu0 %v765, 96
    %v789 = vpop.permute.xlu0 %788
    %791 = vst.msk [vmem:[%s266] sm:$0x3] %vm60, %v789
    %s792 = scalar_lea.vmem [#allocation2], 4
    %793 = vst.msk [vmem:[%s792] sm:$0x3] %vm60, %v774
    %s794 = scalar_lea.vmem [#allocation3], 10
    %795 = vst.msk [vmem:[%s794] sm:$0x3] %vm60, %v779
    %s796 = scalar_lea.vmem [#allocation6], 6
    %v797 = vld [vmem:[%s796] sm:$0x3]
    %v798 = vld [vmem:[#allocation4] sm:$0x3]
    %v800 = vsel %vm81, %v798, 0
    %802 = vmatprep.subr.mxu0 0.0
    %803 = vmatpush1.msra.mxu0 0.0
    %804 = vmatprep.subr.mxu0 0.0
    %805 = vmatpush1.msra.mxu0 0.0
    %806 = vmatprep.subr.mxu0 0.0
    %807 = vmatpush1.msra.mxu0 0.0
    %808 = vmatprep.subr.mxu0 0.0
    %809 = vmatpush1.msra.mxu0 0.0
    %810 = vmatprep.subr.mxu0 0.0
    %811 = vmatpush1.msra.mxu0 0.0
    %812 = vmatprep.subr.mxu0 0.0
    %813 = vmatpush1.msra.mxu0 0.0
    %814 = vmatprep.subr.mxu0 0.0
    %815 = vmatpush1.msra.mxu0 0.0
    %816 = vmatprep.subr.mxu0 0.0
    %817 = vmatpush1.msra.mxu0 0.0
    %818 = vmatprep.subr.mxu0 0.0
    %819 = vmatpush1.msra.mxu0 0.0
    %820 = vmatprep.subr.mxu0 0.0
    %821 = vmatpush1.msra.mxu0 0.0
    %822 = vmatprep.subr.mxu0 0.0
    %823 = vmatpush1.msra.mxu0 0.0
    %824 = vmatprep.subr.mxu0 0.0
    %825 = vmatpush1.msra.mxu0 0.0
    %826 = vmatprep.subr.mxu0 0.0
    %827 = vmatpush1.msra.mxu0 %v68
    %828 = vmatprep.subr.mxu0 0.0
    %829 = vmatpush1.msra.mxu0 %v67
    %830 = vmatprep.subr.mxu0 0.0
    %831 = vmatpush1.msra.mxu0 %v66
    %832 = vmatprep.subr.mxu0 0.0
    %833 = vmatpush1.msra.mxu0 %v65
    %834 = vmatprep.subr.mxu0 0.0
    %835 = vmatpush2.msra.mxu0 0.0
    %836 = vmatprep.subr.mxu0 0.0
    %837 = vmatpush2.msra.mxu0 0.0
    %838 = vmatprep.subr.mxu0 0.0
    %839 = vmatpush2.msra.mxu0 0.0
    %840 = vmatprep.subr.mxu0 0.0
    %841 = vmatpush2.msra.mxu0 0.0
    %842 = vmatprep.subr.mxu0 0.0
    %843 = vmatpush2.msra.mxu0 0.0
    %844 = vmatprep.subr.mxu0 0.0
    %845 = vmatpush2.msra.mxu0 0.0
    %846 = vmatprep.subr.mxu0 0.0
    %847 = vmatpush2.msra.mxu0 0.0
    %848 = vmatprep.subr.mxu0 0.0
    %849 = vmatpush2.msra.mxu0 0.0
    %850 = vmatprep.subr.mxu0 0.0
    %851 = vmatpush2.msra.mxu0 0.0
    %852 = vmatprep.subr.mxu0 0.0
    %853 = vmatpush2.msra.mxu0 0.0
    %854 = vmatprep.subr.mxu0 0.0
    %855 = vmatpush2.msra.mxu0 0.0
    %856 = vmatprep.subr.mxu0 0.0
    %857 = vmatpush2.msra.mxu0 0.0
    %858 = vmatprep.subr.mxu0 0.0
    %859 = vmatpush2.msra.mxu0 0.0
    %860 = vmatprep.subr.mxu0 0.0
    %861 = vmatpush2.msra.mxu0 0.0
    %862 = vmatprep.subr.mxu0 0.0
    %863 = vmatpush2.msra.mxu0 0.0
    %864 = vmatprep.subr.mxu0 0.0
    %865 = vmatpush2.msra.mxu0 0.0
    %866 = vmatprep.mubr.f32.mxu0 0.0
    %867 = vmatmul.mubr.f32.gmra.mxu0 %v800
    %v868 = vpop.f32.mrf.mxu0
    %v869 = vadd.f32 0.0, %v868
    %v870 = vpop.f32.mrf.mxu0
    %871 = vdwg.mxu0
    %v872 = vadd.f32 %v797, %v869
    %s873 = scalar_lea.vmem [#allocation9], 8
    %v874 = vld [vmem:[%s873] sm:$0x3]
    %v875 = vld [vmem:[%s158] sm:$0x3]
    %v877 = vsel %vm81, %v875, 0
    %879 = vmatprep.subr.mxu0 0.0
    %880 = vmatpush1.msra.mxu0 0.0
    %881 = vmatprep.subr.mxu0 0.0
    %882 = vmatpush1.msra.mxu0 0.0
    %883 = vmatprep.subr.mxu0 0.0
    %884 = vmatpush1.msra.mxu0 0.0
    %885 = vmatprep.subr.mxu0 0.0
    %886 = vmatpush1.msra.mxu0 0.0
    %887 = vmatprep.subr.mxu0 0.0
    %888 = vmatpush1.msra.mxu0 0.0
    %889 = vmatprep.subr.mxu0 0.0
    %890 = vmatpush1.msra.mxu0 0.0
    %891 = vmatprep.subr.mxu0 0.0
    %892 = vmatpush1.msra.mxu0 0.0
    %893 = vmatprep.subr.mxu0 0.0
    %894 = vmatpush1.msra.mxu0 0.0
    %895 = vmatprep.subr.mxu0 0.0
    %896 = vmatpush1.msra.mxu0 0.0
    %897 = vmatprep.subr.mxu0 0.0
    %898 = vmatpush1.msra.mxu0 0.0
    %899 = vmatprep.subr.mxu0 0.0
    %900 = vmatpush1.msra.mxu0 0.0
    %901 = vmatprep.subr.mxu0 0.0
    %902 = vmatpush1.msra.mxu0 0.0
    %903 = vmatprep.subr.mxu0 0.0
    %904 = vmatpush1.msra.mxu0 %v73
    %905 = vmatprep.subr.mxu0 0.0
    %906 = vmatpush1.msra.mxu0 %v72
    %907 = vmatprep.subr.mxu0 0.0
    %908 = vmatpush1.msra.mxu0 %v71
    %909 = vmatprep.subr.mxu0 0.0
    %910 = vmatpush1.msra.mxu0 %v70
    %911 = vmatprep.subr.mxu0 0.0
    %912 = vmatpush2.msra.mxu0 0.0
    %913 = vmatprep.subr.mxu0 0.0
    %914 = vmatpush2.msra.mxu0 0.0
    %915 = vmatprep.subr.mxu0 0.0
    %916 = vmatpush2.msra.mxu0 0.0
    %917 = vmatprep.subr.mxu0 0.0
    %918 = vmatpush2.msra.mxu0 0.0
    %919 = vmatprep.subr.mxu0 0.0
    %920 = vmatpush2.msra.mxu0 0.0
    %921 = vmatprep.subr.mxu0 0.0
    %922 = vmatpush2.msra.mxu0 0.0
    %923 = vmatprep.subr.mxu0 0.0
    %924 = vmatpush2.msra.mxu0 0.0
    %925 = vmatprep.subr.mxu0 0.0
    %926 = vmatpush2.msra.mxu0 0.0
    %927 = vmatprep.subr.mxu0 0.0
    %928 = vmatpush2.msra.mxu0 0.0
    %929 = vmatprep.subr.mxu0 0.0
    %930 = vmatpush2.msra.mxu0 0.0
    %931 = vmatprep.subr.mxu0 0.0
    %932 = vmatpush2.msra.mxu0 0.0
    %933 = vmatprep.subr.mxu0 0.0
    %934 = vmatpush2.msra.mxu0 0.0
    %935 = vmatprep.subr.mxu0 0.0
    %936 = vmatpush2.msra.mxu0 0.0
    %937 = vmatprep.subr.mxu0 0.0
    %938 = vmatpush2.msra.mxu0 0.0
    %939 = vmatprep.subr.mxu0 0.0
    %940 = vmatpush2.msra.mxu0 0.0
    %941 = vmatprep.subr.mxu0 0.0
    %942 = vmatpush2.msra.mxu0 0.0
    %943 = vmatprep.mubr.f32.mxu0 0.0
    %944 = vmatmul.mubr.f32.gmra.mxu0 %v877
    %v945 = vpop.f32.mrf.mxu0
    %v946 = vadd.f32 0.0, %v945
    %v947 = vpop.f32.mrf.mxu0
    %948 = vdwg.mxu0
    %v949 = vadd.f32 %v874, %v946
    %v950 = vld [vmem:[#allocation5] sm:$0x3]
    %v951 = vtanh.pop %v872
    %v952 = vxor.u32 %v872, 2147483648
    %v953 = vmul.f32 %v952, 1.442695
    %v954 = vpow.pop %v953
    %v955 = vadd.f32 %v954, 1.0
    %v956 = vrcp.pop %v955
    %v957 = vmul.f32 1.0, %v956
    %v958 = vsel %vm243, %v951, %v957
    %960 = vrot.lane.b32.xlu0 %v950, 32
    %v961 = vpop.permute.xlu0 %960
    %v963 = vmul.f32 %v958, %v961
    %965 = vrot.lane.b32.xlu0 %v958, 64
    %v966 = vpop.permute.xlu0 %965
    %v968 = vmul.f32 %v958, %v966
    %970 = vrot.lane.b32.xlu0 %v968, 32
    %v971 = vpop.permute.xlu0 %970
    %v973 = vadd.f32 %v963, %v971
    %v974 = vtanh.pop %v973
    %976 = vrot.lane.b32.xlu0 %v974, 64
    %v977 = vpop.permute.xlu0 %976
    %v979 = vmul.f32 %v958, %v977
    %v980 = vld [vmem:[%s266] sm:$0x3]
    %v981 = vtanh.pop %v949
    %v982 = vxor.u32 %v949, 2147483648
    %v983 = vmul.f32 %v982, 1.442695
    %v984 = vpow.pop %v983
    %v985 = vadd.f32 %v984, 1.0
    %v986 = vrcp.pop %v985
    %v987 = vmul.f32 1.0, %v986
    %v988 = vsel %vm243, %v981, %v987
    %990 = vrot.lane.b32.xlu0 %v980, 32
    %v991 = vpop.permute.xlu0 %990
    %v993 = vmul.f32 %v988, %v991
    %995 = vrot.lane.b32.xlu0 %v988, 64
    %v996 = vpop.permute.xlu0 %995
    %v998 = vmul.f32 %v988, %v996
    %1000 = vrot.lane.b32.xlu0 %v998, 32
    %v1001 = vpop.permute.xlu0 %1000
    %v1003 = vadd.f32 %v993, %v1001
    %v1004 = vtanh.pop %v1003
    %1006 = vrot.lane.b32.xlu0 %v1004, 64
    %v1007 = vpop.permute.xlu0 %1006
    %v1009 = vmul.f32 %v988, %v1007
    %1011 = vrot.lane.b32.xlu0 %v979, 32
    %v1012 = vpop.permute.xlu0 %1011
    %1014 = vst.msk [vmem:[#allocation4] sm:$0x3] %vm60, %v1012
    %1016 = vrot.lane.b32.xlu0 %v1009, 32
    %v1017 = vpop.permute.xlu0 %1016
    %1019 = vst.msk [vmem:[%s158] sm:$0x3] %vm60, %v1017
    %1021 = vrot.lane.b32.xlu0 %v973, 96
    %v1022 = vpop.permute.xlu0 %1021
    %1024 = vst.msk [vmem:[#allocation5] sm:$0x3] %vm60, %v1022
    %1026 = vrot.lane.b32.xlu0 %v1003, 96
    %v1027 = vpop.permute.xlu0 %1026
    %1029 = vst.msk [vmem:[%s266] sm:$0x3] %vm60, %v1027
    %s1030 = scalar_lea.vmem [#allocation2], 6
    %1031 = vst.msk [vmem:[%s1030] sm:$0x3] %vm60, %v1012
    %s1032 = scalar_lea.vmem [#allocation3], 8
    %1033 = vst.msk [vmem:[%s1032] sm:$0x3] %vm60, %v1017
    %s1034 = scalar_lea.vmem [#allocation6], 8
    %v1035 = vld [vmem:[%s1034] sm:$0x3]
    %v1036 = vld [vmem:[#allocation4] sm:$0x3]
    %v1038 = vsel %vm81, %v1036, 0
    %1040 = vmatprep.subr.mxu0 0.0
    %1041 = vmatpush1.msra.mxu0 0.0
    %1042 = vmatprep.subr.mxu0 0.0
    %1043 = vmatpush1.msra.mxu0 0.0
    %1044 = vmatprep.subr.mxu0 0.0
    %1045 = vmatpush1.msra.mxu0 0.0
    %1046 = vmatprep.subr.mxu0 0.0
    %1047 = vmatpush1.msra.mxu0 0.0
    %1048 = vmatprep.subr.mxu0 0.0
    %1049 = vmatpush1.msra.mxu0 0.0
    %1050 = vmatprep.subr.mxu0 0.0
    %1051 = vmatpush1.msra.mxu0 0.0
    %1052 = vmatprep.subr.mxu0 0.0
    %1053 = vmatpush1.msra.mxu0 0.0
    %1054 = vmatprep.subr.mxu0 0.0
    %1055 = vmatpush1.msra.mxu0 0.0
    %1056 = vmatprep.subr.mxu0 0.0
    %1057 = vmatpush1.msra.mxu0 0.0
    %1058 = vmatprep.subr.mxu0 0.0
    %1059 = vmatpush1.msra.mxu0 0.0
    %1060 = vmatprep.subr.mxu0 0.0
    %1061 = vmatpush1.msra.mxu0 0.0
    %1062 = vmatprep.subr.mxu0 0.0
    %1063 = vmatpush1.msra.mxu0 0.0
    %1064 = vmatprep.subr.mxu0 0.0
    %1065 = vmatpush1.msra.mxu0 %v68
    %1066 = vmatprep.subr.mxu0 0.0
    %1067 = vmatpush1.msra.mxu0 %v67
    %1068 = vmatprep.subr.mxu0 0.0
    %1069 = vmatpush1.msra.mxu0 %v66
    %1070 = vmatprep.subr.mxu0 0.0
    %1071 = vmatpush1.msra.mxu0 %v65
    %1072 = vmatprep.subr.mxu0 0.0
    %1073 = vmatpush2.msra.mxu0 0.0
    %1074 = vmatprep.subr.mxu0 0.0
    %1075 = vmatpush2.msra.mxu0 0.0
    %1076 = vmatprep.subr.mxu0 0.0
    %1077 = vmatpush2.msra.mxu0 0.0
    %1078 = vmatprep.subr.mxu0 0.0
    %1079 = vmatpush2.msra.mxu0 0.0
    %1080 = vmatprep.subr.mxu0 0.0
    %1081 = vmatpush2.msra.mxu0 0.0
    %1082 = vmatprep.subr.mxu0 0.0
    %1083 = vmatpush2.msra.mxu0 0.0
    %1084 = vmatprep.subr.mxu0 0.0
    %1085 = vmatpush2.msra.mxu0 0.0
    %1086 = vmatprep.subr.mxu0 0.0
    %1087 = vmatpush2.msra.mxu0 0.0
    %1088 = vmatprep.subr.mxu0 0.0
    %1089 = vmatpush2.msra.mxu0 0.0
    %1090 = vmatprep.subr.mxu0 0.0
    %1091 = vmatpush2.msra.mxu0 0.0
    %1092 = vmatprep.subr.mxu0 0.0
    %1093 = vmatpush2.msra.mxu0 0.0
    %1094 = vmatprep.subr.mxu0 0.0
    %1095 = vmatpush2.msra.mxu0 0.0
    %1096 = vmatprep.subr.mxu0 0.0
    %1097 = vmatpush2.msra.mxu0 0.0
    %1098 = vmatprep.subr.mxu0 0.0
    %1099 = vmatpush2.msra.mxu0 0.0
    %1100 = vmatprep.subr.mxu0 0.0
    %1101 = vmatpush2.msra.mxu0 0.0
    %1102 = vmatprep.subr.mxu0 0.0
    %1103 = vmatpush2.msra.mxu0 0.0
    %1104 = vmatprep.mubr.f32.mxu0 0.0
    %1105 = vmatmul.mubr.f32.gmra.mxu0 %v1038
    %v1106 = vpop.f32.mrf.mxu0
    %v1107 = vadd.f32 0.0, %v1106
    %v1108 = vpop.f32.mrf.mxu0
    %1109 = vdwg.mxu0
    %v1110 = vadd.f32 %v1035, %v1107
    %s1111 = scalar_lea.vmem [#allocation9], 6
    %v1112 = vld [vmem:[%s1111] sm:$0x3]
    %v1113 = vld [vmem:[%s158] sm:$0x3]
    %v1115 = vsel %vm81, %v1113, 0
    %1117 = vmatprep.subr.mxu0 0.0
    %1118 = vmatpush1.msra.mxu0 0.0
    %1119 = vmatprep.subr.mxu0 0.0
    %1120 = vmatpush1.msra.mxu0 0.0
    %1121 = vmatprep.subr.mxu0 0.0
    %1122 = vmatpush1.msra.mxu0 0.0
    %1123 = vmatprep.subr.mxu0 0.0
    %1124 = vmatpush1.msra.mxu0 0.0
    %1125 = vmatprep.subr.mxu0 0.0
    %1126 = vmatpush1.msra.mxu0 0.0
    %1127 = vmatprep.subr.mxu0 0.0
    %1128 = vmatpush1.msra.mxu0 0.0
    %1129 = vmatprep.subr.mxu0 0.0
    %1130 = vmatpush1.msra.mxu0 0.0
    %1131 = vmatprep.subr.mxu0 0.0
    %1132 = vmatpush1.msra.mxu0 0.0
    %1133 = vmatprep.subr.mxu0 0.0
    %1134 = vmatpush1.msra.mxu0 0.0
    %1135 = vmatprep.subr.mxu0 0.0
    %1136 = vmatpush1.msra.mxu0 0.0
    %1137 = vmatprep.subr.mxu0 0.0
    %1138 = vmatpush1.msra.mxu0 0.0
    %1139 = vmatprep.subr.mxu0 0.0
    %1140 = vmatpush1.msra.mxu0 0.0
    %1141 = vmatprep.subr.mxu0 0.0
    %1142 = vmatpush1.msra.mxu0 %v73
    %1143 = vmatprep.subr.mxu0 0.0
    %1144 = vmatpush1.msra.mxu0 %v72
    %1145 = vmatprep.subr.mxu0 0.0
    %1146 = vmatpush1.msra.mxu0 %v71
    %1147 = vmatprep.subr.mxu0 0.0
    %1148 = vmatpush1.msra.mxu0 %v70
    %1149 = vmatprep.subr.mxu0 0.0
    %1150 = vmatpush2.msra.mxu0 0.0
    %1151 = vmatprep.subr.mxu0 0.0
    %1152 = vmatpush2.msra.mxu0 0.0
    %1153 = vmatprep.subr.mxu0 0.0
    %1154 = vmatpush2.msra.mxu0 0.0
    %1155 = vmatprep.subr.mxu0 0.0
    %1156 = vmatpush2.msra.mxu0 0.0
    %1157 = vmatprep.subr.mxu0 0.0
    %1158 = vmatpush2.msra.mxu0 0.0
    %1159 = vmatprep.subr.mxu0 0.0
    %1160 = vmatpush2.msra.mxu0 0.0
    %1161 = vmatprep.subr.mxu0 0.0
    %1162 = vmatpush2.msra.mxu0 0.0
    %1163 = vmatprep.subr.mxu0 0.0
    %1164 = vmatpush2.msra.mxu0 0.0
    %1165 = vmatprep.subr.mxu0 0.0
    %1166 = vmatpush2.msra.mxu0 0.0
    %1167 = vmatprep.subr.mxu0 0.0
    %1168 = vmatpush2.msra.mxu0 0.0
    %1169 = vmatprep.subr.mxu0 0.0
    %1170 = vmatpush2.msra.mxu0 0.0
    %1171 = vmatprep.subr.mxu0 0.0
    %1172 = vmatpush2.msra.mxu0 0.0
    %1173 = vmatprep.subr.mxu0 0.0
    %1174 = vmatpush2.msra.mxu0 0.0
    %1175 = vmatprep.subr.mxu0 0.0
    %1176 = vmatpush2.msra.mxu0 0.0
    %1177 = vmatprep.subr.mxu0 0.0
    %1178 = vmatpush2.msra.mxu0 0.0
    %1179 = vmatprep.subr.mxu0 0.0
    %1180 = vmatpush2.msra.mxu0 0.0
    %1181 = vmatprep.mubr.f32.mxu0 0.0
    %1182 = vmatmul.mubr.f32.gmra.mxu0 %v1115
    %v1183 = vpop.f32.mrf.mxu0
    %v1184 = vadd.f32 0.0, %v1183
    %v1185 = vpop.f32.mrf.mxu0
    %1186 = vdwg.mxu0
    %v1187 = vadd.f32 %v1112, %v1184
    %v1188 = vld [vmem:[#allocation5] sm:$0x3]
    %v1189 = vtanh.pop %v1110
    %v1190 = vxor.u32 %v1110, 2147483648
    %v1191 = vmul.f32 %v1190, 1.442695
    %v1192 = vpow.pop %v1191
    %v1193 = vadd.f32 %v1192, 1.0
    %v1194 = vrcp.pop %v1193
    %v1195 = vmul.f32 1.0, %v1194
    %v1196 = vsel %vm243, %v1189, %v1195
    %1198 = vrot.lane.b32.xlu0 %v1188, 32
    %v1199 = vpop.permute.xlu0 %1198
    %v1201 = vmul.f32 %v1196, %v1199
    %1203 = vrot.lane.b32.xlu0 %v1196, 64
    %v1204 = vpop.permute.xlu0 %1203
    %v1206 = vmul.f32 %v1196, %v1204
    %1208 = vrot.lane.b32.xlu0 %v1206, 32
    %v1209 = vpop.permute.xlu0 %1208
    %v1211 = vadd.f32 %v1201, %v1209
    %v1212 = vtanh.pop %v1211
    %1214 = vrot.lane.b32.xlu0 %v1212, 64
    %v1215 = vpop.permute.xlu0 %1214
    %v1217 = vmul.f32 %v1196, %v1215
    %v1218 = vld [vmem:[%s266] sm:$0x3]
    %v1219 = vtanh.pop %v1187
    %v1220 = vxor.u32 %v1187, 2147483648
    %v1221 = vmul.f32 %v1220, 1.442695
    %v1222 = vpow.pop %v1221
    %v1223 = vadd.f32 %v1222, 1.0
    %v1224 = vrcp.pop %v1223
    %v1225 = vmul.f32 1.0, %v1224
    %v1226 = vsel %vm243, %v1219, %v1225
    %1228 = vrot.lane.b32.xlu0 %v1218, 32
    %v1229 = vpop.permute.xlu0 %1228
    %v1231 = vmul.f32 %v1226, %v1229
    %1233 = vrot.lane.b32.xlu0 %v1226, 64
    %v1234 = vpop.permute.xlu0 %1233
    %v1236 = vmul.f32 %v1226, %v1234
    %1238 = vrot.lane.b32.xlu0 %v1236, 32
    %v1239 = vpop.permute.xlu0 %1238
    %v1241 = vadd.f32 %v1231, %v1239
    %v1242 = vtanh.pop %v1241
    %1244 = vrot.lane.b32.xlu0 %v1242, 64
    %v1245 = vpop.permute.xlu0 %1244
    %v1247 = vmul.f32 %v1226, %v1245
    %1249 = vrot.lane.b32.xlu0 %v1217, 32
    %v1250 = vpop.permute.xlu0 %1249
    %1252 = vst.msk [vmem:[#allocation4] sm:$0x3] %vm60, %v1250
    %1254 = vrot.lane.b32.xlu0 %v1247, 32
    %v1255 = vpop.permute.xlu0 %1254
    %1257 = vst.msk [vmem:[%s158] sm:$0x3] %vm60, %v1255
    %1259 = vrot.lane.b32.xlu0 %v1211, 96
    %v1260 = vpop.permute.xlu0 %1259
    %1262 = vst.msk [vmem:[#allocation5] sm:$0x3] %vm60, %v1260
    %1264 = vrot.lane.b32.xlu0 %v1241, 96
    %v1265 = vpop.permute.xlu0 %1264
    %1267 = vst.msk [vmem:[%s266] sm:$0x3] %vm60, %v1265
    %s1268 = scalar_lea.vmem [#allocation2], 8
    %1269 = vst.msk [vmem:[%s1268] sm:$0x3] %vm60, %v1250
    %s1270 = scalar_lea.vmem [#allocation3], 6
    %1271 = vst.msk [vmem:[%s1270] sm:$0x3] %vm60, %v1255
    %s1272 = scalar_lea.vmem [#allocation6], 10
    %v1273 = vld [vmem:[%s1272] sm:$0x3]
    %v1274 = vld [vmem:[#allocation4] sm:$0x3]
    %v1276 = vsel %vm81, %v1274, 0
    %1278 = vmatprep.subr.mxu0 0.0
    %1279 = vmatpush1.msra.mxu0 0.0
    %1280 = vmatprep.subr.mxu0 0.0
    %1281 = vmatpush1.msra.mxu0 0.0
    %1282 = vmatprep.subr.mxu0 0.0
    %1283 = vmatpush1.msra.mxu0 0.0
    %1284 = vmatprep.subr.mxu0 0.0
    %1285 = vmatpush1.msra.mxu0 0.0
    %1286 = vmatprep.subr.mxu0 0.0
    %1287 = vmatpush1.msra.mxu0 0.0
    %1288 = vmatprep.subr.mxu0 0.0
    %1289 = vmatpush1.msra.mxu0 0.0
    %1290 = vmatprep.subr.mxu0 0.0
    %1291 = vmatpush1.msra.mxu0 0.0
    %1292 = vmatprep.subr.mxu0 0.0
    %1293 = vmatpush1.msra.mxu0 0.0
    %1294 = vmatprep.subr.mxu0 0.0
    %1295 = vmatpush1.msra.mxu0 0.0
    %1296 = vmatprep.subr.mxu0 0.0
    %1297 = vmatpush1.msra.mxu0 0.0
    %1298 = vmatprep.subr.mxu0 0.0
    %1299 = vmatpush1.msra.mxu0 0.0
    %1300 = vmatprep.subr.mxu0 0.0
    %1301 = vmatpush1.msra.mxu0 0.0
    %1302 = vmatprep.subr.mxu0 0.0
    %1303 = vmatpush1.msra.mxu0 %v68
    %1304 = vmatprep.subr.mxu0 0.0
    %1305 = vmatpush1.msra.mxu0 %v67
    %1306 = vmatprep.subr.mxu0 0.0
    %1307 = vmatpush1.msra.mxu0 %v66
    %1308 = vmatprep.subr.mxu0 0.0
    %1309 = vmatpush1.msra.mxu0 %v65
    %1310 = vmatprep.subr.mxu0 0.0
    %1311 = vmatpush2.msra.mxu0 0.0
    %1312 = vmatprep.subr.mxu0 0.0
    %1313 = vmatpush2.msra.mxu0 0.0
    %1314 = vmatprep.subr.mxu0 0.0
    %1315 = vmatpush2.msra.mxu0 0.0
    %1316 = vmatprep.subr.mxu0 0.0
    %1317 = vmatpush2.msra.mxu0 0.0
    %1318 = vmatprep.subr.mxu0 0.0
    %1319 = vmatpush2.msra.mxu0 0.0
    %1320 = vmatprep.subr.mxu0 0.0
    %1321 = vmatpush2.msra.mxu0 0.0
    %1322 = vmatprep.subr.mxu0 0.0
    %1323 = vmatpush2.msra.mxu0 0.0
    %1324 = vmatprep.subr.mxu0 0.0
    %1325 = vmatpush2.msra.mxu0 0.0
    %1326 = vmatprep.subr.mxu0 0.0
    %1327 = vmatpush2.msra.mxu0 0.0
    %1328 = vmatprep.subr.mxu0 0.0
    %1329 = vmatpush2.msra.mxu0 0.0
    %1330 = vmatprep.subr.mxu0 0.0
    %1331 = vmatpush2.msra.mxu0 0.0
    %1332 = vmatprep.subr.mxu0 0.0
    %1333 = vmatpush2.msra.mxu0 0.0
    %1334 = vmatprep.subr.mxu0 0.0
    %1335 = vmatpush2.msra.mxu0 0.0
    %1336 = vmatprep.subr.mxu0 0.0
    %1337 = vmatpush2.msra.mxu0 0.0
    %1338 = vmatprep.subr.mxu0 0.0
    %1339 = vmatpush2.msra.mxu0 0.0
    %1340 = vmatprep.subr.mxu0 0.0
    %1341 = vmatpush2.msra.mxu0 0.0
    %1342 = vmatprep.mubr.f32.mxu0 0.0
    %1343 = vmatmul.mubr.f32.gmra.mxu0 %v1276
    %v1344 = vpop.f32.mrf.mxu0
    %v1345 = vadd.f32 0.0, %v1344
    %v1346 = vpop.f32.mrf.mxu0
    %1347 = vdwg.mxu0
    %v1348 = vadd.f32 %v1273, %v1345
    %s1349 = scalar_lea.vmem [#allocation9], 4
    %v1350 = vld [vmem:[%s1349] sm:$0x3]
    %v1351 = vld [vmem:[%s158] sm:$0x3]
    %v1353 = vsel %vm81, %v1351, 0
    %1355 = vmatprep.subr.mxu0 0.0
    %1356 = vmatpush1.msra.mxu0 0.0
    %1357 = vmatprep.subr.mxu0 0.0
    %1358 = vmatpush1.msra.mxu0 0.0
    %1359 = vmatprep.subr.mxu0 0.0
    %1360 = vmatpush1.msra.mxu0 0.0
    %1361 = vmatprep.subr.mxu0 0.0
    %1362 = vmatpush1.msra.mxu0 0.0
    %1363 = vmatprep.subr.mxu0 0.0
    %1364 = vmatpush1.msra.mxu0 0.0
    %1365 = vmatprep.subr.mxu0 0.0
    %1366 = vmatpush1.msra.mxu0 0.0
    %1367 = vmatprep.subr.mxu0 0.0
    %1368 = vmatpush1.msra.mxu0 0.0
    %1369 = vmatprep.subr.mxu0 0.0
    %1370 = vmatpush1.msra.mxu0 0.0
    %1371 = vmatprep.subr.mxu0 0.0
    %1372 = vmatpush1.msra.mxu0 0.0
    %1373 = vmatprep.subr.mxu0 0.0
    %1374 = vmatpush1.msra.mxu0 0.0
    %1375 = vmatprep.subr.mxu0 0.0
    %1376 = vmatpush1.msra.mxu0 0.0
    %1377 = vmatprep.subr.mxu0 0.0
    %1378 = vmatpush1.msra.mxu0 0.0
    %1379 = vmatprep.subr.mxu0 0.0
    %1380 = vmatpush1.msra.mxu0 %v73
    %1381 = vmatprep.subr.mxu0 0.0
    %1382 = vmatpush1.msra.mxu0 %v72
    %1383 = vmatprep.subr.mxu0 0.0
    %1384 = vmatpush1.msra.mxu0 %v71
    %1385 = vmatprep.subr.mxu0 0.0
    %1386 = vmatpush1.msra.mxu0 %v70
    %1387 = vmatprep.subr.mxu0 0.0
    %1388 = vmatpush2.msra.mxu0 0.0
    %1389 = vmatprep.subr.mxu0 0.0
    %1390 = vmatpush2.msra.mxu0 0.0
    %1391 = vmatprep.subr.mxu0 0.0
    %1392 = vmatpush2.msra.mxu0 0.0
    %1393 = vmatprep.subr.mxu0 0.0
    %1394 = vmatpush2.msra.mxu0 0.0
    %1395 = vmatprep.subr.mxu0 0.0
    %1396 = vmatpush2.msra.mxu0 0.0
    %1397 = vmatprep.subr.mxu0 0.0
    %1398 = vmatpush2.msra.mxu0 0.0
    %1399 = vmatprep.subr.mxu0 0.0
    %1400 = vmatpush2.msra.mxu0 0.0
    %1401 = vmatprep.subr.mxu0 0.0
    %1402 = vmatpush2.msra.mxu0 0.0
    %1403 = vmatprep.subr.mxu0 0.0
    %1404 = vmatpush2.msra.mxu0 0.0
    %1405 = vmatprep.subr.mxu0 0.0
    %1406 = vmatpush2.msra.mxu0 0.0
    %1407 = vmatprep.subr.mxu0 0.0
    %1408 = vmatpush2.msra.mxu0 0.0
    %1409 = vmatprep.subr.mxu0 0.0
    %1410 = vmatpush2.msra.mxu0 0.0
    %1411 = vmatprep.subr.mxu0 0.0
    %1412 = vmatpush2.msra.mxu0 0.0
    %1413 = vmatprep.subr.mxu0 0.0
    %1414 = vmatpush2.msra.mxu0 0.0
    %1415 = vmatprep.subr.mxu0 0.0
    %1416 = vmatpush2.msra.mxu0 0.0
    %1417 = vmatprep.subr.mxu0 0.0
    %1418 = vmatpush2.msra.mxu0 0.0
    %1419 = vmatprep.mubr.f32.mxu0 0.0
    %1420 = vmatmul.mubr.f32.gmra.mxu0 %v1353
    %v1421 = vpop.f32.mrf.mxu0
    %v1422 = vadd.f32 0.0, %v1421
    %v1423 = vpop.f32.mrf.mxu0
    %1424 = vdwg.mxu0
    %v1425 = vadd.f32 %v1350, %v1422
    %v1426 = vld [vmem:[#allocation5] sm:$0x3]
    %v1427 = vtanh.pop %v1348
    %v1428 = vxor.u32 %v1348, 2147483648
    %v1429 = vmul.f32 %v1428, 1.442695
    %v1430 = vpow.pop %v1429
    %v1431 = vadd.f32 %v1430, 1.0
    %v1432 = vrcp.pop %v1431
    %v1433 = vmul.f32 1.0, %v1432
    %v1434 = vsel %vm243, %v1427, %v1433
    %1436 = vrot.lane.b32.xlu0 %v1426, 32
    %v1437 = vpop.permute.xlu0 %1436
    %v1439 = vmul.f32 %v1434, %v1437
    %1441 = vrot.lane.b32.xlu0 %v1434, 64
    %v1442 = vpop.permute.xlu0 %1441
    %v1444 = vmul.f32 %v1434, %v1442
    %1446 = vrot.lane.b32.xlu0 %v1444, 32
    %v1447 = vpop.permute.xlu0 %1446
    %v1449 = vadd.f32 %v1439, %v1447
    %v1450 = vtanh.pop %v1449
    %1452 = vrot.lane.b32.xlu0 %v1450, 64
    %v1453 = vpop.permute.xlu0 %1452
    %v1455 = vmul.f32 %v1434, %v1453
    %v1456 = vld [vmem:[%s266] sm:$0x3]
    %v1457 = vtanh.pop %v1425
    %v1458 = vxor.u32 %v1425, 2147483648
    %v1459 = vmul.f32 %v1458, 1.442695
    %v1460 = vpow.pop %v1459
    %v1461 = vadd.f32 %v1460, 1.0
    %v1462 = vrcp.pop %v1461
    %v1463 = vmul.f32 1.0, %v1462
    %v1464 = vsel %vm243, %v1457, %v1463
    %1466 = vrot.lane.b32.xlu0 %v1456, 32
    %v1467 = vpop.permute.xlu0 %1466
    %v1469 = vmul.f32 %v1464, %v1467
    %1471 = vrot.lane.b32.xlu0 %v1464, 64
    %v1472 = vpop.permute.xlu0 %1471
    %v1474 = vmul.f32 %v1464, %v1472
    %1476 = vrot.lane.b32.xlu0 %v1474, 32
    %v1477 = vpop.permute.xlu0 %1476
    %v1479 = vadd.f32 %v1469, %v1477
    %v1480 = vtanh.pop %v1479
    %1482 = vrot.lane.b32.xlu0 %v1480, 64
    %v1483 = vpop.permute.xlu0 %1482
    %v1485 = vmul.f32 %v1464, %v1483
    %1487 = vrot.lane.b32.xlu0 %v1455, 32
    %v1488 = vpop.permute.xlu0 %1487
    %1490 = vst.msk [vmem:[#allocation4] sm:$0x3] %vm60, %v1488
    %1492 = vrot.lane.b32.xlu0 %v1485, 32
    %v1493 = vpop.permute.xlu0 %1492
    %1495 = vst.msk [vmem:[%s158] sm:$0x3] %vm60, %v1493
    %1497 = vrot.lane.b32.xlu0 %v1449, 96
    %v1498 = vpop.permute.xlu0 %1497
    %1500 = vst.msk [vmem:[#allocation5] sm:$0x3] %vm60, %v1498
    %1502 = vrot.lane.b32.xlu0 %v1479, 96
    %v1503 = vpop.permute.xlu0 %1502
    %1505 = vst.msk [vmem:[%s266] sm:$0x3] %vm60, %v1503
    %s1506 = scalar_lea.vmem [#allocation2], 10
    %1507 = vst.msk [vmem:[%s1506] sm:$0x3] %vm60, %v1488
    %s1508 = scalar_lea.vmem [#allocation3], 4
    %1509 = vst.msk [vmem:[%s1508] sm:$0x3] %vm60, %v1493
    %s1510 = scalar_lea.vmem [#allocation6], 12
    %v1511 = vld [vmem:[%s1510] sm:$0x3]
    %v1512 = vld [vmem:[#allocation4] sm:$0x3]
    %v1514 = vsel %vm81, %v1512, 0
    %1516 = vmatprep.subr.mxu0 0.0
    %1517 = vmatpush1.msra.mxu0 0.0
    %1518 = vmatprep.subr.mxu0 0.0
    %1519 = vmatpush1.msra.mxu0 0.0
    %1520 = vmatprep.subr.mxu0 0.0
    %1521 = vmatpush1.msra.mxu0 0.0
    %1522 = vmatprep.subr.mxu0 0.0
    %1523 = vmatpush1.msra.mxu0 0.0
    %1524 = vmatprep.subr.mxu0 0.0
    %1525 = vmatpush1.msra.mxu0 0.0
    %1526 = vmatprep.subr.mxu0 0.0
    %1527 = vmatpush1.msra.mxu0 0.0
    %1528 = vmatprep.subr.mxu0 0.0
    %1529 = vmatpush1.msra.mxu0 0.0
    %1530 = vmatprep.subr.mxu0 0.0
    %1531 = vmatpush1.msra.mxu0 0.0
    %1532 = vmatprep.subr.mxu0 0.0
    %1533 = vmatpush1.msra.mxu0 0.0
    %1534 = vmatprep.subr.mxu0 0.0
    %1535 = vmatpush1.msra.mxu0 0.0
    %1536 = vmatprep.subr.mxu0 0.0
    %1537 = vmatpush1.msra.mxu0 0.0
    %1538 = vmatprep.subr.mxu0 0.0
    %1539 = vmatpush1.msra.mxu0 0.0
    %1540 = vmatprep.subr.mxu0 0.0
    %1541 = vmatpush1.msra.mxu0 %v68
    %1542 = vmatprep.subr.mxu0 0.0
    %1543 = vmatpush1.msra.mxu0 %v67
    %1544 = vmatprep.subr.mxu0 0.0
    %1545 = vmatpush1.msra.mxu0 %v66
    %1546 = vmatprep.subr.mxu0 0.0
    %1547 = vmatpush1.msra.mxu0 %v65
    %1548 = vmatprep.subr.mxu0 0.0
    %1549 = vmatpush2.msra.mxu0 0.0
    %1550 = vmatprep.subr.mxu0 0.0
    %1551 = vmatpush2.msra.mxu0 0.0
    %1552 = vmatprep.subr.mxu0 0.0
    %1553 = vmatpush2.msra.mxu0 0.0
    %1554 = vmatprep.subr.mxu0 0.0
    %1555 = vmatpush2.msra.mxu0 0.0
    %1556 = vmatprep.subr.mxu0 0.0
    %1557 = vmatpush2.msra.mxu0 0.0
    %1558 = vmatprep.subr.mxu0 0.0
    %1559 = vmatpush2.msra.mxu0 0.0
    %1560 = vmatprep.subr.mxu0 0.0
    %1561 = vmatpush2.msra.mxu0 0.0
    %1562 = vmatprep.subr.mxu0 0.0
    %1563 = vmatpush2.msra.mxu0 0.0
    %1564 = vmatprep.subr.mxu0 0.0
    %1565 = vmatpush2.msra.mxu0 0.0
    %1566 = vmatprep.subr.mxu0 0.0
    %1567 = vmatpush2.msra.mxu0 0.0
    %1568 = vmatprep.subr.mxu0 0.0
    %1569 = vmatpush2.msra.mxu0 0.0
    %1570 = vmatprep.subr.mxu0 0.0
    %1571 = vmatpush2.msra.mxu0 0.0
    %1572 = vmatprep.subr.mxu0 0.0
    %1573 = vmatpush2.msra.mxu0 0.0
    %1574 = vmatprep.subr.mxu0 0.0
    %1575 = vmatpush2.msra.mxu0 0.0
    %1576 = vmatprep.subr.mxu0 0.0
    %1577 = vmatpush2.msra.mxu0 0.0
    %1578 = vmatprep.subr.mxu0 0.0
    %1579 = vmatpush2.msra.mxu0 0.0
    %1580 = vmatprep.mubr.f32.mxu0 0.0
    %1581 = vmatmul.mubr.f32.gmra.mxu0 %v1514
    %v1582 = vpop.f32.mrf.mxu0
    %v1583 = vadd.f32 0.0, %v1582
    %v1584 = vpop.f32.mrf.mxu0
    %1585 = vdwg.mxu0
    %v1586 = vadd.f32 %v1511, %v1583
    %s1587 = scalar_lea.vmem [#allocation9], 2
    %v1588 = vld [vmem:[%s1587] sm:$0x3]
    %v1589 = vld [vmem:[%s158] sm:$0x3]
    %v1591 = vsel %vm81, %v1589, 0
    %1593 = vmatprep.subr.mxu0 0.0
    %1594 = vmatpush1.msra.mxu0 0.0
    %1595 = vmatprep.subr.mxu0 0.0
    %1596 = vmatpush1.msra.mxu0 0.0
    %1597 = vmatprep.subr.mxu0 0.0
    %1598 = vmatpush1.msra.mxu0 0.0
    %1599 = vmatprep.subr.mxu0 0.0
    %1600 = vmatpush1.msra.mxu0 0.0
    %1601 = vmatprep.subr.mxu0 0.0
    %1602 = vmatpush1.msra.mxu0 0.0
    %1603 = vmatprep.subr.mxu0 0.0
    %1604 = vmatpush1.msra.mxu0 0.0
    %1605 = vmatprep.subr.mxu0 0.0
    %1606 = vmatpush1.msra.mxu0 0.0
    %1607 = vmatprep.subr.mxu0 0.0
    %1608 = vmatpush1.msra.mxu0 0.0
    %1609 = vmatprep.subr.mxu0 0.0
    %1610 = vmatpush1.msra.mxu0 0.0
    %1611 = vmatprep.subr.mxu0 0.0
    %1612 = vmatpush1.msra.mxu0 0.0
    %1613 = vmatprep.subr.mxu0 0.0
    %1614 = vmatpush1.msra.mxu0 0.0
    %1615 = vmatprep.subr.mxu0 0.0
    %1616 = vmatpush1.msra.mxu0 0.0
    %1617 = vmatprep.subr.mxu0 0.0
    %1618 = vmatpush1.msra.mxu0 %v73
    %1619 = vmatprep.subr.mxu0 0.0
    %1620 = vmatpush1.msra.mxu0 %v72
    %1621 = vmatprep.subr.mxu0 0.0
    %1622 = vmatpush1.msra.mxu0 %v71
    %1623 = vmatprep.subr.mxu0 0.0
    %1624 = vmatpush1.msra.mxu0 %v70
    %1625 = vmatprep.subr.mxu0 0.0
    %1626 = vmatpush2.msra.mxu0 0.0
    %1627 = vmatprep.subr.mxu0 0.0
    %1628 = vmatpush2.msra.mxu0 0.0
    %1629 = vmatprep.subr.mxu0 0.0
    %1630 = vmatpush2.msra.mxu0 0.0
    %1631 = vmatprep.subr.mxu0 0.0
    %1632 = vmatpush2.msra.mxu0 0.0
    %1633 = vmatprep.subr.mxu0 0.0
    %1634 = vmatpush2.msra.mxu0 0.0
    %1635 = vmatprep.subr.mxu0 0.0
    %1636 = vmatpush2.msra.mxu0 0.0
    %1637 = vmatprep.subr.mxu0 0.0
    %1638 = vmatpush2.msra.mxu0 0.0
    %1639 = vmatprep.subr.mxu0 0.0
    %1640 = vmatpush2.msra.mxu0 0.0
    %1641 = vmatprep.subr.mxu0 0.0
    %1642 = vmatpush2.msra.mxu0 0.0
    %1643 = vmatprep.subr.mxu0 0.0
    %1644 = vmatpush2.msra.mxu0 0.0
    %1645 = vmatprep.subr.mxu0 0.0
    %1646 = vmatpush2.msra.mxu0 0.0
    %1647 = vmatprep.subr.mxu0 0.0
    %1648 = vmatpush2.msra.mxu0 0.0
    %1649 = vmatprep.subr.mxu0 0.0
    %1650 = vmatpush2.msra.mxu0 0.0
    %1651 = vmatprep.subr.mxu0 0.0
    %1652 = vmatpush2.msra.mxu0 0.0
    %1653 = vmatprep.subr.mxu0 0.0
    %1654 = vmatpush2.msra.mxu0 0.0
    %1655 = vmatprep.subr.mxu0 0.0
    %1656 = vmatpush2.msra.mxu0 0.0
    %1657 = vmatprep.mubr.f32.mxu0 0.0
    %1658 = vmatmul.mubr.f32.gmra.mxu0 %v1591
    %v1659 = vpop.f32.mrf.mxu0
    %v1660 = vadd.f32 0.0, %v1659
    %v1661 = vpop.f32.mrf.mxu0
    %1662 = vdwg.mxu0
    %v1663 = vadd.f32 %v1588, %v1660
    %v1664 = vld [vmem:[#allocation5] sm:$0x3]
    %v1665 = vtanh.pop %v1586
    %v1666 = vxor.u32 %v1586, 2147483648
    %v1667 = vmul.f32 %v1666, 1.442695
    %v1668 = vpow.pop %v1667
    %v1669 = vadd.f32 %v1668, 1.0
    %v1670 = vrcp.pop %v1669
    %v1671 = vmul.f32 1.0, %v1670
    %v1672 = vsel %vm243, %v1665, %v1671
    %1674 = vrot.lane.b32.xlu0 %v1664, 32
    %v1675 = vpop.permute.xlu0 %1674
    %v1677 = vmul.f32 %v1672, %v1675
    %1679 = vrot.lane.b32.xlu0 %v1672, 64
    %v1680 = vpop.permute.xlu0 %1679
    %v1682 = vmul.f32 %v1672, %v1680
    %1684 = vrot.lane.b32.xlu0 %v1682, 32
    %v1685 = vpop.permute.xlu0 %1684
    %v1687 = vadd.f32 %v1677, %v1685
    %v1688 = vtanh.pop %v1687
    %1690 = vrot.lane.b32.xlu0 %v1688, 64
    %v1691 = vpop.permute.xlu0 %1690
    %v1693 = vmul.f32 %v1672, %v1691
    %v1694 = vld [vmem:[%s266] sm:$0x3]
    %v1695 = vtanh.pop %v1663
    %v1696 = vxor.u32 %v1663, 2147483648
    %v1697 = vmul.f32 %v1696, 1.442695
    %v1698 = vpow.pop %v1697
    %v1699 = vadd.f32 %v1698, 1.0
    %v1700 = vrcp.pop %v1699
    %v1701 = vmul.f32 1.0, %v1700
    %v1702 = vsel %vm243, %v1695, %v1701
    %1704 = vrot.lane.b32.xlu0 %v1694, 32
    %v1705 = vpop.permute.xlu0 %1704
    %v1707 = vmul.f32 %v1702, %v1705
    %1709 = vrot.lane.b32.xlu0 %v1702, 64
    %v1710 = vpop.permute.xlu0 %1709
    %v1712 = vmul.f32 %v1702, %v1710
    %1714 = vrot.lane.b32.xlu0 %v1712, 32
    %v1715 = vpop.permute.xlu0 %1714
    %v1717 = vadd.f32 %v1707, %v1715
    %v1718 = vtanh.pop %v1717
    %1720 = vrot.lane.b32.xlu0 %v1718, 64
    %v1721 = vpop.permute.xlu0 %1720
    %v1723 = vmul.f32 %v1702, %v1721
    %1725 = vrot.lane.b32.xlu0 %v1693, 32
    %v1726 = vpop.permute.xlu0 %1725
    %1728 = vst.msk [vmem:[#allocation4] sm:$0x3] %vm60, %v1726
    %1730 = vrot.lane.b32.xlu0 %v1723, 32
    %v1731 = vpop.permute.xlu0 %1730
    %1733 = vst.msk [vmem:[%s158] sm:$0x3] %vm60, %v1731
    %1735 = vrot.lane.b32.xlu0 %v1687, 96
    %v1736 = vpop.permute.xlu0 %1735
    %1738 = vst.msk [vmem:[#allocation5] sm:$0x3] %vm60, %v1736
    %1740 = vrot.lane.b32.xlu0 %v1717, 96
    %v1741 = vpop.permute.xlu0 %1740
    %1743 = vst.msk [vmem:[%s266] sm:$0x3] %vm60, %v1741
    %s1744 = scalar_lea.vmem [#allocation2], 12
    %1745 = vst.msk [vmem:[%s1744] sm:$0x3] %vm60, %v1726
    %s1746 = scalar_lea.vmem [#allocation3], 2
    %1747 = vst.msk [vmem:[%s1746] sm:$0x3] %vm60, %v1731
    %s1748 = scalar_lea.vmem [#allocation6], 14
    %v1749 = vld [vmem:[%s1748] sm:$0x3]
    %v1750 = vld [vmem:[#allocation4] sm:$0x3]
    %v1752 = vsel %vm81, %v1750, 0
    %1754 = vmatprep.subr.mxu0 0.0
    %1755 = vmatpush1.msra.mxu0 0.0
    %1756 = vmatprep.subr.mxu0 0.0
    %1757 = vmatpush1.msra.mxu0 0.0
    %1758 = vmatprep.subr.mxu0 0.0
    %1759 = vmatpush1.msra.mxu0 0.0
    %1760 = vmatprep.subr.mxu0 0.0
    %1761 = vmatpush1.msra.mxu0 0.0
    %1762 = vmatprep.subr.mxu0 0.0
    %1763 = vmatpush1.msra.mxu0 0.0
    %1764 = vmatprep.subr.mxu0 0.0
    %1765 = vmatpush1.msra.mxu0 0.0
    %1766 = vmatprep.subr.mxu0 0.0
    %1767 = vmatpush1.msra.mxu0 0.0
    %1768 = vmatprep.subr.mxu0 0.0
    %1769 = vmatpush1.msra.mxu0 0.0
    %1770 = vmatprep.subr.mxu0 0.0
    %1771 = vmatpush1.msra.mxu0 0.0
    %1772 = vmatprep.subr.mxu0 0.0
    %1773 = vmatpush1.msra.mxu0 0.0
    %1774 = vmatprep.subr.mxu0 0.0
    %1775 = vmatpush1.msra.mxu0 0.0
    %1776 = vmatprep.subr.mxu0 0.0
    %1777 = vmatpush1.msra.mxu0 0.0
    %1778 = vmatprep.subr.mxu0 0.0
    %1779 = vmatpush1.msra.mxu0 %v68
    %1780 = vmatprep.subr.mxu0 0.0
    %1781 = vmatpush1.msra.mxu0 %v67
    %1782 = vmatprep.subr.mxu0 0.0
    %1783 = vmatpush1.msra.mxu0 %v66
    %1784 = vmatprep.subr.mxu0 0.0
    %1785 = vmatpush1.msra.mxu0 %v65
    %1786 = vmatprep.subr.mxu0 0.0
    %1787 = vmatpush2.msra.mxu0 0.0
    %1788 = vmatprep.subr.mxu0 0.0
    %1789 = vmatpush2.msra.mxu0 0.0
    %1790 = vmatprep.subr.mxu0 0.0
    %1791 = vmatpush2.msra.mxu0 0.0
    %1792 = vmatprep.subr.mxu0 0.0
    %1793 = vmatpush2.msra.mxu0 0.0
    %1794 = vmatprep.subr.mxu0 0.0
    %1795 = vmatpush2.msra.mxu0 0.0
    %1796 = vmatprep.subr.mxu0 0.0
    %1797 = vmatpush2.msra.mxu0 0.0
    %1798 = vmatprep.subr.mxu0 0.0
    %1799 = vmatpush2.msra.mxu0 0.0
    %1800 = vmatprep.subr.mxu0 0.0
    %1801 = vmatpush2.msra.mxu0 0.0
    %1802 = vmatprep.subr.mxu0 0.0
    %1803 = vmatpush2.msra.mxu0 0.0
    %1804 = vmatprep.subr.mxu0 0.0
    %1805 = vmatpush2.msra.mxu0 0.0
    %1806 = vmatprep.subr.mxu0 0.0
    %1807 = vmatpush2.msra.mxu0 0.0
    %1808 = vmatprep.subr.mxu0 0.0
    %1809 = vmatpush2.msra.mxu0 0.0
    %1810 = vmatprep.subr.mxu0 0.0
    %1811 = vmatpush2.msra.mxu0 0.0
    %1812 = vmatprep.subr.mxu0 0.0
    %1813 = vmatpush2.msra.mxu0 0.0
    %1814 = vmatprep.subr.mxu0 0.0
    %1815 = vmatpush2.msra.mxu0 0.0
    %1816 = vmatprep.subr.mxu0 0.0
    %1817 = vmatpush2.msra.mxu0 0.0
    %1818 = vmatprep.mubr.f32.mxu0 0.0
    %1819 = vmatmul.mubr.f32.gmra.mxu0 %v1752
    %v1820 = vpop.f32.mrf.mxu0
    %v1821 = vadd.f32 0.0, %v1820
    %v1822 = vpop.f32.mrf.mxu0
    %1823 = vdwg.mxu0
    %v1824 = vadd.f32 %v1749, %v1821
    %v1825 = vld [vmem:[#allocation9] sm:$0x3]
    %v1826 = vld [vmem:[%s158] sm:$0x3]
    %v1828 = vsel %vm81, %v1826, 0
    %1830 = vmatprep.subr.mxu0 0.0
    %1831 = vmatpush1.msra.mxu0 0.0
    %1832 = vmatprep.subr.mxu0 0.0
    %1833 = vmatpush1.msra.mxu0 0.0
    %1834 = vmatprep.subr.mxu0 0.0
    %1835 = vmatpush1.msra.mxu0 0.0
    %1836 = vmatprep.subr.mxu0 0.0
    %1837 = vmatpush1.msra.mxu0 0.0
    %1838 = vmatprep.subr.mxu0 0.0
    %1839 = vmatpush1.msra.mxu0 0.0
    %1840 = vmatprep.subr.mxu0 0.0
    %1841 = vmatpush1.msra.mxu0 0.0
    %1842 = vmatprep.subr.mxu0 0.0
    %1843 = vmatpush1.msra.mxu0 0.0
    %1844 = vmatprep.subr.mxu0 0.0
    %1845 = vmatpush1.msra.mxu0 0.0
    %1846 = vmatprep.subr.mxu0 0.0
    %1847 = vmatpush1.msra.mxu0 0.0
    %1848 = vmatprep.subr.mxu0 0.0
    %1849 = vmatpush1.msra.mxu0 0.0
    %1850 = vmatprep.subr.mxu0 0.0
    %1851 = vmatpush1.msra.mxu0 0.0
    %1852 = vmatprep.subr.mxu0 0.0
    %1853 = vmatpush1.msra.mxu0 0.0
    %1854 = vmatprep.subr.mxu0 0.0
    %1855 = vmatpush1.msra.mxu0 %v73
    %1856 = vmatprep.subr.mxu0 0.0
    %1857 = vmatpush1.msra.mxu0 %v72
    %1858 = vmatprep.subr.mxu0 0.0
    %1859 = vmatpush1.msra.mxu0 %v71
    %1860 = vmatprep.subr.mxu0 0.0
    %1861 = vmatpush1.msra.mxu0 %v70
    %1862 = vmatprep.subr.mxu0 0.0
    %1863 = vmatpush2.msra.mxu0 0.0
    %1864 = vmatprep.subr.mxu0 0.0
    %1865 = vmatpush2.msra.mxu0 0.0
    %1866 = vmatprep.subr.mxu0 0.0
    %1867 = vmatpush2.msra.mxu0 0.0
    %1868 = vmatprep.subr.mxu0 0.0
    %1869 = vmatpush2.msra.mxu0 0.0
    %1870 = vmatprep.subr.mxu0 0.0
    %1871 = vmatpush2.msra.mxu0 0.0
    %1872 = vmatprep.subr.mxu0 0.0
    %1873 = vmatpush2.msra.mxu0 0.0
    %1874 = vmatprep.subr.mxu0 0.0
    %1875 = vmatpush2.msra.mxu0 0.0
    %1876 = vmatprep.subr.mxu0 0.0
    %1877 = vmatpush2.msra.mxu0 0.0
    %1878 = vmatprep.subr.mxu0 0.0
    %1879 = vmatpush2.msra.mxu0 0.0
    %1880 = vmatprep.subr.mxu0 0.0
    %1881 = vmatpush2.msra.mxu0 0.0
    %1882 = vmatprep.subr.mxu0 0.0
    %1883 = vmatpush2.msra.mxu0 0.0
    %1884 = vmatprep.subr.mxu0 0.0
    %1885 = vmatpush2.msra.mxu0 0.0
    %1886 = vmatprep.subr.mxu0 0.0
    %1887 = vmatpush2.msra.mxu0 0.0
    %1888 = vmatprep.subr.mxu0 0.0
    %1889 = vmatpush2.msra.mxu0 0.0
    %1890 = vmatprep.subr.mxu0 0.0
    %1891 = vmatpush2.msra.mxu0 0.0
    %1892 = vmatprep.subr.mxu0 0.0
    %1893 = vmatpush2.msra.mxu0 0.0
    %1894 = vmatprep.mubr.f32.mxu0 0.0
    %1895 = vmatmul.mubr.f32.gmra.mxu0 %v1828
    %v1896 = vpop.f32.mrf.mxu0
    %v1897 = vadd.f32 0.0, %v1896
    %v1898 = vpop.f32.mrf.mxu0
    %1899 = vdwg.mxu0
    %v1900 = vadd.f32 %v1825, %v1897
    %v1901 = vld [vmem:[#allocation5] sm:$0x3]
    %v1902 = vtanh.pop %v1824
    %v1903 = vxor.u32 %v1824, 2147483648
    %v1904 = vmul.f32 %v1903, 1.442695
    %v1905 = vpow.pop %v1904
    %v1906 = vadd.f32 %v1905, 1.0
    %v1907 = vrcp.pop %v1906
    %v1908 = vmul.f32 1.0, %v1907
    %v1909 = vsel %vm243, %v1902, %v1908
    %1911 = vrot.lane.b32.xlu0 %v1901, 32
    %v1912 = vpop.permute.xlu0 %1911
    %v1914 = vmul.f32 %v1909, %v1912
    %1916 = vrot.lane.b32.xlu0 %v1909, 64
    %v1917 = vpop.permute.xlu0 %1916
    %v1919 = vmul.f32 %v1909, %v1917
    %1921 = vrot.lane.b32.xlu0 %v1919, 32
    %v1922 = vpop.permute.xlu0 %1921
    %v1924 = vadd.f32 %v1914, %v1922
    %v1925 = vtanh.pop %v1924
    %1927 = vrot.lane.b32.xlu0 %v1925, 64
    %v1928 = vpop.permute.xlu0 %1927
    %v1930 = vmul.f32 %v1909, %v1928
    %v1931 = vld [vmem:[%s266] sm:$0x3]
    %v1932 = vtanh.pop %v1900
    %v1933 = vxor.u32 %v1900, 2147483648
    %v1934 = vmul.f32 %v1933, 1.442695
    %v1935 = vpow.pop %v1934
    %v1936 = vadd.f32 %v1935, 1.0
    %v1937 = vrcp.pop %v1936
    %v1938 = vmul.f32 1.0, %v1937
    %v1939 = vsel %vm243, %v1932, %v1938
    %1941 = vrot.lane.b32.xlu0 %v1931, 32
    %v1942 = vpop.permute.xlu0 %1941
    %v1944 = vmul.f32 %v1939, %v1942
    %1946 = vrot.lane.b32.xlu0 %v1939, 64
    %v1947 = vpop.permute.xlu0 %1946
    %v1949 = vmul.f32 %v1939, %v1947
    %1951 = vrot.lane.b32.xlu0 %v1949, 32
    %v1952 = vpop.permute.xlu0 %1951
    %v1954 = vadd.f32 %v1944, %v1952
    %v1955 = vtanh.pop %v1954
    %1957 = vrot.lane.b32.xlu0 %v1955, 64
    %v1958 = vpop.permute.xlu0 %1957
    %v1960 = vmul.f32 %v1939, %v1958
    %1962 = vrot.lane.b32.xlu0 %v1930, 32
    %v1963 = vpop.permute.xlu0 %1962
    %1965 = vst.msk [vmem:[#allocation4] sm:$0x3] %vm60, %v1963
    %1967 = vrot.lane.b32.xlu0 %v1960, 32
    %v1968 = vpop.permute.xlu0 %1967
    %1970 = vst.msk [vmem:[%s158] sm:$0x3] %vm60, %v1968
    %1972 = vrot.lane.b32.xlu0 %v1924, 96
    %v1973 = vpop.permute.xlu0 %1972
    %1975 = vst.msk [vmem:[#allocation5] sm:$0x3] %vm60, %v1973
    %1977 = vrot.lane.b32.xlu0 %v1954, 96
    %v1978 = vpop.permute.xlu0 %1977
    %1980 = vst.msk [vmem:[%s266] sm:$0x3] %vm60, %v1978
    %s1981 = scalar_lea.vmem [#allocation2], 14
    %1982 = vst.msk [vmem:[%s1981] sm:$0x3] %vm60, %v1963
    %1983 = vst.msk [vmem:[#allocation3] sm:$0x3] %vm60, %v1968
    %v1984 = vld [vmem:[#allocation2] sm:$0x3]
    %v1985 = vld [vmem:[#allocation2 + $0x2] sm:$0x3]
    %v1986 = vld [vmem:[#allocation2 + $0x4] sm:$0x3]
    %v1987 = vld [vmem:[#allocation2 + $0x6] sm:$0x3]
    %v1988 = vld [vmem:[#allocation2 + $0x8] sm:$0x3]
    %v1989 = vld [vmem:[#allocation2 + $0xa] sm:$0x3]
    %v1990 = vld [vmem:[#allocation2 + $0xc] sm:$0x3]
    %v1991 = vld [vmem:[#allocation2 + $0xe] sm:$0x3]
    %v1992 = vld [vmem:[#allocation3] sm:$0x3]
    %v1993 = vld [vmem:[#allocation3 + $0x2] sm:$0x3]
    %v1994 = vld [vmem:[#allocation3 + $0x4] sm:$0x3]
    %v1995 = vld [vmem:[#allocation3 + $0x6] sm:$0x3]
    %v1996 = vld [vmem:[#allocation3 + $0x8] sm:$0x3]
    %v1997 = vld [vmem:[#allocation3 + $0xa] sm:$0x3]
    %v1998 = vld [vmem:[#allocation3 + $0xc] sm:$0x3]
    %v1999 = vld [vmem:[#allocation3 + $0xe] sm:$0x3]
    %2008 = vrot.lane.b32.xlu0 %v1992, 32
    %v2009 = vpop.permute.xlu0 %2008
    %2010 = vrot.lane.b32.xlu0 %v1993, 32
    %v2011 = vpop.permute.xlu0 %2010
    %2012 = vrot.lane.b32.xlu0 %v1994, 32
    %v2013 = vpop.permute.xlu0 %2012
    %2014 = vrot.lane.b32.xlu0 %v1995, 32
    %v2015 = vpop.permute.xlu0 %2014
    %2016 = vrot.lane.b32.xlu0 %v1996, 32
    %v2017 = vpop.permute.xlu0 %2016
    %2018 = vrot.lane.b32.xlu0 %v1997, 32
    %v2019 = vpop.permute.xlu0 %2018
    %2020 = vrot.lane.b32.xlu0 %v1998, 32
    %v2021 = vpop.permute.xlu0 %2020
    %2022 = vrot.lane.b32.xlu0 %v1999, 32
    %v2023 = vpop.permute.xlu0 %2022
    %v2032 = vsel %vm81, %v1984, %v2009
    %v2033 = vsel %vm81, %v1985, %v2011
    %v2034 = vsel %vm81, %v1986, %v2013
    %v2035 = vsel %vm81, %v1987, %v2015
    %v2036 = vsel %vm81, %v1988, %v2017
    %v2037 = vsel %vm81, %v1989, %v2019
    %v2038 = vsel %vm81, %v1990, %v2021
    %v2039 = vsel %vm81, %v1991, %v2023
    %vm2040 = vcmask 517120
    %2041 = vst.msk [vmem:[#allocation12] sm:$0x3] %vm2040, %v2032
    %2042 = vst.msk [vmem:[#allocation12 + $0x2] sm:$0x3] %vm2040, %v2033
    %2043 = vst.msk [vmem:[#allocation12 + $0x4] sm:$0x3] %vm2040, %v2034
    %2044 = vst.msk [vmem:[#allocation12 + $0x6] sm:$0x3] %vm2040, %v2035
    %2045 = vst.msk [vmem:[#allocation12 + $0x8] sm:$0x3] %vm2040, %v2036
    %2046 = vst.msk [vmem:[#allocation12 + $0xa] sm:$0x3] %vm2040, %v2037
    %2047 = vst.msk [vmem:[#allocation12 + $0xc] sm:$0x3] %vm2040, %v2038
    %2048 = vst.msk [vmem:[#allocation12 + $0xe] sm:$0x3] %vm2040, %v2039
    %v2049 = vld [vmem:[#allocation4] sm:$0x3]
    %v2050 = vld [vmem:[#allocation4 + $0x2] sm:$0x3]
    %2051 = vst.msk [vmem:[#allocation13] sm:$0x3] %vm60, %v2049
    %2052 = vst.msk [vmem:[#allocation13 + $0x2] sm:$0x3] %vm60, %v2050
    %v2053 = vld [vmem:[#allocation5] sm:$0x3]
    %v2054 = vld [vmem:[#allocation5 + $0x2] sm:$0x3]
    %2055 = vst.msk [vmem:[#allocation15] sm:$0x3] %vm60, %v2053
    %2056 = vst.msk [vmem:[#allocation15 + $0x2] sm:$0x3] %vm60, %v2054
    // Predicated region
    $region26: #{tpu_custom_call.1} parent=1 // pred_check
      _
    $region27: #{tpu_custom_call.1} parent=1 // pred_check_branch
      %2058 = sbr.rel (0) target = $region29
    $region28: #{tpu_custom_call.1} parent=1 // pred_region
      %s2060 = ssub.s32 256, 256
      %2061 = vsyncadd [#allocation8], %s2060
      %s2062 = sshll.u32 [#allocation12], 4
      %s2063 = int_to_ptr.vmem [resolvable:$true] %s2062
      %2068 = dma.vmem_to_hbm [thread:$0]  %s2063, 256, %s3, [#allocation8], 32, 32, 2
    $region29: #{tpu_custom_call.1} parent=1 // pred_fallthru
      _
    // Predicated region
    $region30: #{tpu_custom_call.1} parent=1 // pred_check
      _
    $region31: #{tpu_custom_call.1} parent=1 // pred_check_branch
      %2070 = sbr.rel (0) target = $region33
    $region32: #{tpu_custom_call.1} parent=1 // pred_region
      %s2072 = ssub.s32 64, 64
      %2073 = vsyncadd [#allocation14], %s2072
      %s2074 = sshll.u32 [#allocation13], 4
      %s2075 = int_to_ptr.vmem [resolvable:$true] %s2074
      %2080 = dma.vmem_to_hbm [thread:$0]  %s2075, 64, %s4, [#allocation14], 32, 32, 2
    $region33: #{tpu_custom_call.1} parent=1 // pred_fallthru
      _
    // Predicated region
    $region34: #{tpu_custom_call.1} parent=1 // pred_check
      _
    $region35: #{tpu_custom_call.1} parent=1 // pred_check_branch
      %2082 = sbr.rel (0) target = $region37
    $region36: #{tpu_custom_call.1} parent=1 // pred_region
      %s2084 = ssub.s32 64, 64
      %2085 = vsyncadd [#allocation14], %s2084
      %s2086 = sshll.u32 [#allocation15], 4
      %s2087 = int_to_ptr.vmem [resolvable:$true] %s2086
      %2092 = dma.vmem_to_hbm [thread:$0]  %s2087, 64, %s5, [#allocation14], 32, 32, 2
    $region37: #{tpu_custom_call.1} parent=1 // pred_fallthru
      _
    // Predicated region
    $region38: #{tpu_custom_call.1} parent=1 // pred_check
      _
    $region39: #{tpu_custom_call.1} parent=1 // pred_check_branch
      %2094 = sbr.rel (0) target = $region41
    $region40: #{tpu_custom_call.1} parent=1 // pred_region
      %2095 = dma.done [#allocation8], 256
    $region41: #{tpu_custom_call.1} parent=1 // pred_fallthru
      _
    // Predicated region
    $region42: #{tpu_custom_call.1} parent=1 // pred_check
      _
    $region43: #{tpu_custom_call.1} parent=1 // pred_check_branch
      %2097 = sbr.rel (0) target = $region45
    $region44: #{tpu_custom_call.1} parent=1 // pred_region
      %2098 = dma.done [#allocation14], 64
    $region45: #{tpu_custom_call.1} parent=1 // pred_fallthru
      _
    // Predicated region
    $region46: #{tpu_custom_call.1} parent=1 // pred_check
      _
    $region47: #{tpu_custom_call.1} parent=1 // pred_check_branch
      %2100 = sbr.rel (0) target = $region49
    $region48: #{tpu_custom_call.1} parent=1 // pred_region
      %2101 = dma.done [#allocation14], 64
    $region49: #{tpu_custom_call.1} parent=1 // pred_fallthru
      _
    %2102 = vsyncpa [#allocation7], 1
    %2103 = vsyncpa [#allocation10], 1
    %2104 = vsyncpa [#allocation8], 1
    %2105 = vsyncpa [#allocation14], 1

</llo_original>
